<compile_context>
chip_gen: v7x
topology: tpu7x:2x2x1
jax: 0.10.0
libtpu: 0.0.40
codegen_flags: <defaults>
</compile_context>

<pallas_src>
import functools
import jax
import jax.numpy as jnp
from jax.experimental import pallas as pl
from jax.experimental.pallas import tpu as pltpu


# ----------------------------------------------------------------------------
# fused Block kernel (one grid step == one batch element)
# ----------------------------------------------------------------------------
def _layernorm(x, w, b, eps):
    mu = jnp.mean(x, axis=-1, keepdims=True)
    xc = x - mu
    var = jnp.mean(xc * xc, axis=-1, keepdims=True)
    return xc * jax.lax.rsqrt(var + eps) * w + b


def _block_kernel(x_ref, ln1w_ref, ln1b_ref,
                  wq_ref, wk_ref, wv_ref, wproj_ref, bproj_ref,
                  ln2w_ref, ln2b_ref,
                  wfc1_ref, bfc1_ref, wfc2_ref, bfc2_ref,
                  o_ref, *, num_heads, scale, eps):
    f32 = jnp.float32
    bf16 = jnp.bfloat16

    x = x_ref[...].astype(f32)                                    # (N, C)

    # ---- LN1 ----
    h1 = _layernorm(x, ln1w_ref[...], ln1b_ref[...], eps)         # (N, C) f32
    h1b = h1.astype(bf16)

    # ---- multi-head self-attention, projected straight into (N, C) ----
    attn_acc = jnp.zeros(x.shape, f32)
    for h in range(num_heads):                                    # static, small H
        q = jnp.dot(h1b, wq_ref[h], preferred_element_type=f32)   # (N, hd)
        k = jnp.dot(h1b, wk_ref[h], preferred_element_type=f32)   # (N, hd)
        v = jnp.dot(h1b, wv_ref[h], preferred_element_type=f32)   # (N, hd)

        s = jax.lax.dot_general(q.astype(bf16), k.astype(bf16),
                                (((1,), (1,)), ((), ())),
                                preferred_element_type=f32) * scale  # (N, N)
        m = jnp.max(s, axis=-1, keepdims=True)
        e = jnp.exp(s - m)
        p = e / jnp.sum(e, axis=-1, keepdims=True)                 # exact softmax

        o_h = jnp.dot(p.astype(bf16), v.astype(bf16),
                      preferred_element_type=f32)                  # (N, hd)
        # per-head output projection accumulated into the residual space
        attn_acc = attn_acc + jnp.dot(o_h.astype(bf16), wproj_ref[h],
                                      preferred_element_type=f32)  # (N, C)

    x2 = x + attn_acc + bproj_ref[...].astype(f32)                 # residual 1

    # ---- LN2 + MLP ----
    h2 = _layernorm(x2, ln2w_ref[...], ln2b_ref[...], eps).astype(bf16)
    u = jnp.dot(h2, wfc1_ref[...], preferred_element_type=f32)
    u = u + bfc1_ref[...].astype(f32)
    u = 0.5 * u * (1.0 + jax.lax.erf(u * (2.0 ** -0.5)))           # exact GELU
    y = jnp.dot(u.astype(bf16), wfc2_ref[...], preferred_element_type=f32)
    x3 = x2 + y + bfc2_ref[...].astype(f32)                        # residual 2

    o_ref[...] = x3.astype(o_ref.dtype)


# ----------------------------------------------------------------------------
# wrapper: weight layout prep (head-major slabs) + single pallas_call
# ----------------------------------------------------------------------------
def block_forward(params, x, num_heads, eps=1e-6):
    B, N, C = x.shape
    assert C % num_heads == 0
    hd = C // num_heads
    scale = float(hd) ** -0.5
    hidden = params["mlp"]["fc1"]["w"].shape[1]
    bf16, f32 = jnp.bfloat16, jnp.float32

    wqkv = params["attn"]["qkv"]["w"]                              # (C, 3C), (in, out)

    def per_head(wslab):                                           # (C, C) -> (H, C, hd)
        return wslab.reshape(C, num_heads, hd).transpose(1, 0, 2).astype(bf16)

    wq = per_head(wqkv[:, 0 * C:1 * C])
    wk = per_head(wqkv[:, 1 * C:2 * C])
    wv = per_head(wqkv[:, 2 * C:3 * C])
    wproj = params["attn"]["proj"]["w"].reshape(num_heads, hd, C).astype(bf16)
    bproj = params["attn"]["proj"]["b"].reshape(1, C).astype(f32)

    ln1w = params["norm1"]["w"].reshape(1, C).astype(f32)
    ln1b = params["norm1"]["b"].reshape(1, C).astype(f32)
    ln2w = params["norm2"]["w"].reshape(1, C).astype(f32)
    ln2b = params["norm2"]["b"].reshape(1, C).astype(f32)

    wfc1 = params["mlp"]["fc1"]["w"].astype(bf16)                  # (C, hidden)
    bfc1 = params["mlp"]["fc1"]["b"].reshape(1, hidden).astype(f32)
    wfc2 = params["mlp"]["fc2"]["w"].astype(bf16)                  # (hidden, C)
    bfc2 = params["mlp"]["fc2"]["b"].reshape(1, C).astype(f32)

    def full(shape):
        return pl.BlockSpec(shape, lambda b, _s=len(shape): (0,) * _s)

    x_spec = pl.BlockSpec((None, N, C), lambda b: (b, 0, 0))       # leading dim squeezed

    kernel = functools.partial(_block_kernel, num_heads=num_heads, scale=scale, eps=eps)

    out = pl.pallas_call(
        kernel,
        out_shape=jax.ShapeDtypeStruct((B, N, C), f32),
        grid_spec=pltpu.PrefetchScalarGridSpec(
            num_scalar_prefetch=0,
            grid=(B,),
            in_specs=[
                x_spec,
                full((1, C)), full((1, C)),                        # ln1 w, b
                full((num_heads, C, hd)),                          # wq
                full((num_heads, C, hd)),                          # wk
                full((num_heads, C, hd)),                          # wv
                full((num_heads, hd, C)),                          # wproj
                full((1, C)),                                      # bproj
                full((1, C)), full((1, C)),                        # ln2 w, b
                full((C, hidden)), full((1, hidden)),              # fc1
                full((hidden, C)), full((1, C)),                   # fc2
            ],
            out_specs=x_spec,
        ),
        compiler_params=pltpu.CompilerParams(
            dimension_semantics=("parallel",)),                    # megacore on v7x
    )(x.astype(f32), ln1w, ln1b, wq, wk, wv, wproj, bproj,
      ln2w, ln2b, wfc1, bfc1, wfc2, bfc2)
    return out


# ----------------------------------------------------------------------------
# pure-JAX reference (mirrors the PyTorch Block) for a tolerance check
# ----------------------------------------------------------------------------
def block_reference(p, x, num_heads, eps=1e-6):
    B, N, C = x.shape
    hd = C // num_heads
    scale = hd ** -0.5

    def ln(v, w, b):
        mu = v.mean(-1, keepdims=True)
        var = ((v - mu) ** 2).mean(-1, keepdims=True)
        return (v - mu) / jnp.sqrt(var + eps) * w + b

    h = ln(x, p["norm1"]["w"], p["norm1"]["b"])
    qkv = h @ p["attn"]["qkv"]["w"]                                # (B, N, 3C)
    qkv = qkv.reshape(B, N, 3, num_heads, hd).transpose(2, 0, 3, 1, 4)
    q, k, v = qkv[0], qkv[1], qkv[2]
    attn = jnp.einsum('bhnd,bhmd->bhnm', q, k) * scale
    attn = jax.nn.softmax(attn, axis=-1)
    o = jnp.einsum('bhnm,bhmd->bhnd', attn, v)
    o = o.transpose(0, 2, 1, 3).reshape(B, N, C)
    x = x + o @ p["attn"]["proj"]["w"] + p["attn"]["proj"]["b"]
    h = ln(x, p["norm2"]["w"], p["norm2"]["b"])
    u = h @ p["mlp"]["fc1"]["w"] + p["mlp"]["fc1"]["b"]
    u = 0.5 * u * (1.0 + jax.lax.erf(u * (2.0 ** -0.5)))
    x = x + u @ p["mlp"]["fc2"]["w"] + p["mlp"]["fc2"]["b"]
    return x


# ----------------------------------------------------------------------------
# deterministic parameter init (linear weights stored pre-transposed as (in, out))
# ----------------------------------------------------------------------------
def init_linear(key, in_f, out_f, bias=True):
    p = {"w": 0.02 * jax.random.normal(key, (in_f, out_f), jnp.float32)}
    if bias:
        p["b"] = jnp.zeros((out_f,), jnp.float32)
    return p


def init_norm(c):
    return {"w": jnp.ones((c,), jnp.float32), "b": jnp.zeros((c,), jnp.float32)}


def init_block(key, dim, mlp_ratio):
    ks = jax.random.split(key, 4)
    hidden = int(dim * mlp_ratio)
    return {
        "norm1": init_norm(dim),
        "norm2": init_norm(dim),
        "attn": {"qkv": init_linear(ks[0], dim, dim * 3, bias=False),
                 "proj": init_linear(ks[1], dim, dim, bias=True)},
        "mlp": {"fc1": init_linear(ks[2], dim, hidden, bias=True),
                "fc2": init_linear(ks[3], hidden, dim, bias=True)},
    }


# ----------------------------------------------------------------------------
# main
# ----------------------------------------------------------------------------
if __name__ == "__main__":
    key = jax.random.PRNGKey(0)
    pk, xk = jax.random.split(key)

    B, N, C = 2, 32, 64
    NUM_HEADS = 4
    MLP_RATIO = 4.0

    params = init_block(pk, C, MLP_RATIO)
    x = jax.random.normal(xk, (B, N, C), jnp.float32)

    fwd = jax.jit(functools.partial(block_forward, num_heads=NUM_HEADS))
    y = fwd(params, x)
    jax.block_until_ready(y)

    assert y.shape == (B, N, C), y.shape
    assert bool(jnp.all(jnp.isfinite(y)))

    # bf16-tolerant correctness check against the pure-JAX reference
    y_ref = block_reference(params, x, NUM_HEADS)
    max_err = float(jnp.max(jnp.abs(y - y_ref)))
    assert max_err < 5e-2, f"max abs err {max_err}"

    print("KERNEL_OK")
</pallas_src>

<mosaic_0001>
module attributes {stable_mosaic.version = 11 : i64} {
  func.func @_block_kernel(%arg0: i32, %arg1: memref<1x32x64xf32, #tpu.memory_space<vmem>>, %arg2: memref<1x64xf32, #tpu.memory_space<vmem>>, %arg3: memref<1x64xf32, #tpu.memory_space<vmem>>, %arg4: memref<4x64x16xbf16, #tpu.memory_space<vmem>>, %arg5: memref<4x64x16xbf16, #tpu.memory_space<vmem>>, %arg6: memref<4x64x16xbf16, #tpu.memory_space<vmem>>, %arg7: memref<4x16x64xbf16, #tpu.memory_space<vmem>>, %arg8: memref<1x64xf32, #tpu.memory_space<vmem>>, %arg9: memref<1x64xf32, #tpu.memory_space<vmem>>, %arg10: memref<1x64xf32, #tpu.memory_space<vmem>>, %arg11: memref<64x256xbf16, #tpu.memory_space<vmem>>, %arg12: memref<1x256xf32, #tpu.memory_space<vmem>>, %arg13: memref<256x64xbf16, #tpu.memory_space<vmem>>, %arg14: memref<1x64xf32, #tpu.memory_space<vmem>>, %arg15: memref<1x32x64xf32, #tpu.memory_space<vmem>>) attributes {dimension_semantics = [#tpu.dimension_semantics<parallel>], iteration_bounds = array<i64: 2>, scalar_prefetch = 0 : i64, scratch_operands = 0 : i64, tpu.core_type = #tpu.core_type<tc>, window_params = [{transform_indices = @transform_0, window_bounds = array<i64: 1, 32, 64>}, {pipeline_mode = #tpu.pipeline_mode<synchronous>, transform_indices = @transform_1, window_bounds = array<i64: 1, 64>}, {pipeline_mode = #tpu.pipeline_mode<synchronous>, transform_indices = @transform_2, window_bounds = array<i64: 1, 64>}, {pipeline_mode = #tpu.pipeline_mode<synchronous>, transform_indices = @transform_3, window_bounds = array<i64: 4, 64, 16>}, {pipeline_mode = #tpu.pipeline_mode<synchronous>, transform_indices = @transform_4, window_bounds = array<i64: 4, 64, 16>}, {pipeline_mode = #tpu.pipeline_mode<synchronous>, transform_indices = @transform_5, window_bounds = array<i64: 4, 64, 16>}, {pipeline_mode = #tpu.pipeline_mode<synchronous>, transform_indices = @transform_6, window_bounds = array<i64: 4, 16, 64>}, {pipeline_mode = #tpu.pipeline_mode<synchronous>, transform_indices = @transform_7, window_bounds = array<i64: 1, 64>}, {pipeline_mode = #tpu.pipeline_mode<synchronous>, transform_indices = @transform_8, window_bounds = array<i64: 1, 64>}, {pipeline_mode = #tpu.pipeline_mode<synchronous>, transform_indices = @transform_9, window_bounds = array<i64: 1, 64>}, {pipeline_mode = #tpu.pipeline_mode<synchronous>, transform_indices = @transform_10, window_bounds = array<i64: 64, 256>}, {pipeline_mode = #tpu.pipeline_mode<synchronous>, transform_indices = @transform_11, window_bounds = array<i64: 1, 256>}, {pipeline_mode = #tpu.pipeline_mode<synchronous>, transform_indices = @transform_12, window_bounds = array<i64: 256, 64>}, {pipeline_mode = #tpu.pipeline_mode<synchronous>, transform_indices = @transform_13, window_bounds = array<i64: 1, 64>}, {transform_indices = @transform_14, window_bounds = array<i64: 1, 32, 64>}]} {
    %c0 = arith.constant 0 : index
    %c0_0 = arith.constant 0 : index
    %c0_1 = arith.constant 0 : index
    %0 = vector.load %arg1[%c0, %c0_0, %c0_1] : memref<1x32x64xf32, #tpu.memory_space<vmem>>, vector<1x32x64xf32>
    %1 = vector.shape_cast %0 : vector<1x32x64xf32> to vector<32x64xf32>
    %c0_2 = arith.constant 0 : index
    %c0_3 = arith.constant 0 : index
    %2 = vector.load %arg2[%c0_2, %c0_3] : memref<1x64xf32, #tpu.memory_space<vmem>>, vector<1x64xf32>
    %c0_4 = arith.constant 0 : index
    %c0_5 = arith.constant 0 : index
    %3 = vector.load %arg3[%c0_4, %c0_5] : memref<1x64xf32, #tpu.memory_space<vmem>>, vector<1x64xf32>
    %cst = arith.constant dense<0.000000e+00> : vector<32xf32>
    %4 = vector.multi_reduction <add>, %1, %cst [1] : vector<32x64xf32> to vector<32xf32>
    %5 = vector.shape_cast %4 : vector<32xf32> to vector<32x1xf32>
    %cst_6 = arith.constant 6.400000e+01 : f32
    %6 = vector.broadcast %cst_6 : f32 to vector<32x1xf32>
    %7 = arith.divf %5, %6 : vector<32x1xf32>
    %8 = vector.broadcast %7 : vector<32x1xf32> to vector<32x64xf32>
    %9 = arith.subf %1, %8 : vector<32x64xf32>
    %10 = arith.mulf %9, %9 : vector<32x64xf32>
    %cst_7 = arith.constant dense<0.000000e+00> : vector<32xf32>
    %11 = vector.multi_reduction <add>, %10, %cst_7 [1] : vector<32x64xf32> to vector<32xf32>
    %12 = vector.shape_cast %11 : vector<32xf32> to vector<32x1xf32>
    %cst_8 = arith.constant 6.400000e+01 : f32
    %13 = vector.broadcast %cst_8 : f32 to vector<32x1xf32>
    %14 = arith.divf %12, %13 : vector<32x1xf32>
    %cst_9 = arith.constant 9.99999997E-7 : f32
    %15 = vector.broadcast %cst_9 : f32 to vector<32x1xf32>
    %16 = arith.addf %14, %15 : vector<32x1xf32>
    %17 = math.rsqrt %16 : vector<32x1xf32>
    %18 = vector.broadcast %17 : vector<32x1xf32> to vector<32x64xf32>
    %19 = arith.mulf %9, %18 : vector<32x64xf32>
    %20 = vector.broadcast %2 : vector<1x64xf32> to vector<32x64xf32>
    %21 = arith.mulf %19, %20 : vector<32x64xf32>
    %22 = vector.broadcast %3 : vector<1x64xf32> to vector<32x64xf32>
    %23 = arith.addf %21, %22 : vector<32x64xf32>
    %24 = arith.truncf %23 : vector<32x64xf32> to vector<32x64xbf16>
    %cst_10 = arith.constant 0.000000e+00 : f32
    %25 = vector.broadcast %cst_10 : f32 to vector<32x64xf32>
    %c0_11 = arith.constant 0 : index
    %c0_12 = arith.constant 0 : index
    %c0_13 = arith.constant 0 : index
    %26 = vector.load %arg4[%c0_11, %c0_12, %c0_13] : memref<4x64x16xbf16, #tpu.memory_space<vmem>>, vector<1x64x16xbf16>
    %27 = vector.shape_cast %26 : vector<1x64x16xbf16> to vector<64x16xbf16>
    %cst_14 = arith.constant dense<0.000000e+00> : vector<32x16xf32>
    %28 = tpu.matmul %24, %27, %cst_14 {dimension_numbers = #tpu.dot_dimension_numbers<[1], [0], [0], [1], [0, 0, 1, 1], [], []>} : vector<32x64xbf16>, vector<64x16xbf16>, vector<32x16xf32> -> vector<32x16xf32>
    %c0_15 = arith.constant 0 : index
    %c0_16 = arith.constant 0 : index
    %c0_17 = arith.constant 0 : index
    %29 = vector.load %arg5[%c0_15, %c0_16, %c0_17] : memref<4x64x16xbf16, #tpu.memory_space<vmem>>, vector<1x64x16xbf16>
    %30 = vector.shape_cast %29 : vector<1x64x16xbf16> to vector<64x16xbf16>
    %cst_18 = arith.constant dense<0.000000e+00> : vector<32x16xf32>
    %31 = tpu.matmul %24, %30, %cst_18 {dimension_numbers = #tpu.dot_dimension_numbers<[1], [0], [0], [1], [0, 0, 1, 1], [], []>} : vector<32x64xbf16>, vector<64x16xbf16>, vector<32x16xf32> -> vector<32x16xf32>
    %c0_19 = arith.constant 0 : index
    %c0_20 = arith.constant 0 : index
    %c0_21 = arith.constant 0 : index
    %32 = vector.load %arg6[%c0_19, %c0_20, %c0_21] : memref<4x64x16xbf16, #tpu.memory_space<vmem>>, vector<1x64x16xbf16>
    %33 = vector.shape_cast %32 : vector<1x64x16xbf16> to vector<64x16xbf16>
    %cst_22 = arith.constant dense<0.000000e+00> : vector<32x16xf32>
    %34 = tpu.matmul %24, %33, %cst_22 {dimension_numbers = #tpu.dot_dimension_numbers<[1], [0], [0], [1], [0, 0, 1, 1], [], []>} : vector<32x64xbf16>, vector<64x16xbf16>, vector<32x16xf32> -> vector<32x16xf32>
    %35 = arith.truncf %28 : vector<32x16xf32> to vector<32x16xbf16>
    %36 = arith.truncf %31 : vector<32x16xf32> to vector<32x16xbf16>
    %cst_23 = arith.constant dense<0.000000e+00> : vector<32x32xf32>
    %37 = tpu.matmul %35, %36, %cst_23 {dimension_numbers = #tpu.dot_dimension_numbers<[1], [1], [0], [0], [0, 0, 1, 0], [], []>} : vector<32x16xbf16>, vector<32x16xbf16>, vector<32x32xf32> -> vector<32x32xf32>
    %cst_24 = arith.constant 2.500000e-01 : f32
    %38 = vector.broadcast %cst_24 : f32 to vector<32x32xf32>
    %39 = arith.mulf %37, %38 : vector<32x32xf32>
    %cst_25 = arith.constant dense<0xFF800000> : vector<32xf32>
    %40 = vector.multi_reduction <maximumf>, %39, %cst_25 [1] : vector<32x32xf32> to vector<32xf32>
    %41 = vector.shape_cast %40 : vector<32xf32> to vector<32x1xf32>
    %42 = vector.broadcast %41 : vector<32x1xf32> to vector<32x32xf32>
    %43 = arith.subf %39, %42 : vector<32x32xf32>
    %44 = math.exp %43 : vector<32x32xf32>
    %cst_26 = arith.constant dense<0.000000e+00> : vector<32xf32>
    %45 = vector.multi_reduction <add>, %44, %cst_26 [1] : vector<32x32xf32> to vector<32xf32>
    %46 = vector.shape_cast %45 : vector<32xf32> to vector<32x1xf32>
    %47 = vector.broadcast %46 : vector<32x1xf32> to vector<32x32xf32>
    %48 = arith.divf %44, %47 : vector<32x32xf32>
    %49 = arith.truncf %48 : vector<32x32xf32> to vector<32x32xbf16>
    %50 = arith.truncf %34 : vector<32x16xf32> to vector<32x16xbf16>
    %cst_27 = arith.constant dense<0.000000e+00> : vector<32x16xf32>
    %51 = tpu.matmul %49, %50, %cst_27 {dimension_numbers = #tpu.dot_dimension_numbers<[1], [0], [0], [1], [0, 0, 1, 1], [], []>} : vector<32x32xbf16>, vector<32x16xbf16>, vector<32x16xf32> -> vector<32x16xf32>
    %52 = arith.truncf %51 : vector<32x16xf32> to vector<32x16xbf16>
    %c0_28 = arith.constant 0 : index
    %c0_29 = arith.constant 0 : index
    %c0_30 = arith.constant 0 : index
    %53 = vector.load %arg7[%c0_28, %c0_29, %c0_30] : memref<4x16x64xbf16, #tpu.memory_space<vmem>>, vector<1x16x64xbf16>
    %54 = vector.shape_cast %53 : vector<1x16x64xbf16> to vector<16x64xbf16>
    %cst_31 = arith.constant dense<0.000000e+00> : vector<32x64xf32>
    %55 = tpu.matmul %52, %54, %cst_31 {dimension_numbers = #tpu.dot_dimension_numbers<[1], [0], [0], [1], [0, 0, 1, 1], [], []>} : vector<32x16xbf16>, vector<16x64xbf16>, vector<32x64xf32> -> vector<32x64xf32>
    %56 = arith.addf %25, %55 : vector<32x64xf32>
    %c1 = arith.constant 1 : index
    %c0_32 = arith.constant 0 : index
    %c0_33 = arith.constant 0 : index
    %57 = vector.load %arg4[%c1, %c0_32, %c0_33] : memref<4x64x16xbf16, #tpu.memory_space<vmem>>, vector<1x64x16xbf16>
    %58 = vector.shape_cast %57 : vector<1x64x16xbf16> to vector<64x16xbf16>
    %cst_34 = arith.constant dense<0.000000e+00> : vector<32x16xf32>
    %59 = tpu.matmul %24, %58, %cst_34 {dimension_numbers = #tpu.dot_dimension_numbers<[1], [0], [0], [1], [0, 0, 1, 1], [], []>} : vector<32x64xbf16>, vector<64x16xbf16>, vector<32x16xf32> -> vector<32x16xf32>
    %c1_35 = arith.constant 1 : index
    %c0_36 = arith.constant 0 : index
    %c0_37 = arith.constant 0 : index
    %60 = vector.load %arg5[%c1_35, %c0_36, %c0_37] : memref<4x64x16xbf16, #tpu.memory_space<vmem>>, vector<1x64x16xbf16>
    %61 = vector.shape_cast %60 : vector<1x64x16xbf16> to vector<64x16xbf16>
    %cst_38 = arith.constant dense<0.000000e+00> : vector<32x16xf32>
    %62 = tpu.matmul %24, %61, %cst_38 {dimension_numbers = #tpu.dot_dimension_numbers<[1], [0], [0], [1], [0, 0, 1, 1], [], []>} : vector<32x64xbf16>, vector<64x16xbf16>, vector<32x16xf32> -> vector<32x16xf32>
    %c1_39 = arith.constant 1 : index
    %c0_40 = arith.constant 0 : index
    %c0_41 = arith.constant 0 : index
    %63 = vector.load %arg6[%c1_39, %c0_40, %c0_41] : memref<4x64x16xbf16, #tpu.memory_space<vmem>>, vector<1x64x16xbf16>
    %64 = vector.shape_cast %63 : vector<1x64x16xbf16> to vector<64x16xbf16>
    %cst_42 = arith.constant dense<0.000000e+00> : vector<32x16xf32>
    %65 = tpu.matmul %24, %64, %cst_42 {dimension_numbers = #tpu.dot_dimension_numbers<[1], [0], [0], [1], [0, 0, 1, 1], [], []>} : vector<32x64xbf16>, vector<64x16xbf16>, vector<32x16xf32> -> vector<32x16xf32>
    %66 = arith.truncf %59 : vector<32x16xf32> to vector<32x16xbf16>
    %67 = arith.truncf %62 : vector<32x16xf32> to vector<32x16xbf16>
    %cst_43 = arith.constant dense<0.000000e+00> : vector<32x32xf32>
    %68 = tpu.matmul %66, %67, %cst_43 {dimension_numbers = #tpu.dot_dimension_numbers<[1], [1], [0], [0], [0, 0, 1, 0], [], []>} : vector<32x16xbf16>, vector<32x16xbf16>, vector<32x32xf32> -> vector<32x32xf32>
    %cst_44 = arith.constant 2.500000e-01 : f32
    %69 = vector.broadcast %cst_44 : f32 to vector<32x32xf32>
    %70 = arith.mulf %68, %69 : vector<32x32xf32>
    %cst_45 = arith.constant dense<0xFF800000> : vector<32xf32>
    %71 = vector.multi_reduction <maximumf>, %70, %cst_45 [1] : vector<32x32xf32> to vector<32xf32>
    %72 = vector.shape_cast %71 : vector<32xf32> to vector<32x1xf32>
    %73 = vector.broadcast %72 : vector<32x1xf32> to vector<32x32xf32>
    %74 = arith.subf %70, %73 : vector<32x32xf32>
    %75 = math.exp %74 : vector<32x32xf32>
    %cst_46 = arith.constant dense<0.000000e+00> : vector<32xf32>
    %76 = vector.multi_reduction <add>, %75, %cst_46 [1] : vector<32x32xf32> to vector<32xf32>
    %77 = vector.shape_cast %76 : vector<32xf32> to vector<32x1xf32>
    %78 = vector.broadcast %77 : vector<32x1xf32> to vector<32x32xf32>
    %79 = arith.divf %75, %78 : vector<32x32xf32>
    %80 = arith.truncf %79 : vector<32x32xf32> to vector<32x32xbf16>
    %81 = arith.truncf %65 : vector<32x16xf32> to vector<32x16xbf16>
    %cst_47 = arith.constant dense<0.000000e+00> : vector<32x16xf32>
    %82 = tpu.matmul %80, %81, %cst_47 {dimension_numbers = #tpu.dot_dimension_numbers<[1], [0], [0], [1], [0, 0, 1, 1], [], []>} : vector<32x32xbf16>, vector<32x16xbf16>, vector<32x16xf32> -> vector<32x16xf32>
    %83 = arith.truncf %82 : vector<32x16xf32> to vector<32x16xbf16>
    %c1_48 = arith.constant 1 : index
    %c0_49 = arith.constant 0 : index
    %c0_50 = arith.constant 0 : index
    %84 = vector.load %arg7[%c1_48, %c0_49, %c0_50] : memref<4x16x64xbf16, #tpu.memory_space<vmem>>, vector<1x16x64xbf16>
    %85 = vector.shape_cast %84 : vector<1x16x64xbf16> to vector<16x64xbf16>
    %cst_51 = arith.constant dense<0.000000e+00> : vector<32x64xf32>
    %86 = tpu.matmul %83, %85, %cst_51 {dimension_numbers = #tpu.dot_dimension_numbers<[1], [0], [0], [1], [0, 0, 1, 1], [], []>} : vector<32x16xbf16>, vector<16x64xbf16>, vector<32x64xf32> -> vector<32x64xf32>
    %87 = arith.addf %56, %86 : vector<32x64xf32>
    %c2 = arith.constant 2 : index
    %c0_52 = arith.constant 0 : index
    %c0_53 = arith.constant 0 : index
    %88 = vector.load %arg4[%c2, %c0_52, %c0_53] : memref<4x64x16xbf16, #tpu.memory_space<vmem>>, vector<1x64x16xbf16>
    %89 = vector.shape_cast %88 : vector<1x64x16xbf16> to vector<64x16xbf16>
    %cst_54 = arith.constant dense<0.000000e+00> : vector<32x16xf32>
    %90 = tpu.matmul %24, %89, %cst_54 {dimension_numbers = #tpu.dot_dimension_numbers<[1], [0], [0], [1], [0, 0, 1, 1], [], []>} : vector<32x64xbf16>, vector<64x16xbf16>, vector<32x16xf32> -> vector<32x16xf32>
    %c2_55 = arith.constant 2 : index
    %c0_56 = arith.constant 0 : index
    %c0_57 = arith.constant 0 : index
    %91 = vector.load %arg5[%c2_55, %c0_56, %c0_57] : memref<4x64x16xbf16, #tpu.memory_space<vmem>>, vector<1x64x16xbf16>
    %92 = vector.shape_cast %91 : vector<1x64x16xbf16> to vector<64x16xbf16>
    %cst_58 = arith.constant dense<0.000000e+00> : vector<32x16xf32>
    %93 = tpu.matmul %24, %92, %cst_58 {dimension_numbers = #tpu.dot_dimension_numbers<[1], [0], [0], [1], [0, 0, 1, 1], [], []>} : vector<32x64xbf16>, vector<64x16xbf16>, vector<32x16xf32> -> vector<32x16xf32>
    %c2_59 = arith.constant 2 : index
    %c0_60 = arith.constant 0 : index
    %c0_61 = arith.constant 0 : index
    %94 = vector.load %arg6[%c2_59, %c0_60, %c0_61] : memref<4x64x16xbf16, #tpu.memory_space<vmem>>, vector<1x64x16xbf16>
    %95 = vector.shape_cast %94 : vector<1x64x16xbf16> to vector<64x16xbf16>
    %cst_62 = arith.constant dense<0.000000e+00> : vector<32x16xf32>
    %96 = tpu.matmul %24, %95, %cst_62 {dimension_numbers = #tpu.dot_dimension_numbers<[1], [0], [0], [1], [0, 0, 1, 1], [], []>} : vector<32x64xbf16>, vector<64x16xbf16>, vector<32x16xf32> -> vector<32x16xf32>
    %97 = arith.truncf %90 : vector<32x16xf32> to vector<32x16xbf16>
    %98 = arith.truncf %93 : vector<32x16xf32> to vector<32x16xbf16>
    %cst_63 = arith.constant dense<0.000000e+00> : vector<32x32xf32>
    %99 = tpu.matmul %97, %98, %cst_63 {dimension_numbers = #tpu.dot_dimension_numbers<[1], [1], [0], [0], [0, 0, 1, 0], [], []>} : vector<32x16xbf16>, vector<32x16xbf16>, vector<32x32xf32> -> vector<32x32xf32>
    %cst_64 = arith.constant 2.500000e-01 : f32
    %100 = vector.broadcast %cst_64 : f32 to vector<32x32xf32>
    %101 = arith.mulf %99, %100 : vector<32x32xf32>
    %cst_65 = arith.constant dense<0xFF800000> : vector<32xf32>
    %102 = vector.multi_reduction <maximumf>, %101, %cst_65 [1] : vector<32x32xf32> to vector<32xf32>
    %103 = vector.shape_cast %102 : vector<32xf32> to vector<32x1xf32>
    %104 = vector.broadcast %103 : vector<32x1xf32> to vector<32x32xf32>
    %105 = arith.subf %101, %104 : vector<32x32xf32>
    %106 = math.exp %105 : vector<32x32xf32>
    %cst_66 = arith.constant dense<0.000000e+00> : vector<32xf32>
    %107 = vector.multi_reduction <add>, %106, %cst_66 [1] : vector<32x32xf32> to vector<32xf32>
    %108 = vector.shape_cast %107 : vector<32xf32> to vector<32x1xf32>
    %109 = vector.broadcast %108 : vector<32x1xf32> to vector<32x32xf32>
    %110 = arith.divf %106, %109 : vector<32x32xf32>
    %111 = arith.truncf %110 : vector<32x32xf32> to vector<32x32xbf16>
    %112 = arith.truncf %96 : vector<32x16xf32> to vector<32x16xbf16>
    %cst_67 = arith.constant dense<0.000000e+00> : vector<32x16xf32>
    %113 = tpu.matmul %111, %112, %cst_67 {dimension_numbers = #tpu.dot_dimension_numbers<[1], [0], [0], [1], [0, 0, 1, 1], [], []>} : vector<32x32xbf16>, vector<32x16xbf16>, vector<32x16xf32> -> vector<32x16xf32>
    %114 = arith.truncf %113 : vector<32x16xf32> to vector<32x16xbf16>
    %c2_68 = arith.constant 2 : index
    %c0_69 = arith.constant 0 : index
    %c0_70 = arith.constant 0 : index
    %115 = vector.load %arg7[%c2_68, %c0_69, %c0_70] : memref<4x16x64xbf16, #tpu.memory_space<vmem>>, vector<1x16x64xbf16>
    %116 = vector.shape_cast %115 : vector<1x16x64xbf16> to vector<16x64xbf16>
    %cst_71 = arith.constant dense<0.000000e+00> : vector<32x64xf32>
    %117 = tpu.matmul %114, %116, %cst_71 {dimension_numbers = #tpu.dot_dimension_numbers<[1], [0], [0], [1], [0, 0, 1, 1], [], []>} : vector<32x16xbf16>, vector<16x64xbf16>, vector<32x64xf32> -> vector<32x64xf32>
    %118 = arith.addf %87, %117 : vector<32x64xf32>
    %c3 = arith.constant 3 : index
    %c0_72 = arith.constant 0 : index
    %c0_73 = arith.constant 0 : index
    %119 = vector.load %arg4[%c3, %c0_72, %c0_73] : memref<4x64x16xbf16, #tpu.memory_space<vmem>>, vector<1x64x16xbf16>
    %120 = vector.shape_cast %119 : vector<1x64x16xbf16> to vector<64x16xbf16>
    %cst_74 = arith.constant dense<0.000000e+00> : vector<32x16xf32>
    %121 = tpu.matmul %24, %120, %cst_74 {dimension_numbers = #tpu.dot_dimension_numbers<[1], [0], [0], [1], [0, 0, 1, 1], [], []>} : vector<32x64xbf16>, vector<64x16xbf16>, vector<32x16xf32> -> vector<32x16xf32>
    %c3_75 = arith.constant 3 : index
    %c0_76 = arith.constant 0 : index
    %c0_77 = arith.constant 0 : index
    %122 = vector.load %arg5[%c3_75, %c0_76, %c0_77] : memref<4x64x16xbf16, #tpu.memory_space<vmem>>, vector<1x64x16xbf16>
    %123 = vector.shape_cast %122 : vector<1x64x16xbf16> to vector<64x16xbf16>
    %cst_78 = arith.constant dense<0.000000e+00> : vector<32x16xf32>
    %124 = tpu.matmul %24, %123, %cst_78 {dimension_numbers = #tpu.dot_dimension_numbers<[1], [0], [0], [1], [0, 0, 1, 1], [], []>} : vector<32x64xbf16>, vector<64x16xbf16>, vector<32x16xf32> -> vector<32x16xf32>
    %c3_79 = arith.constant 3 : index
    %c0_80 = arith.constant 0 : index
    %c0_81 = arith.constant 0 : index
    %125 = vector.load %arg6[%c3_79, %c0_80, %c0_81] : memref<4x64x16xbf16, #tpu.memory_space<vmem>>, vector<1x64x16xbf16>
    %126 = vector.shape_cast %125 : vector<1x64x16xbf16> to vector<64x16xbf16>
    %cst_82 = arith.constant dense<0.000000e+00> : vector<32x16xf32>
    %127 = tpu.matmul %24, %126, %cst_82 {dimension_numbers = #tpu.dot_dimension_numbers<[1], [0], [0], [1], [0, 0, 1, 1], [], []>} : vector<32x64xbf16>, vector<64x16xbf16>, vector<32x16xf32> -> vector<32x16xf32>
    %128 = arith.truncf %121 : vector<32x16xf32> to vector<32x16xbf16>
    %129 = arith.truncf %124 : vector<32x16xf32> to vector<32x16xbf16>
    %cst_83 = arith.constant dense<0.000000e+00> : vector<32x32xf32>
    %130 = tpu.matmul %128, %129, %cst_83 {dimension_numbers = #tpu.dot_dimension_numbers<[1], [1], [0], [0], [0, 0, 1, 0], [], []>} : vector<32x16xbf16>, vector<32x16xbf16>, vector<32x32xf32> -> vector<32x32xf32>
    %cst_84 = arith.constant 2.500000e-01 : f32
    %131 = vector.broadcast %cst_84 : f32 to vector<32x32xf32>
    %132 = arith.mulf %130, %131 : vector<32x32xf32>
    %cst_85 = arith.constant dense<0xFF800000> : vector<32xf32>
    %133 = vector.multi_reduction <maximumf>, %132, %cst_85 [1] : vector<32x32xf32> to vector<32xf32>
    %134 = vector.shape_cast %133 : vector<32xf32> to vector<32x1xf32>
    %135 = vector.broadcast %134 : vector<32x1xf32> to vector<32x32xf32>
    %136 = arith.subf %132, %135 : vector<32x32xf32>
    %137 = math.exp %136 : vector<32x32xf32>
    %cst_86 = arith.constant dense<0.000000e+00> : vector<32xf32>
    %138 = vector.multi_reduction <add>, %137, %cst_86 [1] : vector<32x32xf32> to vector<32xf32>
    %139 = vector.shape_cast %138 : vector<32xf32> to vector<32x1xf32>
    %140 = vector.broadcast %139 : vector<32x1xf32> to vector<32x32xf32>
    %141 = arith.divf %137, %140 : vector<32x32xf32>
    %142 = arith.truncf %141 : vector<32x32xf32> to vector<32x32xbf16>
    %143 = arith.truncf %127 : vector<32x16xf32> to vector<32x16xbf16>
    %cst_87 = arith.constant dense<0.000000e+00> : vector<32x16xf32>
    %144 = tpu.matmul %142, %143, %cst_87 {dimension_numbers = #tpu.dot_dimension_numbers<[1], [0], [0], [1], [0, 0, 1, 1], [], []>} : vector<32x32xbf16>, vector<32x16xbf16>, vector<32x16xf32> -> vector<32x16xf32>
    %145 = arith.truncf %144 : vector<32x16xf32> to vector<32x16xbf16>
    %c3_88 = arith.constant 3 : index
    %c0_89 = arith.constant 0 : index
    %c0_90 = arith.constant 0 : index
    %146 = vector.load %arg7[%c3_88, %c0_89, %c0_90] : memref<4x16x64xbf16, #tpu.memory_space<vmem>>, vector<1x16x64xbf16>
    %147 = vector.shape_cast %146 : vector<1x16x64xbf16> to vector<16x64xbf16>
    %cst_91 = arith.constant dense<0.000000e+00> : vector<32x64xf32>
    %148 = tpu.matmul %145, %147, %cst_91 {dimension_numbers = #tpu.dot_dimension_numbers<[1], [0], [0], [1], [0, 0, 1, 1], [], []>} : vector<32x16xbf16>, vector<16x64xbf16>, vector<32x64xf32> -> vector<32x64xf32>
    %149 = arith.addf %118, %148 : vector<32x64xf32>
    %150 = arith.addf %1, %149 : vector<32x64xf32>
    %c0_92 = arith.constant 0 : index
    %c0_93 = arith.constant 0 : index
    %151 = vector.load %arg8[%c0_92, %c0_93] : memref<1x64xf32, #tpu.memory_space<vmem>>, vector<1x64xf32>
    %152 = vector.broadcast %151 : vector<1x64xf32> to vector<32x64xf32>
    %153 = arith.addf %150, %152 : vector<32x64xf32>
    %c0_94 = arith.constant 0 : index
    %c0_95 = arith.constant 0 : index
    %154 = vector.load %arg9[%c0_94, %c0_95] : memref<1x64xf32, #tpu.memory_space<vmem>>, vector<1x64xf32>
    %c0_96 = arith.constant 0 : index
    %c0_97 = arith.constant 0 : index
    %155 = vector.load %arg10[%c0_96, %c0_97] : memref<1x64xf32, #tpu.memory_space<vmem>>, vector<1x64xf32>
    %cst_98 = arith.constant dense<0.000000e+00> : vector<32xf32>
    %156 = vector.multi_reduction <add>, %153, %cst_98 [1] : vector<32x64xf32> to vector<32xf32>
    %157 = vector.shape_cast %156 : vector<32xf32> to vector<32x1xf32>
    %cst_99 = arith.constant 6.400000e+01 : f32
    %158 = vector.broadcast %cst_99 : f32 to vector<32x1xf32>
    %159 = arith.divf %157, %158 : vector<32x1xf32>
    %160 = vector.broadcast %159 : vector<32x1xf32> to vector<32x64xf32>
    %161 = arith.subf %153, %160 : vector<32x64xf32>
    %162 = arith.mulf %161, %161 : vector<32x64xf32>
    %cst_100 = arith.constant dense<0.000000e+00> : vector<32xf32>
    %163 = vector.multi_reduction <add>, %162, %cst_100 [1] : vector<32x64xf32> to vector<32xf32>
    %164 = vector.shape_cast %163 : vector<32xf32> to vector<32x1xf32>
    %cst_101 = arith.constant 6.400000e+01 : f32
    %165 = vector.broadcast %cst_101 : f32 to vector<32x1xf32>
    %166 = arith.divf %164, %165 : vector<32x1xf32>
    %cst_102 = arith.constant 9.99999997E-7 : f32
    %167 = vector.broadcast %cst_102 : f32 to vector<32x1xf32>
    %168 = arith.addf %166, %167 : vector<32x1xf32>
    %169 = math.rsqrt %168 : vector<32x1xf32>
    %170 = vector.broadcast %169 : vector<32x1xf32> to vector<32x64xf32>
    %171 = arith.mulf %161, %170 : vector<32x64xf32>
    %172 = vector.broadcast %154 : vector<1x64xf32> to vector<32x64xf32>
    %173 = arith.mulf %171, %172 : vector<32x64xf32>
    %174 = vector.broadcast %155 : vector<1x64xf32> to vector<32x64xf32>
    %175 = arith.addf %173, %174 : vector<32x64xf32>
    %176 = arith.truncf %175 : vector<32x64xf32> to vector<32x64xbf16>
    %c0_103 = arith.constant 0 : index
    %c0_104 = arith.constant 0 : index
    %177 = vector.load %arg11[%c0_103, %c0_104] : memref<64x256xbf16, #tpu.memory_space<vmem>>, vector<64x256xbf16>
    %cst_105 = arith.constant dense<0.000000e+00> : vector<32x256xf32>
    %178 = tpu.matmul %176, %177, %cst_105 {dimension_numbers = #tpu.dot_dimension_numbers<[1], [0], [0], [1], [0, 0, 1, 1], [], []>} : vector<32x64xbf16>, vector<64x256xbf16>, vector<32x256xf32> -> vector<32x256xf32>
    %c0_106 = arith.constant 0 : index
    %c0_107 = arith.constant 0 : index
    %179 = vector.load %arg12[%c0_106, %c0_107] : memref<1x256xf32, #tpu.memory_space<vmem>>, vector<1x256xf32>
    %180 = vector.broadcast %179 : vector<1x256xf32> to vector<32x256xf32>
    %181 = arith.addf %178, %180 : vector<32x256xf32>
    %cst_108 = arith.constant 5.000000e-01 : f32
    %182 = vector.broadcast %cst_108 : f32 to vector<32x256xf32>
    %183 = arith.mulf %182, %181 : vector<32x256xf32>
    %cst_109 = arith.constant 0.707106769 : f32
    %184 = vector.broadcast %cst_109 : f32 to vector<32x256xf32>
    %185 = arith.mulf %181, %184 : vector<32x256xf32>
    %186 = math.erf %185 : vector<32x256xf32>
    %cst_110 = arith.constant 1.000000e+00 : f32
    %187 = vector.broadcast %cst_110 : f32 to vector<32x256xf32>
    %188 = arith.addf %187, %186 : vector<32x256xf32>
    %189 = arith.mulf %183, %188 : vector<32x256xf32>
    %190 = arith.truncf %189 : vector<32x256xf32> to vector<32x256xbf16>
    %c0_111 = arith.constant 0 : index
    %c0_112 = arith.constant 0 : index
    %191 = vector.load %arg13[%c0_111, %c0_112] : memref<256x64xbf16, #tpu.memory_space<vmem>>, vector<256x64xbf16>
    %cst_113 = arith.constant dense<0.000000e+00> : vector<32x64xf32>
    %192 = tpu.matmul %190, %191, %cst_113 {dimension_numbers = #tpu.dot_dimension_numbers<[1], [0], [0], [1], [0, 0, 1, 1], [], []>} : vector<32x256xbf16>, vector<256x64xbf16>, vector<32x64xf32> -> vector<32x64xf32>
    %193 = arith.addf %153, %192 : vector<32x64xf32>
    %c0_114 = arith.constant 0 : index
    %c0_115 = arith.constant 0 : index
    %194 = vector.load %arg14[%c0_114, %c0_115] : memref<1x64xf32, #tpu.memory_space<vmem>>, vector<1x64xf32>
    %195 = vector.broadcast %194 : vector<1x64xf32> to vector<32x64xf32>
    %196 = arith.addf %193, %195 : vector<32x64xf32>
    %c0_116 = arith.constant 0 : index
    %c0_117 = arith.constant 0 : index
    %c0_118 = arith.constant 0 : index
    %197 = vector.load %arg15[%c0_116, %c0_117, %c0_118] : memref<1x32x64xf32, #tpu.memory_space<vmem>>, vector<1x32x64xf32>
    %198 = vector.shape_cast %197 : vector<1x32x64xf32> to vector<32x64xf32>
    %199 = vector.shape_cast %196 : vector<32x64xf32> to vector<1x32x64xf32>
    tpu.vector_store %arg15[%c0_116, %c0_117, %c0_118], %199 {strides = array<i32>} : memref<1x32x64xf32, #tpu.memory_space<vmem>>, vector<1x32x64xf32>,
    return
  }
  func.func @transform_0(%arg0: i32) -> (i32, i32, i32) {
    %c0_i32 = arith.constant 0 : i32
    %c0_i32_0 = arith.constant 0 : i32
    %c0_i32_1 = arith.constant 0 : i32
    return %arg0, %c0_i32, %c0_i32_0 : i32, i32, i32
  }
  func.func @transform_1(%arg0: i32) -> (i32, i32) {
    %c0_i32 = arith.constant 0 : i32
    %c0_i32_0 = arith.constant 0 : i32
    %c0_i32_1 = arith.constant 0 : i32
    return %c0_i32, %c0_i32_0 : i32, i32
  }
  func.func @transform_2(%arg0: i32) -> (i32, i32) {
    %c0_i32 = arith.constant 0 : i32
    %c0_i32_0 = arith.constant 0 : i32
    %c0_i32_1 = arith.constant 0 : i32
    return %c0_i32, %c0_i32_0 : i32, i32
  }
  func.func @transform_3(%arg0: i32) -> (i32, i32, i32) {
    %c0_i32 = arith.constant 0 : i32
    %c0_i32_0 = arith.constant 0 : i32
    %c0_i32_1 = arith.constant 0 : i32
    %c0_i32_2 = arith.constant 0 : i32
    return %c0_i32, %c0_i32_0, %c0_i32_1 : i32, i32, i32
  }
  func.func @transform_4(%arg0: i32) -> (i32, i32, i32) {
    %c0_i32 = arith.constant 0 : i32
    %c0_i32_0 = arith.constant 0 : i32
    %c0_i32_1 = arith.constant 0 : i32
    %c0_i32_2 = arith.constant 0 : i32
    return %c0_i32, %c0_i32_0, %c0_i32_1 : i32, i32, i32
  }
  func.func @transform_5(%arg0: i32) -> (i32, i32, i32) {
    %c0_i32 = arith.constant 0 : i32
    %c0_i32_0 = arith.constant 0 : i32
    %c0_i32_1 = arith.constant 0 : i32
    %c0_i32_2 = arith.constant 0 : i32
    return %c0_i32, %c0_i32_0, %c0_i32_1 : i32, i32, i32
  }
  func.func @transform_6(%arg0: i32) -> (i32, i32, i32) {
    %c0_i32 = arith.constant 0 : i32
    %c0_i32_0 = arith.constant 0 : i32
    %c0_i32_1 = arith.constant 0 : i32
    %c0_i32_2 = arith.constant 0 : i32
    return %c0_i32, %c0_i32_0, %c0_i32_1 : i32, i32, i32
  }
  func.func @transform_7(%arg0: i32) -> (i32, i32) {
    %c0_i32 = arith.constant 0 : i32
    %c0_i32_0 = arith.constant 0 : i32
    %c0_i32_1 = arith.constant 0 : i32
    return %c0_i32, %c0_i32_0 : i32, i32
  }
  func.func @transform_8(%arg0: i32) -> (i32, i32) {
    %c0_i32 = arith.constant 0 : i32
    %c0_i32_0 = arith.constant 0 : i32
    %c0_i32_1 = arith.constant 0 : i32
    return %c0_i32, %c0_i32_0 : i32, i32
  }
  func.func @transform_9(%arg0: i32) -> (i32, i32) {
    %c0_i32 = arith.constant 0 : i32
    %c0_i32_0 = arith.constant 0 : i32
    %c0_i32_1 = arith.constant 0 : i32
    return %c0_i32, %c0_i32_0 : i32, i32
  }
  func.func @transform_10(%arg0: i32) -> (i32, i32) {
    %c0_i32 = arith.constant 0 : i32
    %c0_i32_0 = arith.constant 0 : i32
    %c0_i32_1 = arith.constant 0 : i32
    return %c0_i32, %c0_i32_0 : i32, i32
  }
  func.func @transform_11(%arg0: i32) -> (i32, i32) {
    %c0_i32 = arith.constant 0 : i32
    %c0_i32_0 = arith.constant 0 : i32
    %c0_i32_1 = arith.constant 0 : i32
    return %c0_i32, %c0_i32_0 : i32, i32
  }
  func.func @transform_12(%arg0: i32) -> (i32, i32) {
    %c0_i32 = arith.constant 0 : i32
    %c0_i32_0 = arith.constant 0 : i32
    %c0_i32_1 = arith.constant 0 : i32
    return %c0_i32, %c0_i32_0 : i32, i32
  }
  func.func @transform_13(%arg0: i32) -> (i32, i32) {
    %c0_i32 = arith.constant 0 : i32
    %c0_i32_0 = arith.constant 0 : i32
    %c0_i32_1 = arith.constant 0 : i32
    return %c0_i32, %c0_i32_0 : i32, i32
  }
  func.func @transform_14(%arg0: i32) -> (i32, i32, i32) {
    %c0_i32 = arith.constant 0 : i32
    %c0_i32_0 = arith.constant 0 : i32
    %c0_i32_1 = arith.constant 0 : i32
    return %arg0, %c0_i32, %c0_i32_0 : i32, i32, i32
  }
}

</mosaic_0001>

<llo_original>
// kernel: block_forward.1
$region0: #{block_forward.1}
  #allocation0 [shape = 'u32[]', space=smem, size = 0x4, offset = 0x4, fixed_abs, tag = 'smem constant byte address 0x4 - core index']
  #allocation1 [shape = 'u32[144,128]{1,0:T(1,128)}', space=vmem, size = 0x12000, scoped, tag = 'internal scratch']
  %s0 = inlined_call_operand.vmem [shape: f32[2,32,64], index: 0, kind: input, shape index: {}]
  %s1 = inlined_call_operand.vmem [shape: f32[1,64], index: 1, kind: input, shape index: {}]
  %s2 = inlined_call_operand.vmem [shape: f32[1,64], index: 2, kind: input, shape index: {}]
  %s3 = inlined_call_operand.vmem [shape: bf16[4,64,16], index: 3, kind: input, shape index: {}]
  %s4 = inlined_call_operand.vmem [shape: bf16[4,64,16], index: 4, kind: input, shape index: {}]
  %s5 = inlined_call_operand.vmem [shape: bf16[4,64,16], index: 5, kind: input, shape index: {}]
  %s6 = inlined_call_operand.vmem [shape: bf16[4,16,64], index: 6, kind: input, shape index: {}]
  %s7 = inlined_call_operand.vmem [shape: f32[1,64], index: 7, kind: input, shape index: {}]
  %s8 = inlined_call_operand.vmem [shape: f32[1,64], index: 8, kind: input, shape index: {}]
  %s9 = inlined_call_operand.vmem [shape: f32[1,64], index: 9, kind: input, shape index: {}]
  %s10 = inlined_call_operand.vmem [shape: bf16[64,256], index: 10, kind: input, shape index: {}]
  %s11 = inlined_call_operand.vmem [shape: f32[1,256], index: 11, kind: input, shape index: {}]
  %s12 = inlined_call_operand.vmem [shape: bf16[256,64], index: 12, kind: input, shape index: {}]
  %s13 = inlined_call_operand.vmem [shape: f32[1,64], index: 13, kind: input, shape index: {}]
  %s14 = inlined_call_operand.hbm [shape: f32[2,32,64], index: 14, kind: output, shape index: {}]
  %s15 = sld [smem:[#allocation0]]
  $region89: #{block_forward.1} parent=0
    _
  %s17 = ssub.s32 1, %s15
  %s18 = scalar_select 0, %s17, %s15
  $region1: #{block_forward.1} parent=0
    #allocation2 [shape = 'u8[32768]{0}', space=vmem, size = 0x8000, scoped, tag = 'output window, operand 0']
    #allocation3 [shape = 's32[2]{0}', space=sflag, size = 0x8, scoped, tag = 'scoped memory for block_forward.1']
    %19 = vsyncpa [#allocation3], 0
    %s20 = scalar_lea.sflag [#allocation3], 1
    %21 = vsyncpa %s20, 0
    loop: start=0, step=1, limit=4
    $region2: #{block_forward.1} parent=1 // loop_pre_header
      _
    $region3: #{block_forward.1} parent=1 // loop_header
      %s23 = sphi 0, %s27
      %p24 = scmp.ge.s32.totalorder %s23, 4
      %s33 = sphi 0, %s35
      %s36 = sphi 0, %s33
      %s37 = sphi 0, %s36
      %s53 = sphi 0, %s37
      %s57 = sphi 0, %s57
      %s59 = sphi 0, %s57
      %s60 = sphi 0, %s59
      %s74 = sphi 0, %s60
      %s78 = sphi 0, %s78
      %s80 = sphi 0, %s78
      %s81 = sphi 0, %s80
      %s95 = sphi 0, %s81
      %s99 = sphi 0, %s99
      %s101 = sphi 0, %s99
      %s102 = sphi 0, %s101
      %s116 = sphi 0, %s102
      %s120 = sphi 0, %s120
      %s122 = sphi 0, %s120
      %s123 = sphi 0, %s122
      %s137 = sphi 0, %s123
      %s141 = sphi 0, %s141
      %s143 = sphi 0, %s141
      %s144 = sphi 0, %s143
      %s158 = sphi 0, %s144
      %s162 = sphi 0, %s162
      %s164 = sphi 0, %s162
      %s165 = sphi 0, %s164
      %s179 = sphi 0, %s165
      %s183 = sphi 0, %s183
      %s185 = sphi 0, %s183
      %s186 = sphi 0, %s185
      %s200 = sphi 0, %s186
      %s204 = sphi 0, %s204
      %s206 = sphi 0, %s204
      %s207 = sphi 0, %s206
      %s221 = sphi 0, %s207
      %s225 = sphi 0, %s225
      %s227 = sphi 0, %s225
      %s228 = sphi 0, %s227
      %s242 = sphi 0, %s228
      %s246 = sphi 0, %s246
      %s248 = sphi 0, %s246
      %s249 = sphi 0, %s248
      %s263 = sphi 0, %s249
      %s267 = sphi 0, %s267
      %s269 = sphi 0, %s267
      %s270 = sphi 0, %s269
      %s284 = sphi 0, %s270
      %s288 = sphi 0, %s288
      %s290 = sphi 0, %s288
      %s291 = sphi 0, %s290
      %s305 = sphi 0, %s291
      %s309 = sphi 0, %s309
      %s311 = sphi 0, %s309
      %s312 = sphi 0, %s311
      %s326 = sphi 0, %s312
      %s332 = sphi 0, %s334
      %s335 = sphi 0, %s332
      %s336 = sphi 0, %s335
      %s352 = sphi 0, %s336
    $region4: #{block_forward.1} parent=1 // loop_header_branch
      %26 = sbr.rel (%p24) target = $region8
    $region5: #{block_forward.1} parent=1 // loop_body
      %s28 = ssub.s32 %s23, 1
      %s29 = ssub.s32 %s23, 2
      %s30 = sadd.s32 %s23, 1
      %s31 = ssub.s32 %s23, %s30
      %p32 = scmp.eq.s32.totalorder %s31, 0
      %s34 = sadd.s32 %s33, 1
      %s35 = scalar_select %p32, %s33, %s34
      %p38 = pneg %p32
      %p39 = scmp.eq.s32.totalorder %s23, 1
      %p40 = por %p38, %p39
      %p41 = scmp.ne.s32.totalorder %s33, %s36
      %p42 = scmp.eq.s32.totalorder %s23, 0
      %p43 = por %p41, %p42
      %p44 = scmp.ne.s32.totalorder %s33, %s36
      %p45 = scmp.eq.s32.totalorder %s28, 1
      %p46 = por %p44, %p45
      %p47 = scmp.ne.s32.totalorder %s36, %s37
      %p48 = scmp.eq.s32.totalorder %s28, 0
      %p49 = por %p47, %p48
      %p50 = scmp.ne.s32.totalorder %s36, %s37
      %p51 = scmp.eq.s32.totalorder %s29, 1
      %p52 = por %p50, %p51
      %p54 = scmp.ne.s32.totalorder %s37, %s53
      %p55 = scmp.eq.s32.totalorder %s29, 0
      %p56 = por %p54, %p55
      %s58 = sadd.s32 %s57, 1
      %p61 = scmp.eq.s32.totalorder %s23, 1
      %p62 = scmp.ne.s32.totalorder %s57, %s59
      %p63 = scmp.eq.s32.totalorder %s23, 0
      %p64 = por %p62, %p63
      %p65 = scmp.ne.s32.totalorder %s57, %s59
      %p66 = scmp.eq.s32.totalorder %s28, 1
      %p67 = por %p65, %p66
      %p68 = scmp.ne.s32.totalorder %s59, %s60
      %p69 = scmp.eq.s32.totalorder %s28, 0
      %p70 = por %p68, %p69
      %p71 = scmp.ne.s32.totalorder %s59, %s60
      %p72 = scmp.eq.s32.totalorder %s29, 1
      %p73 = por %p71, %p72
      %p75 = scmp.ne.s32.totalorder %s60, %s74
      %p76 = scmp.eq.s32.totalorder %s29, 0
      %p77 = por %p75, %p76
      %s79 = sadd.s32 %s78, 1
      %p82 = scmp.eq.s32.totalorder %s23, 1
      %p83 = scmp.ne.s32.totalorder %s78, %s80
      %p84 = scmp.eq.s32.totalorder %s23, 0
      %p85 = por %p83, %p84
      %p86 = scmp.ne.s32.totalorder %s78, %s80
      %p87 = scmp.eq.s32.totalorder %s28, 1
      %p88 = por %p86, %p87
      %p89 = scmp.ne.s32.totalorder %s80, %s81
      %p90 = scmp.eq.s32.totalorder %s28, 0
      %p91 = por %p89, %p90
      %p92 = scmp.ne.s32.totalorder %s80, %s81
      %p93 = scmp.eq.s32.totalorder %s29, 1
      %p94 = por %p92, %p93
      %p96 = scmp.ne.s32.totalorder %s81, %s95
      %p97 = scmp.eq.s32.totalorder %s29, 0
      %p98 = por %p96, %p97
      %s100 = sadd.s32 %s99, 1
      %p103 = scmp.eq.s32.totalorder %s23, 1
      %p104 = scmp.ne.s32.totalorder %s99, %s101
      %p105 = scmp.eq.s32.totalorder %s23, 0
      %p106 = por %p104, %p105
      %p107 = scmp.ne.s32.totalorder %s99, %s101
      %p108 = scmp.eq.s32.totalorder %s28, 1
      %p109 = por %p107, %p108
      %p110 = scmp.ne.s32.totalorder %s101, %s102
      %p111 = scmp.eq.s32.totalorder %s28, 0
      %p112 = por %p110, %p111
      %p113 = scmp.ne.s32.totalorder %s101, %s102
      %p114 = scmp.eq.s32.totalorder %s29, 1
      %p115 = por %p113, %p114
      %p117 = scmp.ne.s32.totalorder %s102, %s116
      %p118 = scmp.eq.s32.totalorder %s29, 0
      %p119 = por %p117, %p118
      %s121 = sadd.s32 %s120, 1
      %p124 = scmp.eq.s32.totalorder %s23, 1
      %p125 = scmp.ne.s32.totalorder %s120, %s122
      %p126 = scmp.eq.s32.totalorder %s23, 0
      %p127 = por %p125, %p126
      %p128 = scmp.ne.s32.totalorder %s120, %s122
      %p129 = scmp.eq.s32.totalorder %s28, 1
      %p130 = por %p128, %p129
      %p131 = scmp.ne.s32.totalorder %s122, %s123
      %p132 = scmp.eq.s32.totalorder %s28, 0
      %p133 = por %p131, %p132
      %p134 = scmp.ne.s32.totalorder %s122, %s123
      %p135 = scmp.eq.s32.totalorder %s29, 1
      %p136 = por %p134, %p135
      %p138 = scmp.ne.s32.totalorder %s123, %s137
      %p139 = scmp.eq.s32.totalorder %s29, 0
      %p140 = por %p138, %p139
      %s142 = sadd.s32 %s141, 1
      %p145 = scmp.eq.s32.totalorder %s23, 1
      %p146 = scmp.ne.s32.totalorder %s141, %s143
      %p147 = scmp.eq.s32.totalorder %s23, 0
      %p148 = por %p146, %p147
      %p149 = scmp.ne.s32.totalorder %s141, %s143
      %p150 = scmp.eq.s32.totalorder %s28, 1
      %p151 = por %p149, %p150
      %p152 = scmp.ne.s32.totalorder %s143, %s144
      %p153 = scmp.eq.s32.totalorder %s28, 0
      %p154 = por %p152, %p153
      %p155 = scmp.ne.s32.totalorder %s143, %s144
      %p156 = scmp.eq.s32.totalorder %s29, 1
      %p157 = por %p155, %p156
      %p159 = scmp.ne.s32.totalorder %s144, %s158
      %p160 = scmp.eq.s32.totalorder %s29, 0
      %p161 = por %p159, %p160
      %s163 = sadd.s32 %s162, 1
      %p166 = scmp.eq.s32.totalorder %s23, 1
      %p167 = scmp.ne.s32.totalorder %s162, %s164
      %p168 = scmp.eq.s32.totalorder %s23, 0
      %p169 = por %p167, %p168
      %p170 = scmp.ne.s32.totalorder %s162, %s164
      %p171 = scmp.eq.s32.totalorder %s28, 1
      %p172 = por %p170, %p171
      %p173 = scmp.ne.s32.totalorder %s164, %s165
      %p174 = scmp.eq.s32.totalorder %s28, 0
      %p175 = por %p173, %p174
      %p176 = scmp.ne.s32.totalorder %s164, %s165
      %p177 = scmp.eq.s32.totalorder %s29, 1
      %p178 = por %p176, %p177
      %p180 = scmp.ne.s32.totalorder %s165, %s179
      %p181 = scmp.eq.s32.totalorder %s29, 0
      %p182 = por %p180, %p181
      %s184 = sadd.s32 %s183, 1
      %p187 = scmp.eq.s32.totalorder %s23, 1
      %p188 = scmp.ne.s32.totalorder %s183, %s185
      %p189 = scmp.eq.s32.totalorder %s23, 0
      %p190 = por %p188, %p189
      %p191 = scmp.ne.s32.totalorder %s183, %s185
      %p192 = scmp.eq.s32.totalorder %s28, 1
      %p193 = por %p191, %p192
      %p194 = scmp.ne.s32.totalorder %s185, %s186
      %p195 = scmp.eq.s32.totalorder %s28, 0
      %p196 = por %p194, %p195
      %p197 = scmp.ne.s32.totalorder %s185, %s186
      %p198 = scmp.eq.s32.totalorder %s29, 1
      %p199 = por %p197, %p198
      %p201 = scmp.ne.s32.totalorder %s186, %s200
      %p202 = scmp.eq.s32.totalorder %s29, 0
      %p203 = por %p201, %p202
      %s205 = sadd.s32 %s204, 1
      %p208 = scmp.eq.s32.totalorder %s23, 1
      %p209 = scmp.ne.s32.totalorder %s204, %s206
      %p210 = scmp.eq.s32.totalorder %s23, 0
      %p211 = por %p209, %p210
      %p212 = scmp.ne.s32.totalorder %s204, %s206
      %p213 = scmp.eq.s32.totalorder %s28, 1
      %p214 = por %p212, %p213
      %p215 = scmp.ne.s32.totalorder %s206, %s207
      %p216 = scmp.eq.s32.totalorder %s28, 0
      %p217 = por %p215, %p216
      %p218 = scmp.ne.s32.totalorder %s206, %s207
      %p219 = scmp.eq.s32.totalorder %s29, 1
      %p220 = por %p218, %p219
      %p222 = scmp.ne.s32.totalorder %s207, %s221
      %p223 = scmp.eq.s32.totalorder %s29, 0
      %p224 = por %p222, %p223
      %s226 = sadd.s32 %s225, 1
      %p229 = scmp.eq.s32.totalorder %s23, 1
      %p230 = scmp.ne.s32.totalorder %s225, %s227
      %p231 = scmp.eq.s32.totalorder %s23, 0
      %p232 = por %p230, %p231
      %p233 = scmp.ne.s32.totalorder %s225, %s227
      %p234 = scmp.eq.s32.totalorder %s28, 1
      %p235 = por %p233, %p234
      %p236 = scmp.ne.s32.totalorder %s227, %s228
      %p237 = scmp.eq.s32.totalorder %s28, 0
      %p238 = por %p236, %p237
      %p239 = scmp.ne.s32.totalorder %s227, %s228
      %p240 = scmp.eq.s32.totalorder %s29, 1
      %p241 = por %p239, %p240
      %p243 = scmp.ne.s32.totalorder %s228, %s242
      %p244 = scmp.eq.s32.totalorder %s29, 0
      %p245 = por %p243, %p244
      %s247 = sadd.s32 %s246, 1
      %p250 = scmp.eq.s32.totalorder %s23, 1
      %p251 = scmp.ne.s32.totalorder %s246, %s248
      %p252 = scmp.eq.s32.totalorder %s23, 0
      %p253 = por %p251, %p252
      %p254 = scmp.ne.s32.totalorder %s246, %s248
      %p255 = scmp.eq.s32.totalorder %s28, 1
      %p256 = por %p254, %p255
      %p257 = scmp.ne.s32.totalorder %s248, %s249
      %p258 = scmp.eq.s32.totalorder %s28, 0
      %p259 = por %p257, %p258
      %p260 = scmp.ne.s32.totalorder %s248, %s249
      %p261 = scmp.eq.s32.totalorder %s29, 1
      %p262 = por %p260, %p261
      %p264 = scmp.ne.s32.totalorder %s249, %s263
      %p265 = scmp.eq.s32.totalorder %s29, 0
      %p266 = por %p264, %p265
      %s268 = sadd.s32 %s267, 1
      %p271 = scmp.eq.s32.totalorder %s23, 1
      %p272 = scmp.ne.s32.totalorder %s267, %s269
      %p273 = scmp.eq.s32.totalorder %s23, 0
      %p274 = por %p272, %p273
      %p275 = scmp.ne.s32.totalorder %s267, %s269
      %p276 = scmp.eq.s32.totalorder %s28, 1
      %p277 = por %p275, %p276
      %p278 = scmp.ne.s32.totalorder %s269, %s270
      %p279 = scmp.eq.s32.totalorder %s28, 0
      %p280 = por %p278, %p279
      %p281 = scmp.ne.s32.totalorder %s269, %s270
      %p282 = scmp.eq.s32.totalorder %s29, 1
      %p283 = por %p281, %p282
      %p285 = scmp.ne.s32.totalorder %s270, %s284
      %p286 = scmp.eq.s32.totalorder %s29, 0
      %p287 = por %p285, %p286
      %s289 = sadd.s32 %s288, 1
      %p292 = scmp.eq.s32.totalorder %s23, 1
      %p293 = scmp.ne.s32.totalorder %s288, %s290
      %p294 = scmp.eq.s32.totalorder %s23, 0
      %p295 = por %p293, %p294
      %p296 = scmp.ne.s32.totalorder %s288, %s290
      %p297 = scmp.eq.s32.totalorder %s28, 1
      %p298 = por %p296, %p297
      %p299 = scmp.ne.s32.totalorder %s290, %s291
      %p300 = scmp.eq.s32.totalorder %s28, 0
      %p301 = por %p299, %p300
      %p302 = scmp.ne.s32.totalorder %s290, %s291
      %p303 = scmp.eq.s32.totalorder %s29, 1
      %p304 = por %p302, %p303
      %p306 = scmp.ne.s32.totalorder %s291, %s305
      %p307 = scmp.eq.s32.totalorder %s29, 0
      %p308 = por %p306, %p307
      %s310 = sadd.s32 %s309, 1
      %p313 = scmp.eq.s32.totalorder %s23, 1
      %p314 = scmp.ne.s32.totalorder %s309, %s311
      %p315 = scmp.eq.s32.totalorder %s23, 0
      %p316 = por %p314, %p315
      %p317 = scmp.ne.s32.totalorder %s309, %s311
      %p318 = scmp.eq.s32.totalorder %s28, 1
      %p319 = por %p317, %p318
      %p320 = scmp.ne.s32.totalorder %s311, %s312
      %p321 = scmp.eq.s32.totalorder %s28, 0
      %p322 = por %p320, %p321
      %p323 = scmp.ne.s32.totalorder %s311, %s312
      %p324 = scmp.eq.s32.totalorder %s29, 1
      %p325 = por %p323, %p324
      %p327 = scmp.ne.s32.totalorder %s312, %s326
      %p328 = scmp.eq.s32.totalorder %s29, 0
      %p329 = por %p327, %p328
      %s330 = ssub.s32 %s23, %s30
      %p331 = scmp.eq.s32.totalorder %s330, 0
      %s333 = sadd.s32 %s332, 1
      %s334 = scalar_select %p331, %s332, %s333
      %p337 = pneg %p331
      %p338 = scmp.eq.s32.totalorder %s23, 1
      %p339 = por %p337, %p338
      %p340 = scmp.ne.s32.totalorder %s332, %s335
      %p341 = scmp.eq.s32.totalorder %s23, 0
      %p342 = por %p340, %p341
      %p343 = scmp.ne.s32.totalorder %s332, %s335
      %p344 = scmp.eq.s32.totalorder %s28, 1
      %p345 = por %p343, %p344
      %p346 = scmp.ne.s32.totalorder %s335, %s336
      %p347 = scmp.eq.s32.totalorder %s28, 0
      %p348 = por %p346, %p347
      %p349 = scmp.ne.s32.totalorder %s335, %s336
      %p350 = scmp.eq.s32.totalorder %s29, 1
      %p351 = por %p349, %p350
      %p353 = scmp.ne.s32.totalorder %s336, %s352
      %p354 = scmp.eq.s32.totalorder %s29, 0
      %p355 = por %p353, %p354
      %p356 = scmp.le.s32.totalorder 1, %s23
      %p357 = scmp.lt.s32.totalorder %s23, 3
      %p358 = pnand %p356, %p357
      %p359 = pneg %p358
      // Predicated region
      $region9: #{block_forward.1} parent=5 // pred_check
        _
      $region10: #{block_forward.1} parent=5 // pred_check_branch
        %361 = sbr.rel (%p358) target = $region12
      $region11: #{block_forward.1} parent=5 // pred_region
        %s362 = ssub.s32 %s23, 1
        // Predicated region
        $region13: #{block_forward.1} parent=11 // pred_check
          %p363 = pneg %p70
        $region14: #{block_forward.1} parent=11 // pred_check_branch
          %365 = sbr.rel (%p363) target = $region16
        $region15: #{block_forward.1} parent=11 // pred_region
          _
        $region16: #{block_forward.1} parent=11 // pred_fallthru
          _
        // Predicated region
        $region17: #{block_forward.1} parent=11 // pred_check
          %p366 = pneg %p91
        $region18: #{block_forward.1} parent=11 // pred_check_branch
          %368 = sbr.rel (%p366) target = $region20
        $region19: #{block_forward.1} parent=11 // pred_region
          _
        $region20: #{block_forward.1} parent=11 // pred_fallthru
          _
        // Predicated region
        $region21: #{block_forward.1} parent=11 // pred_check
          %p369 = pneg %p112
        $region22: #{block_forward.1} parent=11 // pred_check_branch
          %371 = sbr.rel (%p369) target = $region24
        $region23: #{block_forward.1} parent=11 // pred_region
          _
        $region24: #{block_forward.1} parent=11 // pred_fallthru
          _
        // Predicated region
        $region25: #{block_forward.1} parent=11 // pred_check
          %p372 = pneg %p133
        $region26: #{block_forward.1} parent=11 // pred_check_branch
          %374 = sbr.rel (%p372) target = $region28
        $region27: #{block_forward.1} parent=11 // pred_region
          _
        $region28: #{block_forward.1} parent=11 // pred_fallthru
          _
        // Predicated region
        $region29: #{block_forward.1} parent=11 // pred_check
          %p375 = pneg %p154
        $region30: #{block_forward.1} parent=11 // pred_check_branch
          %377 = sbr.rel (%p375) target = $region32
        $region31: #{block_forward.1} parent=11 // pred_region
          _
        $region32: #{block_forward.1} parent=11 // pred_fallthru
          _
        // Predicated region
        $region33: #{block_forward.1} parent=11 // pred_check
          %p378 = pneg %p175
        $region34: #{block_forward.1} parent=11 // pred_check_branch
          %380 = sbr.rel (%p378) target = $region36
        $region35: #{block_forward.1} parent=11 // pred_region
          _
        $region36: #{block_forward.1} parent=11 // pred_fallthru
          _
        // Predicated region
        $region37: #{block_forward.1} parent=11 // pred_check
          %p381 = pneg %p196
        $region38: #{block_forward.1} parent=11 // pred_check_branch
          %383 = sbr.rel (%p381) target = $region40
        $region39: #{block_forward.1} parent=11 // pred_region
          _
        $region40: #{block_forward.1} parent=11 // pred_fallthru
          _
        // Predicated region
        $region41: #{block_forward.1} parent=11 // pred_check
          %p384 = pneg %p217
        $region42: #{block_forward.1} parent=11 // pred_check_branch
          %386 = sbr.rel (%p384) target = $region44
        $region43: #{block_forward.1} parent=11 // pred_region
          _
        $region44: #{block_forward.1} parent=11 // pred_fallthru
          _
        // Predicated region
        $region45: #{block_forward.1} parent=11 // pred_check
          %p387 = pneg %p238
        $region46: #{block_forward.1} parent=11 // pred_check_branch
          %389 = sbr.rel (%p387) target = $region48
        $region47: #{block_forward.1} parent=11 // pred_region
          _
        $region48: #{block_forward.1} parent=11 // pred_fallthru
          _
        // Predicated region
        $region49: #{block_forward.1} parent=11 // pred_check
          %p390 = pneg %p259
        $region50: #{block_forward.1} parent=11 // pred_check_branch
          %392 = sbr.rel (%p390) target = $region52
        $region51: #{block_forward.1} parent=11 // pred_region
          _
        $region52: #{block_forward.1} parent=11 // pred_fallthru
          _
        // Predicated region
        $region53: #{block_forward.1} parent=11 // pred_check
          %p393 = pneg %p280
        $region54: #{block_forward.1} parent=11 // pred_check_branch
          %395 = sbr.rel (%p393) target = $region56
        $region55: #{block_forward.1} parent=11 // pred_region
          _
        $region56: #{block_forward.1} parent=11 // pred_fallthru
          _
        // Predicated region
        $region57: #{block_forward.1} parent=11 // pred_check
          %p396 = pneg %p301
        $region58: #{block_forward.1} parent=11 // pred_check_branch
          %398 = sbr.rel (%p396) target = $region60
        $region59: #{block_forward.1} parent=11 // pred_region
          _
        $region60: #{block_forward.1} parent=11 // pred_fallthru
          _
        // Predicated region
        $region61: #{block_forward.1} parent=11 // pred_check
          %p399 = pneg %p322
        $region62: #{block_forward.1} parent=11 // pred_check_branch
          %401 = sbr.rel (%p399) target = $region64
        $region63: #{block_forward.1} parent=11 // pred_region
          _
        $region64: #{block_forward.1} parent=11 // pred_fallthru
          _
      $region12: #{block_forward.1} parent=5 // pred_fallthru
        _
      %p402 = scmp.lt.s32.totalorder %s23, 2
      // Predicated region
      $region65: #{block_forward.1} parent=5 // pred_check
        %p403 = pneg %p402
      $region66: #{block_forward.1} parent=5 // pred_check_branch
        %405 = sbr.rel (%p403) target = $region68
      $region67: #{block_forward.1} parent=5 // pred_region
        // Predicated region
        $region69: #{block_forward.1} parent=67 // pred_check
          %p406 = pneg %p43
        $region70: #{block_forward.1} parent=67 // pred_check_branch
          %408 = sbr.rel (%p406) target = $region72
        $region71: #{block_forward.1} parent=67 // pred_region
          %p409 = scmp.lt.s32.totalorder %s23, 1
          %s410 = scalar_select %p409, %s23, 1
          %s411 = smul.addr %s410, 4
          %s412 = smul.addr %s411, 8
          %s413 = scalar_lea.vmem %s0, %s412
        $region72: #{block_forward.1} parent=67 // pred_fallthru
          _
      $region68: #{block_forward.1} parent=5 // pred_fallthru
        _
      %p414 = scmp.le.s32.totalorder 1, %s23
      %p415 = scmp.lt.s32.totalorder %s23, 3
      %p416 = pnand %p414, %p415
      %p417 = pneg %p416
      // Predicated region
      $region73: #{block_forward.1} parent=5 // pred_check
        _
      $region74: #{block_forward.1} parent=5 // pred_check_branch
        %419 = sbr.rel (%p416) target = $region76
      $region75: #{block_forward.1} parent=5 // pred_region
        %s420 = ssub.s32 %s23, 1
        %p421 = scmp.lt.s32.totalorder %s28, 1
        %s422 = scalar_select %p421, %s28, 1
        %s423 = smul.addr %s422, 4
        %s424 = smul.addr %s423, 8
        %s425 = scalar_lea.vmem %s0, %s424
        %p426 = pneg %p49
        %p427 = pneg %p46
        %p428 = pneg %p70
        %p429 = pneg %p67
        %p430 = pneg %p91
        %p431 = pneg %p88
        %p432 = pneg %p112
        %p433 = pneg %p109
        %p434 = pneg %p133
        %p435 = pneg %p130
        %p436 = pneg %p154
        %p437 = pneg %p151
        %p438 = pneg %p175
        %p439 = pneg %p172
        %p440 = pneg %p196
        %p441 = pneg %p193
        %p442 = pneg %p217
        %p443 = pneg %p214
        %p444 = pneg %p238
        %p445 = pneg %p235
        %p446 = pneg %p259
        %p447 = pneg %p256
        %p448 = pneg %p280
        %p449 = pneg %p277
        %p450 = pneg %p301
        %p451 = pneg %p298
        %p452 = pneg %p322
        %p453 = pneg %p319
        %p454 = pneg %p348
        %p455 = pneg %p345
        %s456 = sand.u32 %s335, 1
        %s457 = scalar_lea.sflag [#allocation3], %s456
        %s458 = sand.u32 %s335, 1
        %s459 = smul.addr %s458, 32
        %s460 = scalar_lea.vmem [#allocation2], %s459
        %p461 = scmp.lt.s32.totalorder %s28, 1
        %s462 = scalar_select %p461, %s28, 1
        %s463 = smul.addr %s462, 4
        %s464 = smul.addr %s463, 8
        %s465 = scalar_lea.vmem %s0, %s464
        %v467 = vld [vmem:[%s465] sm:$0xff]
        %v468 = vld [vmem:[%s465 + $0x8] sm:$0xff]
        %v469 = vld [vmem:[%s465 + $0x10] sm:$0xff]
        %v470 = vld [vmem:[%s465 + $0x18] sm:$0xff]
        %v471 = vld [vmem:[%s1] sm:$0x1]
        %v472 = vld [vmem:[%s2] sm:$0x1]
        %vm473 = vcmask 523264
        %v474 = vsel %vm473, %v467, 0.0
        %475 = vadd.xlane.f32.xlu0 %v474
        %v476 = vpop.xlane.xlu0 %475
        %v477 = vsel %vm473, %v468, 0.0
        %478 = vadd.xlane.f32.xlu0 %v477
        %v479 = vpop.xlane.xlu0 %478
        %v480 = vsel %vm473, %v469, 0.0
        %481 = vadd.xlane.f32.xlu0 %v480
        %v482 = vpop.xlane.xlu0 %481
        %v483 = vsel %vm473, %v470, 0.0
        %484 = vadd.xlane.f32.xlu0 %v483
        %v485 = vpop.xlane.xlu0 %484
        %v486 = vrcp.pop 64.0
        %v487 = vmul.f32 %v476, %v486
        %v488 = vmul.f32 %v479, %v486
        %v489 = vmul.f32 %v482, %v486
        %v490 = vmul.f32 %v485, %v486
        %v491 = vsub.f32 %v467, %v487
        %v492 = vsub.f32 %v468, %v488
        %v493 = vsub.f32 %v469, %v489
        %v494 = vsub.f32 %v470, %v490
        %v495 = vmul.f32 %v491, %v491
        %v496 = vmul.f32 %v492, %v492
        %v497 = vmul.f32 %v493, %v493
        %v498 = vmul.f32 %v494, %v494
        %v499 = vsel %vm473, %v495, 0.0
        %500 = vadd.xlane.f32.xlu0 %v499
        %v501 = vpop.xlane.xlu0 %500
        %v502 = vsel %vm473, %v496, 0.0
        %503 = vadd.xlane.f32.xlu0 %v502
        %v504 = vpop.xlane.xlu0 %503
        %v505 = vsel %vm473, %v497, 0.0
        %506 = vadd.xlane.f32.xlu0 %v505
        %v507 = vpop.xlane.xlu0 %506
        %v508 = vsel %vm473, %v498, 0.0
        %509 = vadd.xlane.f32.xlu0 %v508
        %v510 = vpop.xlane.xlu0 %509
        %v511 = vmul.f32 %v501, %v486
        %v512 = vmul.f32 %v504, %v486
        %v513 = vmul.f32 %v507, %v486
        %v514 = vmul.f32 %v510, %v486
        %v515 = vadd.f32 %v511, 1e-06
        %v516 = vadd.f32 %v512, 1e-06
        %v517 = vadd.f32 %v513, 1e-06
        %v518 = vadd.f32 %v514, 1e-06
        %v519 = vrsqrt.pop %v515
        %v520 = vrsqrt.pop %v516
        %v521 = vrsqrt.pop %v517
        %v522 = vrsqrt.pop %v518
        %v523 = vmul.f32 %v491, %v519
        %v524 = vmul.f32 %v492, %v520
        %v525 = vmul.f32 %v493, %v521
        %v526 = vmul.f32 %v494, %v522
        %v528 = vlaneseq
        %v529 = vshrl.u32 %v528, 7
        %v530 = vsub.s32 0, %v529
        %v531 = vrot.slane %v471, %v530
        %v533 = vmul.f32 %v523, %v531
        %v534 = vmul.f32 %v524, %v531
        %v535 = vmul.f32 %v525, %v531
        %v536 = vmul.f32 %v526, %v531
        %v538 = vlaneseq
        %v539 = vshrl.u32 %v538, 7
        %v540 = vsub.s32 0, %v539
        %v541 = vrot.slane %v472, %v540
        %v543 = vadd.f32 %v533, %v541
        %v544 = vadd.f32 %v534, %v541
        %v545 = vadd.f32 %v535, %v541
        %v546 = vadd.f32 %v536, %v541
        %v547 = vpack.c.bf16 %v544, %v543
        %v548 = vpack.c.bf16 %v546, %v545
        %v549 = vld [vmem:[%s3] sm:$0xf]
        %v550 = vld [vmem:[%s3 + $0x4] sm:$0xf]
        %v551 = vld [vmem:[%s3 + $0x8] sm:$0xf]
        %v552 = vld [vmem:[%s3 + $0xc] sm:$0xf]
        %v553 = vld [vmem:[%s3 + $0x10] sm:$0xf]
        %v554 = vld [vmem:[%s3 + $0x14] sm:$0xf]
        %v555 = vld [vmem:[%s3 + $0x18] sm:$0xf]
        %v556 = vld [vmem:[%s3 + $0x1c] sm:$0xf]
        %v565 = vunpack.c.l.b16 %v549
        %v566 = vunpack.c.l.b16 %v550
        %v567 = vunpack.c.l.b16 %v551
        %v568 = vunpack.c.l.b16 %v552
        %v569 = vunpack.c.l.b16 %v553
        %v570 = vunpack.c.l.b16 %v554
        %v571 = vunpack.c.l.b16 %v555
        %v572 = vunpack.c.l.b16 %v556
        %v573 = vpack.c.b16 %v566, %v565
        %v574 = vpack.c.b16 %v568, %v567
        %v575 = vpack.c.b16 %v570, %v569
        %v576 = vpack.c.b16 %v572, %v571
        %v582 = vsel %vm473, %v547, 0
        %v585 = vsel %vm473, %v548, 0
        %587 = vmatprep.subr.bf16.mxu0 0
        %588 = vmatpush1.bf16.msra.mxu0 %v573
        %589 = vmatprep.subr.bf16.mxu0 0
        %590 = vmatpush1.bf16.msra.mxu0 %v574
        %591 = vmatprep.subr.bf16.mxu0 0
        %592 = vmatpush1.bf16.msra.mxu0 %v575
        %593 = vmatprep.subr.bf16.mxu0 0
        %594 = vmatpush1.bf16.msra.mxu0 %v576
        %595 = vmatprep.subr.bf16.mxu0 0
        %596 = vmatpush1.bf16.msra.mxu0 0
        %597 = vmatprep.subr.bf16.mxu0 0
        %598 = vmatpush1.bf16.msra.mxu0 0
        %599 = vmatprep.subr.bf16.mxu0 0
        %600 = vmatpush1.bf16.msra.mxu0 0
        %601 = vmatprep.subr.bf16.mxu0 0
        %602 = vmatpush1.bf16.msra.mxu0 0
        %603 = vmatprep.subr.bf16.mxu0 0
        %604 = vmatpush1.bf16.msra.mxu0 0
        %605 = vmatprep.subr.bf16.mxu0 0
        %606 = vmatpush1.bf16.msra.mxu0 0
        %607 = vmatprep.subr.bf16.mxu0 0
        %608 = vmatpush1.bf16.msra.mxu0 0
        %609 = vmatprep.subr.bf16.mxu0 0
        %610 = vmatpush1.bf16.msra.mxu0 0
        %611 = vmatprep.subr.bf16.mxu0 0
        %612 = vmatpush1.bf16.msra.mxu0 0
        %613 = vmatprep.subr.bf16.mxu0 0
        %614 = vmatpush1.bf16.msra.mxu0 0
        %615 = vmatprep.subr.bf16.mxu0 0
        %616 = vmatpush1.bf16.msra.mxu0 0
        %617 = vmatprep.subr.bf16.mxu0 0
        %618 = vmatpush1.bf16.msra.mxu0 0
        %619 = vmatprep.mubr.bf16.mxu0 0
        %620 = vmatmul.mubr.bf16.gmra.mrb[0].mxu0 %v582
        %v621 = vpop.f32.mrb[0].mxu0
        %v622 = vadd.f32 0.0, %v621
        %v623 = vpop.f32.mrb[0].mxu0
        %v624 = vpop.f32.mrb[0].mxu0
        %v625 = vadd.f32 0.0, %v624
        %v626 = vpop.f32.mrb[0].mxu0
        %627 = vmatprep.mubr.bf16.mxu0 0
        %628 = vmatmul.mubr.bf16.gmra.mrb[0].mxu0 %v585
        %v629 = vpop.f32.mrb[0].mxu0
        %v630 = vadd.f32 0.0, %v629
        %v631 = vpop.f32.mrb[0].mxu0
        %v632 = vpop.f32.mrb[0].mxu0
        %v633 = vadd.f32 0.0, %v632
        %v634 = vpop.f32.mrb[0].mxu0
        %635 = vdwg.mxu0
        %v636 = vld [vmem:[%s4] sm:$0xf]
        %v637 = vld [vmem:[%s4 + $0x4] sm:$0xf]
        %v638 = vld [vmem:[%s4 + $0x8] sm:$0xf]
        %v639 = vld [vmem:[%s4 + $0xc] sm:$0xf]
        %v640 = vld [vmem:[%s4 + $0x10] sm:$0xf]
        %v641 = vld [vmem:[%s4 + $0x14] sm:$0xf]
        %v642 = vld [vmem:[%s4 + $0x18] sm:$0xf]
        %v643 = vld [vmem:[%s4 + $0x1c] sm:$0xf]
        %v652 = vunpack.c.l.b16 %v636
        %v653 = vunpack.c.l.b16 %v637
        %v654 = vunpack.c.l.b16 %v638
        %v655 = vunpack.c.l.b16 %v639
        %v656 = vunpack.c.l.b16 %v640
        %v657 = vunpack.c.l.b16 %v641
        %v658 = vunpack.c.l.b16 %v642
        %v659 = vunpack.c.l.b16 %v643
        %v660 = vpack.c.b16 %v653, %v652
        %v661 = vpack.c.b16 %v655, %v654
        %v662 = vpack.c.b16 %v657, %v656
        %v663 = vpack.c.b16 %v659, %v658
        %668 = vmatprep.subr.bf16.mxu0 0
        %669 = vmatpush1.bf16.msra.mxu0 %v660
        %670 = vmatprep.subr.bf16.mxu0 0
        %671 = vmatpush1.bf16.msra.mxu0 %v661
        %672 = vmatprep.subr.bf16.mxu0 0
        %673 = vmatpush1.bf16.msra.mxu0 %v662
        %674 = vmatprep.subr.bf16.mxu0 0
        %675 = vmatpush1.bf16.msra.mxu0 %v663
        %676 = vmatprep.subr.bf16.mxu0 0
        %677 = vmatpush1.bf16.msra.mxu0 0
        %678 = vmatprep.subr.bf16.mxu0 0
        %679 = vmatpush1.bf16.msra.mxu0 0
        %680 = vmatprep.subr.bf16.mxu0 0
        %681 = vmatpush1.bf16.msra.mxu0 0
        %682 = vmatprep.subr.bf16.mxu0 0
        %683 = vmatpush1.bf16.msra.mxu0 0
        %684 = vmatprep.subr.bf16.mxu0 0
        %685 = vmatpush1.bf16.msra.mxu0 0
        %686 = vmatprep.subr.bf16.mxu0 0
        %687 = vmatpush1.bf16.msra.mxu0 0
        %688 = vmatprep.subr.bf16.mxu0 0
        %689 = vmatpush1.bf16.msra.mxu0 0
        %690 = vmatprep.subr.bf16.mxu0 0
        %691 = vmatpush1.bf16.msra.mxu0 0
        %692 = vmatprep.subr.bf16.mxu0 0
        %693 = vmatpush1.bf16.msra.mxu0 0
        %694 = vmatprep.subr.bf16.mxu0 0
        %695 = vmatpush1.bf16.msra.mxu0 0
        %696 = vmatprep.subr.bf16.mxu0 0
        %697 = vmatpush1.bf16.msra.mxu0 0
        %698 = vmatprep.subr.bf16.mxu0 0
        %699 = vmatpush1.bf16.msra.mxu0 0
        %700 = vmatprep.mubr.bf16.mxu0 0
        %701 = vmatmul.mubr.bf16.gmra.mrb[0].mxu0 %v582
        %v702 = vpop.f32.mrb[0].mxu0
        %v703 = vadd.f32 0.0, %v702
        %v704 = vpop.f32.mrb[0].mxu0
        %v705 = vpop.f32.mrb[0].mxu0
        %v706 = vadd.f32 0.0, %v705
        %v707 = vpop.f32.mrb[0].mxu0
        %708 = vmatprep.mubr.bf16.mxu0 0
        %709 = vmatmul.mubr.bf16.gmra.mrb[0].mxu0 %v585
        %v710 = vpop.f32.mrb[0].mxu0
        %v711 = vadd.f32 0.0, %v710
        %v712 = vpop.f32.mrb[0].mxu0
        %v713 = vpop.f32.mrb[0].mxu0
        %v714 = vadd.f32 0.0, %v713
        %v715 = vpop.f32.mrb[0].mxu0
        %716 = vdwg.mxu0
        %v717 = vld [vmem:[%s5] sm:$0xf]
        %v718 = vld [vmem:[%s5 + $0x4] sm:$0xf]
        %v719 = vld [vmem:[%s5 + $0x8] sm:$0xf]
        %v720 = vld [vmem:[%s5 + $0xc] sm:$0xf]
        %v721 = vld [vmem:[%s5 + $0x10] sm:$0xf]
        %v722 = vld [vmem:[%s5 + $0x14] sm:$0xf]
        %v723 = vld [vmem:[%s5 + $0x18] sm:$0xf]
        %v724 = vld [vmem:[%s5 + $0x1c] sm:$0xf]
        %v733 = vunpack.c.l.b16 %v717
        %v734 = vunpack.c.l.b16 %v718
        %v735 = vunpack.c.l.b16 %v719
        %v736 = vunpack.c.l.b16 %v720
        %v737 = vunpack.c.l.b16 %v721
        %v738 = vunpack.c.l.b16 %v722
        %v739 = vunpack.c.l.b16 %v723
        %v740 = vunpack.c.l.b16 %v724
        %v741 = vpack.c.b16 %v734, %v733
        %v742 = vpack.c.b16 %v736, %v735
        %v743 = vpack.c.b16 %v738, %v737
        %v744 = vpack.c.b16 %v740, %v739
        %749 = vmatprep.subr.bf16.mxu0 0
        %750 = vmatpush1.bf16.msra.mxu0 %v741
        %751 = vmatprep.subr.bf16.mxu0 0
        %752 = vmatpush1.bf16.msra.mxu0 %v742
        %753 = vmatprep.subr.bf16.mxu0 0
        %754 = vmatpush1.bf16.msra.mxu0 %v743
        %755 = vmatprep.subr.bf16.mxu0 0
        %756 = vmatpush1.bf16.msra.mxu0 %v744
        %757 = vmatprep.subr.bf16.mxu0 0
        %758 = vmatpush1.bf16.msra.mxu0 0
        %759 = vmatprep.subr.bf16.mxu0 0
        %760 = vmatpush1.bf16.msra.mxu0 0
        %761 = vmatprep.subr.bf16.mxu0 0
        %762 = vmatpush1.bf16.msra.mxu0 0
        %763 = vmatprep.subr.bf16.mxu0 0
        %764 = vmatpush1.bf16.msra.mxu0 0
        %765 = vmatprep.subr.bf16.mxu0 0
        %766 = vmatpush1.bf16.msra.mxu0 0
        %767 = vmatprep.subr.bf16.mxu0 0
        %768 = vmatpush1.bf16.msra.mxu0 0
        %769 = vmatprep.subr.bf16.mxu0 0
        %770 = vmatpush1.bf16.msra.mxu0 0
        %771 = vmatprep.subr.bf16.mxu0 0
        %772 = vmatpush1.bf16.msra.mxu0 0
        %773 = vmatprep.subr.bf16.mxu0 0
        %774 = vmatpush1.bf16.msra.mxu0 0
        %775 = vmatprep.subr.bf16.mxu0 0
        %776 = vmatpush1.bf16.msra.mxu0 0
        %777 = vmatprep.subr.bf16.mxu0 0
        %778 = vmatpush1.bf16.msra.mxu0 0
        %779 = vmatprep.subr.bf16.mxu0 0
        %780 = vmatpush1.bf16.msra.mxu0 0
        %781 = vmatprep.mubr.bf16.mxu0 0
        %782 = vmatmul.mubr.bf16.gmra.mrb[0].mxu0 %v582
        %v783 = vpop.f32.mrb[0].mxu0
        %v784 = vadd.f32 0.0, %v783
        %v785 = vpop.f32.mrb[0].mxu0
        %v786 = vpop.f32.mrb[0].mxu0
        %v787 = vadd.f32 0.0, %v786
        %v788 = vpop.f32.mrb[0].mxu0
        %789 = vmatprep.mubr.bf16.mxu0 0
        %790 = vmatmul.mubr.bf16.gmra.mrb[0].mxu0 %v585
        %v791 = vpop.f32.mrb[0].mxu0
        %v792 = vadd.f32 0.0, %v791
        %v793 = vpop.f32.mrb[0].mxu0
        %v794 = vpop.f32.mrb[0].mxu0
        %v795 = vadd.f32 0.0, %v794
        %v796 = vpop.f32.mrb[0].mxu0
        %797 = vdwg.mxu0
        %v798 = vpack.c.bf16 %v625, %v622
        %v799 = vpack.c.bf16 %v633, %v630
        %v800 = vpack.c.bf16 %v706, %v703
        %v801 = vpack.c.bf16 %v714, %v711
        %vm802 = vcmask 130048
        %v804 = vsel %vm802, %v798, 0
        %v807 = vsel %vm802, %v799, 0
        %v810 = vsel %vm802, %v800, 0
        %v813 = vsel %vm802, %v801, 0
        %815 = vmatprep.subr.bf16.mxu0 0
        %816 = vmatpush1.bf16.xpose.msra.mxu0 %v810
        %817 = vmatprep.subr.bf16.mxu0 0
        %818 = vmatpush1.bf16.xpose.msra.mxu0 %v813
        %819 = vmatprep.subr.bf16.mxu0 0
        %820 = vmatpush1.bf16.xpose.msra.mxu0 0
        %821 = vmatprep.subr.bf16.mxu0 0
        %822 = vmatpush1.bf16.xpose.msra.mxu0 0
        %823 = vmatprep.subr.bf16.mxu0 0
        %824 = vmatpush1.bf16.xpose.msra.mxu0 0
        %825 = vmatprep.subr.bf16.mxu0 0
        %826 = vmatpush1.bf16.xpose.msra.mxu0 0
        %827 = vmatprep.subr.bf16.mxu0 0
        %828 = vmatpush1.bf16.xpose.msra.mxu0 0
        %829 = vmatprep.subr.bf16.mxu0 0
        %830 = vmatpush1.bf16.xpose.msra.mxu0 0
        %831 = vmatprep.subr.bf16.mxu0 0
        %832 = vmatpush1.bf16.xpose.msra.mxu0 0
        %833 = vmatprep.subr.bf16.mxu0 0
        %834 = vmatpush1.bf16.xpose.msra.mxu0 0
        %835 = vmatprep.subr.bf16.mxu0 0
        %836 = vmatpush1.bf16.xpose.msra.mxu0 0
        %837 = vmatprep.subr.bf16.mxu0 0
        %838 = vmatpush1.bf16.xpose.msra.mxu0 0
        %839 = vmatprep.subr.bf16.mxu0 0
        %840 = vmatpush1.bf16.xpose.msra.mxu0 0
        %841 = vmatprep.subr.bf16.mxu0 0
        %842 = vmatpush1.bf16.xpose.msra.mxu0 0
        %843 = vmatprep.subr.bf16.mxu0 0
        %844 = vmatpush1.bf16.xpose.msra.mxu0 0
        %845 = vmatprep.subr.bf16.mxu0 0
        %846 = vmatpush1.bf16.xpose.msra.mxu0 0
        %847 = vmatprep.mubr.bf16.mxu0 0
        %848 = vmatmul.mubr.bf16.gmra.mrb[0].mxu0 %v804
        %v849 = vpop.f32.mrb[0].mxu0
        %v850 = vadd.f32 0.0, %v849
        %v851 = vpop.f32.mrb[0].mxu0
        %v852 = vpop.f32.mrb[0].mxu0
        %v853 = vadd.f32 0.0, %v852
        %v854 = vpop.f32.mrb[0].mxu0
        %855 = vmatprep.mubr.bf16.mxu0 0
        %856 = vmatmul.mubr.bf16.gmra.mrb[0].mxu0 %v807
        %v857 = vpop.f32.mrb[0].mxu0
        %v858 = vadd.f32 0.0, %v857
        %v859 = vpop.f32.mrb[0].mxu0
        %v860 = vpop.f32.mrb[0].mxu0
        %v861 = vadd.f32 0.0, %v860
        %v862 = vpop.f32.mrb[0].mxu0
        %863 = vdwg.mxu0
        %v864 = vmul.f32 %v850, 0.25
        %v865 = vmul.f32 %v853, 0.25
        %v866 = vmul.f32 %v858, 0.25
        %v867 = vmul.f32 %v861, 0.25
        %vm868 = vcmask 261120
        %v869 = vsel %vm868, %v864, -inf
        %870 = vmax.xlane.f32.xlu0 %v869
        %v871 = vpop.xlane.xlu0 %870
        %v872 = vsel %vm868, %v865, -inf
        %873 = vmax.xlane.f32.xlu0 %v872
        %v874 = vpop.xlane.xlu0 %873
        %v875 = vsel %vm868, %v866, -inf
        %876 = vmax.xlane.f32.xlu0 %v875
        %v877 = vpop.xlane.xlu0 %876
        %v878 = vsel %vm868, %v867, -inf
        %879 = vmax.xlane.f32.xlu0 %v878
        %v880 = vpop.xlane.xlu0 %879
        %v881 = vsub.f32 %v864, %v871
        %v882 = vsub.f32 %v865, %v874
        %v883 = vsub.f32 %v866, %v877
        %v884 = vsub.f32 %v867, %v880
        %v885 = vmul.f32 %v881, 1.442695
        %v886 = vpow.pop %v885
        %v887 = vmul.f32 %v882, 1.442695
        %v888 = vpow.pop %v887
        %v889 = vmul.f32 %v883, 1.442695
        %v890 = vpow.pop %v889
        %v891 = vmul.f32 %v884, 1.442695
        %v892 = vpow.pop %v891
        %v893 = vsel %vm868, %v886, 0.0
        %894 = vadd.xlane.f32.xlu0 %v893
        %v895 = vpop.xlane.xlu0 %894
        %v896 = vsel %vm868, %v888, 0.0
        %897 = vadd.xlane.f32.xlu0 %v896
        %v898 = vpop.xlane.xlu0 %897
        %v899 = vsel %vm868, %v890, 0.0
        %900 = vadd.xlane.f32.xlu0 %v899
        %v901 = vpop.xlane.xlu0 %900
        %v902 = vsel %vm868, %v892, 0.0
        %903 = vadd.xlane.f32.xlu0 %v902
        %v904 = vpop.xlane.xlu0 %903
        %v905 = vrcp.pop %v895
        %v906 = vmul.f32 %v886, %v905
        %v907 = vrcp.pop %v898
        %v908 = vmul.f32 %v888, %v907
        %v909 = vrcp.pop %v901
        %v910 = vmul.f32 %v890, %v909
        %v911 = vrcp.pop %v904
        %v912 = vmul.f32 %v892, %v911
        %v913 = vpack.c.bf16 %v908, %v906
        %v914 = vpack.c.bf16 %v912, %v910
        %v915 = vpack.c.bf16 %v787, %v784
        %v916 = vpack.c.bf16 %v795, %v792
        %v918 = vsel %vm868, %v913, 0
        %v921 = vsel %vm868, %v914, 0
        %923 = vmatprep.subr.bf16.mxu0 0
        %924 = vmatpush1.bf16.msra.mxu0 %v915
        %925 = vmatprep.subr.bf16.mxu0 0
        %926 = vmatpush1.bf16.msra.mxu0 %v916
        %927 = vmatprep.subr.bf16.mxu0 0
        %928 = vmatpush1.bf16.msra.mxu0 0
        %929 = vmatprep.subr.bf16.mxu0 0
        %930 = vmatpush1.bf16.msra.mxu0 0
        %931 = vmatprep.subr.bf16.mxu0 0
        %932 = vmatpush1.bf16.msra.mxu0 0
        %933 = vmatprep.subr.bf16.mxu0 0
        %934 = vmatpush1.bf16.msra.mxu0 0
        %935 = vmatprep.subr.bf16.mxu0 0
        %936 = vmatpush1.bf16.msra.mxu0 0
        %937 = vmatprep.subr.bf16.mxu0 0
        %938 = vmatpush1.bf16.msra.mxu0 0
        %939 = vmatprep.subr.bf16.mxu0 0
        %940 = vmatpush1.bf16.msra.mxu0 0
        %941 = vmatprep.subr.bf16.mxu0 0
        %942 = vmatpush1.bf16.msra.mxu0 0
        %943 = vmatprep.subr.bf16.mxu0 0
        %944 = vmatpush1.bf16.msra.mxu0 0
        %945 = vmatprep.subr.bf16.mxu0 0
        %946 = vmatpush1.bf16.msra.mxu0 0
        %947 = vmatprep.subr.bf16.mxu0 0
        %948 = vmatpush1.bf16.msra.mxu0 0
        %949 = vmatprep.subr.bf16.mxu0 0
        %950 = vmatpush1.bf16.msra.mxu0 0
        %951 = vmatprep.subr.bf16.mxu0 0
        %952 = vmatpush1.bf16.msra.mxu0 0
        %953 = vmatprep.subr.bf16.mxu0 0
        %954 = vmatpush1.bf16.msra.mxu0 0
        %955 = vmatprep.mubr.bf16.mxu0 0
        %956 = vmatmul.mubr.bf16.gmra.mrb[0].mxu0 %v918
        %v957 = vpop.f32.mrb[0].mxu0
        %v958 = vadd.f32 0.0, %v957
        %v959 = vpop.f32.mrb[0].mxu0
        %v960 = vpop.f32.mrb[0].mxu0
        %v961 = vadd.f32 0.0, %v960
        %v962 = vpop.f32.mrb[0].mxu0
        %963 = vmatprep.mubr.bf16.mxu0 0
        %964 = vmatmul.mubr.bf16.gmra.mrb[0].mxu0 %v921
        %v965 = vpop.f32.mrb[0].mxu0
        %v966 = vadd.f32 0.0, %v965
        %v967 = vpop.f32.mrb[0].mxu0
        %v968 = vpop.f32.mrb[0].mxu0
        %v969 = vadd.f32 0.0, %v968
        %v970 = vpop.f32.mrb[0].mxu0
        %971 = vdwg.mxu0
        %v972 = vpack.c.bf16 %v961, %v958
        %v973 = vpack.c.bf16 %v969, %v966
        %v974 = vld [vmem:[%s6] sm:$0xf]
        %v975 = vld [vmem:[%s6 + $0x4] sm:$0xf]
        %s976 = scalar_lea.vmem %s3, 32
        %v977 = vld [vmem:[%s976] sm:$0xf]
        %v978 = vld [vmem:[%s976 + $0x4] sm:$0xf]
        %v979 = vld [vmem:[%s976 + $0x8] sm:$0xf]
        %v980 = vld [vmem:[%s976 + $0xc] sm:$0xf]
        %v981 = vld [vmem:[%s976 + $0x10] sm:$0xf]
        %v982 = vld [vmem:[%s976 + $0x14] sm:$0xf]
        %v983 = vld [vmem:[%s976 + $0x18] sm:$0xf]
        %v984 = vld [vmem:[%s976 + $0x1c] sm:$0xf]
        %v993 = vunpack.c.l.b16 %v977
        %v994 = vunpack.c.l.b16 %v978
        %v995 = vunpack.c.l.b16 %v979
        %v996 = vunpack.c.l.b16 %v980
        %v997 = vunpack.c.l.b16 %v981
        %v998 = vunpack.c.l.b16 %v982
        %v999 = vunpack.c.l.b16 %v983
        %v1000 = vunpack.c.l.b16 %v984
        %v1001 = vpack.c.b16 %v994, %v993
        %v1002 = vpack.c.b16 %v996, %v995
        %v1003 = vpack.c.b16 %v998, %v997
        %v1004 = vpack.c.b16 %v1000, %v999
        %1009 = vmatprep.subr.bf16.mxu0 0
        %1010 = vmatpush1.bf16.msra.mxu0 %v1001
        %1011 = vmatprep.subr.bf16.mxu0 0
        %1012 = vmatpush1.bf16.msra.mxu0 %v1002
        %1013 = vmatprep.subr.bf16.mxu0 0
        %1014 = vmatpush1.bf16.msra.mxu0 %v1003
        %1015 = vmatprep.subr.bf16.mxu0 0
        %1016 = vmatpush1.bf16.msra.mxu0 %v1004
        %1017 = vmatprep.subr.bf16.mxu0 0
        %1018 = vmatpush1.bf16.msra.mxu0 0
        %1019 = vmatprep.subr.bf16.mxu0 0
        %1020 = vmatpush1.bf16.msra.mxu0 0
        %1021 = vmatprep.subr.bf16.mxu0 0
        %1022 = vmatpush1.bf16.msra.mxu0 0
        %1023 = vmatprep.subr.bf16.mxu0 0
        %1024 = vmatpush1.bf16.msra.mxu0 0
        %1025 = vmatprep.subr.bf16.mxu0 0
        %1026 = vmatpush1.bf16.msra.mxu0 0
        %1027 = vmatprep.subr.bf16.mxu0 0
        %1028 = vmatpush1.bf16.msra.mxu0 0
        %1029 = vmatprep.subr.bf16.mxu0 0
        %1030 = vmatpush1.bf16.msra.mxu0 0
        %1031 = vmatprep.subr.bf16.mxu0 0
        %1032 = vmatpush1.bf16.msra.mxu0 0
        %1033 = vmatprep.subr.bf16.mxu0 0
        %1034 = vmatpush1.bf16.msra.mxu0 0
        %1035 = vmatprep.subr.bf16.mxu0 0
        %1036 = vmatpush1.bf16.msra.mxu0 0
        %1037 = vmatprep.subr.bf16.mxu0 0
        %1038 = vmatpush1.bf16.msra.mxu0 0
        %1039 = vmatprep.subr.bf16.mxu0 0
        %1040 = vmatpush1.bf16.msra.mxu0 0
        %1041 = vmatprep.mubr.bf16.mxu0 0
        %1042 = vmatmul.mubr.bf16.gmra.mrb[0].mxu0 %v582
        %v1043 = vpop.f32.mrb[0].mxu0
        %v1044 = vadd.f32 0.0, %v1043
        %v1045 = vpop.f32.mrb[0].mxu0
        %v1046 = vpop.f32.mrb[0].mxu0
        %v1047 = vadd.f32 0.0, %v1046
        %v1048 = vpop.f32.mrb[0].mxu0
        %1049 = vmatprep.mubr.bf16.mxu0 0
        %1050 = vmatmul.mubr.bf16.gmra.mrb[0].mxu0 %v585
        %v1051 = vpop.f32.mrb[0].mxu0
        %v1052 = vadd.f32 0.0, %v1051
        %v1053 = vpop.f32.mrb[0].mxu0
        %v1054 = vpop.f32.mrb[0].mxu0
        %v1055 = vadd.f32 0.0, %v1054
        %v1056 = vpop.f32.mrb[0].mxu0
        %1057 = vdwg.mxu0
        %s1058 = scalar_lea.vmem %s4, 32
        %v1059 = vld [vmem:[%s1058] sm:$0xf]
        %v1060 = vld [vmem:[%s1058 + $0x4] sm:$0xf]
        %v1061 = vld [vmem:[%s1058 + $0x8] sm:$0xf]
        %v1062 = vld [vmem:[%s1058 + $0xc] sm:$0xf]
        %v1063 = vld [vmem:[%s1058 + $0x10] sm:$0xf]
        %v1064 = vld [vmem:[%s1058 + $0x14] sm:$0xf]
        %v1065 = vld [vmem:[%s1058 + $0x18] sm:$0xf]
        %v1066 = vld [vmem:[%s1058 + $0x1c] sm:$0xf]
        %v1075 = vunpack.c.l.b16 %v1059
        %v1076 = vunpack.c.l.b16 %v1060
        %v1077 = vunpack.c.l.b16 %v1061
        %v1078 = vunpack.c.l.b16 %v1062
        %v1079 = vunpack.c.l.b16 %v1063
        %v1080 = vunpack.c.l.b16 %v1064
        %v1081 = vunpack.c.l.b16 %v1065
        %v1082 = vunpack.c.l.b16 %v1066
        %v1083 = vpack.c.b16 %v1076, %v1075
        %v1084 = vpack.c.b16 %v1078, %v1077
        %v1085 = vpack.c.b16 %v1080, %v1079
        %v1086 = vpack.c.b16 %v1082, %v1081
        %1091 = vmatprep.subr.bf16.mxu0 0
        %1092 = vmatpush1.bf16.msra.mxu0 %v1083
        %1093 = vmatprep.subr.bf16.mxu0 0
        %1094 = vmatpush1.bf16.msra.mxu0 %v1084
        %1095 = vmatprep.subr.bf16.mxu0 0
        %1096 = vmatpush1.bf16.msra.mxu0 %v1085
        %1097 = vmatprep.subr.bf16.mxu0 0
        %1098 = vmatpush1.bf16.msra.mxu0 %v1086
        %1099 = vmatprep.subr.bf16.mxu0 0
        %1100 = vmatpush1.bf16.msra.mxu0 0
        %1101 = vmatprep.subr.bf16.mxu0 0
        %1102 = vmatpush1.bf16.msra.mxu0 0
        %1103 = vmatprep.subr.bf16.mxu0 0
        %1104 = vmatpush1.bf16.msra.mxu0 0
        %1105 = vmatprep.subr.bf16.mxu0 0
        %1106 = vmatpush1.bf16.msra.mxu0 0
        %1107 = vmatprep.subr.bf16.mxu0 0
        %1108 = vmatpush1.bf16.msra.mxu0 0
        %1109 = vmatprep.subr.bf16.mxu0 0
        %1110 = vmatpush1.bf16.msra.mxu0 0
        %1111 = vmatprep.subr.bf16.mxu0 0
        %1112 = vmatpush1.bf16.msra.mxu0 0
        %1113 = vmatprep.subr.bf16.mxu0 0
        %1114 = vmatpush1.bf16.msra.mxu0 0
        %1115 = vmatprep.subr.bf16.mxu0 0
        %1116 = vmatpush1.bf16.msra.mxu0 0
        %1117 = vmatprep.subr.bf16.mxu0 0
        %1118 = vmatpush1.bf16.msra.mxu0 0
        %1119 = vmatprep.subr.bf16.mxu0 0
        %1120 = vmatpush1.bf16.msra.mxu0 0
        %1121 = vmatprep.subr.bf16.mxu0 0
        %1122 = vmatpush1.bf16.msra.mxu0 0
        %1123 = vmatprep.mubr.bf16.mxu0 0
        %1124 = vmatmul.mubr.bf16.gmra.mrb[0].mxu0 %v582
        %v1125 = vpop.f32.mrb[0].mxu0
        %v1126 = vadd.f32 0.0, %v1125
        %v1127 = vpop.f32.mrb[0].mxu0
        %v1128 = vpop.f32.mrb[0].mxu0
        %v1129 = vadd.f32 0.0, %v1128
        %v1130 = vpop.f32.mrb[0].mxu0
        %1131 = vmatprep.mubr.bf16.mxu0 0
        %1132 = vmatmul.mubr.bf16.gmra.mrb[0].mxu0 %v585
        %v1133 = vpop.f32.mrb[0].mxu0
        %v1134 = vadd.f32 0.0, %v1133
        %v1135 = vpop.f32.mrb[0].mxu0
        %v1136 = vpop.f32.mrb[0].mxu0
        %v1137 = vadd.f32 0.0, %v1136
        %v1138 = vpop.f32.mrb[0].mxu0
        %1139 = vdwg.mxu0
        %s1140 = scalar_lea.vmem %s5, 32
        %v1141 = vld [vmem:[%s1140] sm:$0xf]
        %v1142 = vld [vmem:[%s1140 + $0x4] sm:$0xf]
        %v1143 = vld [vmem:[%s1140 + $0x8] sm:$0xf]
        %v1144 = vld [vmem:[%s1140 + $0xc] sm:$0xf]
        %v1145 = vld [vmem:[%s1140 + $0x10] sm:$0xf]
        %v1146 = vld [vmem:[%s1140 + $0x14] sm:$0xf]
        %v1147 = vld [vmem:[%s1140 + $0x18] sm:$0xf]
        %v1148 = vld [vmem:[%s1140 + $0x1c] sm:$0xf]
        %v1157 = vunpack.c.l.b16 %v1141
        %v1158 = vunpack.c.l.b16 %v1142
        %v1159 = vunpack.c.l.b16 %v1143
        %v1160 = vunpack.c.l.b16 %v1144
        %v1161 = vunpack.c.l.b16 %v1145
        %v1162 = vunpack.c.l.b16 %v1146
        %v1163 = vunpack.c.l.b16 %v1147
        %v1164 = vunpack.c.l.b16 %v1148
        %v1165 = vpack.c.b16 %v1158, %v1157
        %v1166 = vpack.c.b16 %v1160, %v1159
        %v1167 = vpack.c.b16 %v1162, %v1161
        %v1168 = vpack.c.b16 %v1164, %v1163
        %1173 = vmatprep.subr.bf16.mxu0 0
        %1174 = vmatpush1.bf16.msra.mxu0 %v1165
        %1175 = vmatprep.subr.bf16.mxu0 0
        %1176 = vmatpush1.bf16.msra.mxu0 %v1166
        %1177 = vmatprep.subr.bf16.mxu0 0
        %1178 = vmatpush1.bf16.msra.mxu0 %v1167
        %1179 = vmatprep.subr.bf16.mxu0 0
        %1180 = vmatpush1.bf16.msra.mxu0 %v1168
        %1181 = vmatprep.subr.bf16.mxu0 0
        %1182 = vmatpush1.bf16.msra.mxu0 0
        %1183 = vmatprep.subr.bf16.mxu0 0
        %1184 = vmatpush1.bf16.msra.mxu0 0
        %1185 = vmatprep.subr.bf16.mxu0 0
        %1186 = vmatpush1.bf16.msra.mxu0 0
        %1187 = vmatprep.subr.bf16.mxu0 0
        %1188 = vmatpush1.bf16.msra.mxu0 0
        %1189 = vmatprep.subr.bf16.mxu0 0
        %1190 = vmatpush1.bf16.msra.mxu0 0
        %1191 = vmatprep.subr.bf16.mxu0 0
        %1192 = vmatpush1.bf16.msra.mxu0 0
        %1193 = vmatprep.subr.bf16.mxu0 0
        %1194 = vmatpush1.bf16.msra.mxu0 0
        %1195 = vmatprep.subr.bf16.mxu0 0
        %1196 = vmatpush1.bf16.msra.mxu0 0
        %1197 = vmatprep.subr.bf16.mxu0 0
        %1198 = vmatpush1.bf16.msra.mxu0 0
        %1199 = vmatprep.subr.bf16.mxu0 0
        %1200 = vmatpush1.bf16.msra.mxu0 0
        %1201 = vmatprep.subr.bf16.mxu0 0
        %1202 = vmatpush1.bf16.msra.mxu0 0
        %1203 = vmatprep.subr.bf16.mxu0 0
        %1204 = vmatpush1.bf16.msra.mxu0 0
        %1205 = vmatprep.mubr.bf16.mxu0 0
        %1206 = vmatmul.mubr.bf16.gmra.mrb[0].mxu0 %v582
        %v1207 = vpop.f32.mrb[0].mxu0
        %v1208 = vadd.f32 0.0, %v1207
        %v1209 = vpop.f32.mrb[0].mxu0
        %v1210 = vpop.f32.mrb[0].mxu0
        %v1211 = vadd.f32 0.0, %v1210
        %v1212 = vpop.f32.mrb[0].mxu0
        %1213 = vmatprep.mubr.bf16.mxu0 0
        %1214 = vmatmul.mubr.bf16.gmra.mrb[0].mxu0 %v585
        %v1215 = vpop.f32.mrb[0].mxu0
        %v1216 = vadd.f32 0.0, %v1215
        %v1217 = vpop.f32.mrb[0].mxu0
        %v1218 = vpop.f32.mrb[0].mxu0
        %v1219 = vadd.f32 0.0, %v1218
        %v1220 = vpop.f32.mrb[0].mxu0
        %1221 = vdwg.mxu0
        %v1222 = vpack.c.bf16 %v1047, %v1044
        %v1223 = vpack.c.bf16 %v1055, %v1052
        %v1224 = vpack.c.bf16 %v1129, %v1126
        %v1225 = vpack.c.bf16 %v1137, %v1134
        %v1227 = vsel %vm802, %v1222, 0
        %v1230 = vsel %vm802, %v1223, 0
        %v1233 = vsel %vm802, %v1224, 0
        %v1236 = vsel %vm802, %v1225, 0
        %1238 = vmatprep.subr.bf16.mxu0 0
        %1239 = vmatpush1.bf16.xpose.msra.mxu0 %v1233
        %1240 = vmatprep.subr.bf16.mxu0 0
        %1241 = vmatpush1.bf16.xpose.msra.mxu0 %v1236
        %1242 = vmatprep.subr.bf16.mxu0 0
        %1243 = vmatpush1.bf16.xpose.msra.mxu0 0
        %1244 = vmatprep.subr.bf16.mxu0 0
        %1245 = vmatpush1.bf16.xpose.msra.mxu0 0
        %1246 = vmatprep.subr.bf16.mxu0 0
        %1247 = vmatpush1.bf16.xpose.msra.mxu0 0
        %1248 = vmatprep.subr.bf16.mxu0 0
        %1249 = vmatpush1.bf16.xpose.msra.mxu0 0
        %1250 = vmatprep.subr.bf16.mxu0 0
        %1251 = vmatpush1.bf16.xpose.msra.mxu0 0
        %1252 = vmatprep.subr.bf16.mxu0 0
        %1253 = vmatpush1.bf16.xpose.msra.mxu0 0
        %1254 = vmatprep.subr.bf16.mxu0 0
        %1255 = vmatpush1.bf16.xpose.msra.mxu0 0
        %1256 = vmatprep.subr.bf16.mxu0 0
        %1257 = vmatpush1.bf16.xpose.msra.mxu0 0
        %1258 = vmatprep.subr.bf16.mxu0 0
        %1259 = vmatpush1.bf16.xpose.msra.mxu0 0
        %1260 = vmatprep.subr.bf16.mxu0 0
        %1261 = vmatpush1.bf16.xpose.msra.mxu0 0
        %1262 = vmatprep.subr.bf16.mxu0 0
        %1263 = vmatpush1.bf16.xpose.msra.mxu0 0
        %1264 = vmatprep.subr.bf16.mxu0 0
        %1265 = vmatpush1.bf16.xpose.msra.mxu0 0
        %1266 = vmatprep.subr.bf16.mxu0 0
        %1267 = vmatpush1.bf16.xpose.msra.mxu0 0
        %1268 = vmatprep.subr.bf16.mxu0 0
        %1269 = vmatpush1.bf16.xpose.msra.mxu0 0
        %1270 = vmatprep.mubr.bf16.mxu0 0
        %1271 = vmatmul.mubr.bf16.gmra.mrb[0].mxu0 %v1227
        %v1272 = vpop.f32.mrb[0].mxu0
        %v1273 = vadd.f32 0.0, %v1272
        %v1274 = vpop.f32.mrb[0].mxu0
        %v1275 = vpop.f32.mrb[0].mxu0
        %v1276 = vadd.f32 0.0, %v1275
        %v1277 = vpop.f32.mrb[0].mxu0
        %1278 = vmatprep.mubr.bf16.mxu0 0
        %1279 = vmatmul.mubr.bf16.gmra.mrb[0].mxu0 %v1230
        %v1280 = vpop.f32.mrb[0].mxu0
        %v1281 = vadd.f32 0.0, %v1280
        %v1282 = vpop.f32.mrb[0].mxu0
        %v1283 = vpop.f32.mrb[0].mxu0
        %v1284 = vadd.f32 0.0, %v1283
        %v1285 = vpop.f32.mrb[0].mxu0
        %1286 = vdwg.mxu0
        %v1287 = vmul.f32 %v1273, 0.25
        %v1288 = vmul.f32 %v1276, 0.25
        %v1289 = vmul.f32 %v1281, 0.25
        %v1290 = vmul.f32 %v1284, 0.25
        %v1291 = vsel %vm868, %v1287, -inf
        %1292 = vmax.xlane.f32.xlu0 %v1291
        %v1293 = vpop.xlane.xlu0 %1292
        %v1294 = vsel %vm868, %v1288, -inf
        %1295 = vmax.xlane.f32.xlu0 %v1294
        %v1296 = vpop.xlane.xlu0 %1295
        %v1297 = vsel %vm868, %v1289, -inf
        %1298 = vmax.xlane.f32.xlu0 %v1297
        %v1299 = vpop.xlane.xlu0 %1298
        %v1300 = vsel %vm868, %v1290, -inf
        %1301 = vmax.xlane.f32.xlu0 %v1300
        %v1302 = vpop.xlane.xlu0 %1301
        %v1303 = vsub.f32 %v1287, %v1293
        %v1304 = vsub.f32 %v1288, %v1296
        %v1305 = vsub.f32 %v1289, %v1299
        %v1306 = vsub.f32 %v1290, %v1302
        %v1307 = vmul.f32 %v1303, 1.442695
        %v1308 = vpow.pop %v1307
        %v1309 = vmul.f32 %v1304, 1.442695
        %v1310 = vpow.pop %v1309
        %v1311 = vmul.f32 %v1305, 1.442695
        %v1312 = vpow.pop %v1311
        %v1313 = vmul.f32 %v1306, 1.442695
        %v1314 = vpow.pop %v1313
        %v1315 = vsel %vm868, %v1308, 0.0
        %1316 = vadd.xlane.f32.xlu0 %v1315
        %v1317 = vpop.xlane.xlu0 %1316
        %v1318 = vsel %vm868, %v1310, 0.0
        %1319 = vadd.xlane.f32.xlu0 %v1318
        %v1320 = vpop.xlane.xlu0 %1319
        %v1321 = vsel %vm868, %v1312, 0.0
        %1322 = vadd.xlane.f32.xlu0 %v1321
        %v1323 = vpop.xlane.xlu0 %1322
        %v1324 = vsel %vm868, %v1314, 0.0
        %1325 = vadd.xlane.f32.xlu0 %v1324
        %v1326 = vpop.xlane.xlu0 %1325
        %v1327 = vrcp.pop %v1317
        %v1328 = vmul.f32 %v1308, %v1327
        %v1329 = vrcp.pop %v1320
        %v1330 = vmul.f32 %v1310, %v1329
        %v1331 = vrcp.pop %v1323
        %v1332 = vmul.f32 %v1312, %v1331
        %v1333 = vrcp.pop %v1326
        %v1334 = vmul.f32 %v1314, %v1333
        %v1335 = vpack.c.bf16 %v1330, %v1328
        %v1336 = vpack.c.bf16 %v1334, %v1332
        %v1337 = vpack.c.bf16 %v1211, %v1208
        %v1338 = vpack.c.bf16 %v1219, %v1216
        %v1340 = vsel %vm868, %v1335, 0
        %v1343 = vsel %vm868, %v1336, 0
        %1345 = vmatprep.subr.bf16.mxu0 0
        %1346 = vmatpush1.bf16.msra.mxu0 %v1337
        %1347 = vmatprep.subr.bf16.mxu0 0
        %1348 = vmatpush1.bf16.msra.mxu0 %v1338
        %1349 = vmatprep.subr.bf16.mxu0 0
        %1350 = vmatpush1.bf16.msra.mxu0 0
        %1351 = vmatprep.subr.bf16.mxu0 0
        %1352 = vmatpush1.bf16.msra.mxu0 0
        %1353 = vmatprep.subr.bf16.mxu0 0
        %1354 = vmatpush1.bf16.msra.mxu0 0
        %1355 = vmatprep.subr.bf16.mxu0 0
        %1356 = vmatpush1.bf16.msra.mxu0 0
        %1357 = vmatprep.subr.bf16.mxu0 0
        %1358 = vmatpush1.bf16.msra.mxu0 0
        %1359 = vmatprep.subr.bf16.mxu0 0
        %1360 = vmatpush1.bf16.msra.mxu0 0
        %1361 = vmatprep.subr.bf16.mxu0 0
        %1362 = vmatpush1.bf16.msra.mxu0 0
        %1363 = vmatprep.subr.bf16.mxu0 0
        %1364 = vmatpush1.bf16.msra.mxu0 0
        %1365 = vmatprep.subr.bf16.mxu0 0
        %1366 = vmatpush1.bf16.msra.mxu0 0
        %1367 = vmatprep.subr.bf16.mxu0 0
        %1368 = vmatpush1.bf16.msra.mxu0 0
        %1369 = vmatprep.subr.bf16.mxu0 0
        %1370 = vmatpush1.bf16.msra.mxu0 0
        %1371 = vmatprep.subr.bf16.mxu0 0
        %1372 = vmatpush1.bf16.msra.mxu0 0
        %1373 = vmatprep.subr.bf16.mxu0 0
        %1374 = vmatpush1.bf16.msra.mxu0 0
        %1375 = vmatprep.subr.bf16.mxu0 0
        %1376 = vmatpush1.bf16.msra.mxu0 0
        %1377 = vmatprep.mubr.bf16.mxu0 0
        %1378 = vmatmul.mubr.bf16.gmra.mrb[0].mxu0 %v1340
        %v1379 = vpop.f32.mrb[0].mxu0
        %v1380 = vadd.f32 0.0, %v1379
        %v1381 = vpop.f32.mrb[0].mxu0
        %v1382 = vpop.f32.mrb[0].mxu0
        %v1383 = vadd.f32 0.0, %v1382
        %v1384 = vpop.f32.mrb[0].mxu0
        %1385 = vmatprep.mubr.bf16.mxu0 0
        %1386 = vmatmul.mubr.bf16.gmra.mrb[0].mxu0 %v1343
        %v1387 = vpop.f32.mrb[0].mxu0
        %v1388 = vadd.f32 0.0, %v1387
        %v1389 = vpop.f32.mrb[0].mxu0
        %v1390 = vpop.f32.mrb[0].mxu0
        %v1391 = vadd.f32 0.0, %v1390
        %v1392 = vpop.f32.mrb[0].mxu0
        %1393 = vdwg.mxu0
        %v1394 = vpack.c.bf16 %v1383, %v1380
        %v1395 = vpack.c.bf16 %v1391, %v1388
        %s1396 = scalar_lea.vmem %s6, 8
        %v1397 = vld [vmem:[%s1396] sm:$0xf]
        %v1398 = vld [vmem:[%s1396 + $0x4] sm:$0xf]
        %v1401 = vunpack.c.l.b16 %v1397
        %v1402 = vunpack.c.l.b16 %v1398
        %v1403 = vpack.c.b16 %v1402, %v1401
        %v1406 = vsel %vm802, %v1394, 0
        %v1409 = vsel %vm802, %v1395, 0
        %1411 = vmatprep.subr.bf16.mxu0 0
        %1412 = vmatpush1.bf16.msra.mxu0 %v1403
        %1413 = vmatprep.subr.bf16.mxu0 0
        %1414 = vmatpush1.bf16.msra.mxu0 0
        %1415 = vmatprep.subr.bf16.mxu0 0
        %1416 = vmatpush1.bf16.msra.mxu0 0
        %1417 = vmatprep.subr.bf16.mxu0 0
        %1418 = vmatpush1.bf16.msra.mxu0 0
        %1419 = vmatprep.subr.bf16.mxu0 0
        %1420 = vmatpush1.bf16.msra.mxu0 0
        %1421 = vmatprep.subr.bf16.mxu0 0
        %1422 = vmatpush1.bf16.msra.mxu0 0
        %1423 = vmatprep.subr.bf16.mxu0 0
        %1424 = vmatpush1.bf16.msra.mxu0 0
        %1425 = vmatprep.subr.bf16.mxu0 0
        %1426 = vmatpush1.bf16.msra.mxu0 0
        %1427 = vmatprep.subr.bf16.mxu0 0
        %1428 = vmatpush1.bf16.msra.mxu0 0
        %1429 = vmatprep.subr.bf16.mxu0 0
        %1430 = vmatpush1.bf16.msra.mxu0 0
        %1431 = vmatprep.subr.bf16.mxu0 0
        %1432 = vmatpush1.bf16.msra.mxu0 0
        %1433 = vmatprep.subr.bf16.mxu0 0
        %1434 = vmatpush1.bf16.msra.mxu0 0
        %1435 = vmatprep.subr.bf16.mxu0 0
        %1436 = vmatpush1.bf16.msra.mxu0 0
        %1437 = vmatprep.subr.bf16.mxu0 0
        %1438 = vmatpush1.bf16.msra.mxu0 0
        %1439 = vmatprep.subr.bf16.mxu0 0
        %1440 = vmatpush1.bf16.msra.mxu0 0
        %1441 = vmatprep.subr.bf16.mxu0 0
        %1442 = vmatpush1.bf16.msra.mxu0 0
        %1443 = vmatprep.mubr.bf16.mxu0 0
        %1444 = vmatmul.mubr.bf16.gmra.mrb[0].mxu0 %v1406
        %v1445 = vpop.f32.mrb[0].mxu0
        %v1446 = vadd.f32 0.0, %v1445
        %v1447 = vpop.f32.mrb[0].mxu0
        %v1448 = vpop.f32.mrb[0].mxu0
        %v1449 = vadd.f32 0.0, %v1448
        %v1450 = vpop.f32.mrb[0].mxu0
        %1451 = vmatprep.mubr.bf16.mxu0 0
        %1452 = vmatmul.mubr.bf16.gmra.mrb[0].mxu0 %v1409
        %v1453 = vpop.f32.mrb[0].mxu0
        %v1454 = vadd.f32 0.0, %v1453
        %v1455 = vpop.f32.mrb[0].mxu0
        %v1456 = vpop.f32.mrb[0].mxu0
        %v1457 = vadd.f32 0.0, %v1456
        %v1458 = vpop.f32.mrb[0].mxu0
        %1459 = vdwg.mxu0
        %v1462 = vunpack.c.l.b16 %v974
        %v1463 = vunpack.c.l.b16 %v975
        %v1464 = vpack.c.b16 %v1463, %v1462
        %v1467 = vsel %vm802, %v972, 0
        %v1470 = vsel %vm802, %v973, 0
        %1472 = vmatprep.subr.bf16.mxu0 0
        %1473 = vmatpush1.bf16.msra.mxu0 %v1464
        %1474 = vmatprep.subr.bf16.mxu0 0
        %1475 = vmatpush1.bf16.msra.mxu0 0
        %1476 = vmatprep.subr.bf16.mxu0 0
        %1477 = vmatpush1.bf16.msra.mxu0 0
        %1478 = vmatprep.subr.bf16.mxu0 0
        %1479 = vmatpush1.bf16.msra.mxu0 0
        %1480 = vmatprep.subr.bf16.mxu0 0
        %1481 = vmatpush1.bf16.msra.mxu0 0
        %1482 = vmatprep.subr.bf16.mxu0 0
        %1483 = vmatpush1.bf16.msra.mxu0 0
        %1484 = vmatprep.subr.bf16.mxu0 0
        %1485 = vmatpush1.bf16.msra.mxu0 0
        %1486 = vmatprep.subr.bf16.mxu0 0
        %1487 = vmatpush1.bf16.msra.mxu0 0
        %1488 = vmatprep.subr.bf16.mxu0 0
        %1489 = vmatpush1.bf16.msra.mxu0 0
        %1490 = vmatprep.subr.bf16.mxu0 0
        %1491 = vmatpush1.bf16.msra.mxu0 0
        %1492 = vmatprep.subr.bf16.mxu0 0
        %1493 = vmatpush1.bf16.msra.mxu0 0
        %1494 = vmatprep.subr.bf16.mxu0 0
        %1495 = vmatpush1.bf16.msra.mxu0 0
        %1496 = vmatprep.subr.bf16.mxu0 0
        %1497 = vmatpush1.bf16.msra.mxu0 0
        %1498 = vmatprep.subr.bf16.mxu0 0
        %1499 = vmatpush1.bf16.msra.mxu0 0
        %1500 = vmatprep.subr.bf16.mxu0 0
        %1501 = vmatpush1.bf16.msra.mxu0 0
        %1502 = vmatprep.subr.bf16.mxu0 0
        %1503 = vmatpush1.bf16.msra.mxu0 0
        %1504 = vmatprep.mubr.bf16.mxu0 0
        %1505 = vmatmul.mubr.bf16.gmra.mrb[0].mxu0 %v1467
        %v1506 = vpop.f32.mrb[0].mxu0
        %v1507 = vadd.f32 %v1446, %v1506
        %v1508 = vpop.f32.mrb[0].mxu0
        %v1509 = vpop.f32.mrb[0].mxu0
        %v1510 = vadd.f32 %v1449, %v1509
        %v1511 = vpop.f32.mrb[0].mxu0
        %1512 = vmatprep.mubr.bf16.mxu0 0
        %1513 = vmatmul.mubr.bf16.gmra.mrb[0].mxu0 %v1470
        %v1514 = vpop.f32.mrb[0].mxu0
        %v1515 = vadd.f32 %v1454, %v1514
        %v1516 = vpop.f32.mrb[0].mxu0
        %v1517 = vpop.f32.mrb[0].mxu0
        %v1518 = vadd.f32 %v1457, %v1517
        %v1519 = vpop.f32.mrb[0].mxu0
        %1520 = vdwg.mxu0
        %s1521 = scalar_lea.vmem %s3, 64
        %v1522 = vld [vmem:[%s1521] sm:$0xf]
        %v1523 = vld [vmem:[%s1521 + $0x4] sm:$0xf]
        %v1524 = vld [vmem:[%s1521 + $0x8] sm:$0xf]
        %v1525 = vld [vmem:[%s1521 + $0xc] sm:$0xf]
        %v1526 = vld [vmem:[%s1521 + $0x10] sm:$0xf]
        %v1527 = vld [vmem:[%s1521 + $0x14] sm:$0xf]
        %v1528 = vld [vmem:[%s1521 + $0x18] sm:$0xf]
        %v1529 = vld [vmem:[%s1521 + $0x1c] sm:$0xf]
        %v1538 = vunpack.c.l.b16 %v1522
        %v1539 = vunpack.c.l.b16 %v1523
        %v1540 = vunpack.c.l.b16 %v1524
        %v1541 = vunpack.c.l.b16 %v1525
        %v1542 = vunpack.c.l.b16 %v1526
        %v1543 = vunpack.c.l.b16 %v1527
        %v1544 = vunpack.c.l.b16 %v1528
        %v1545 = vunpack.c.l.b16 %v1529
        %v1546 = vpack.c.b16 %v1539, %v1538
        %v1547 = vpack.c.b16 %v1541, %v1540
        %v1548 = vpack.c.b16 %v1543, %v1542
        %v1549 = vpack.c.b16 %v1545, %v1544
        %1554 = vmatprep.subr.bf16.mxu0 0
        %1555 = vmatpush1.bf16.msra.mxu0 %v1546
        %1556 = vmatprep.subr.bf16.mxu0 0
        %1557 = vmatpush1.bf16.msra.mxu0 %v1547
        %1558 = vmatprep.subr.bf16.mxu0 0
        %1559 = vmatpush1.bf16.msra.mxu0 %v1548
        %1560 = vmatprep.subr.bf16.mxu0 0
        %1561 = vmatpush1.bf16.msra.mxu0 %v1549
        %1562 = vmatprep.subr.bf16.mxu0 0
        %1563 = vmatpush1.bf16.msra.mxu0 0
        %1564 = vmatprep.subr.bf16.mxu0 0
        %1565 = vmatpush1.bf16.msra.mxu0 0
        %1566 = vmatprep.subr.bf16.mxu0 0
        %1567 = vmatpush1.bf16.msra.mxu0 0
        %1568 = vmatprep.subr.bf16.mxu0 0
        %1569 = vmatpush1.bf16.msra.mxu0 0
        %1570 = vmatprep.subr.bf16.mxu0 0
        %1571 = vmatpush1.bf16.msra.mxu0 0
        %1572 = vmatprep.subr.bf16.mxu0 0
        %1573 = vmatpush1.bf16.msra.mxu0 0
        %1574 = vmatprep.subr.bf16.mxu0 0
        %1575 = vmatpush1.bf16.msra.mxu0 0
        %1576 = vmatprep.subr.bf16.mxu0 0
        %1577 = vmatpush1.bf16.msra.mxu0 0
        %1578 = vmatprep.subr.bf16.mxu0 0
        %1579 = vmatpush1.bf16.msra.mxu0 0
        %1580 = vmatprep.subr.bf16.mxu0 0
        %1581 = vmatpush1.bf16.msra.mxu0 0
        %1582 = vmatprep.subr.bf16.mxu0 0
        %1583 = vmatpush1.bf16.msra.mxu0 0
        %1584 = vmatprep.subr.bf16.mxu0 0
        %1585 = vmatpush1.bf16.msra.mxu0 0
        %1586 = vmatprep.mubr.bf16.mxu0 0
        %1587 = vmatmul.mubr.bf16.gmra.mrb[0].mxu0 %v582
        %v1588 = vpop.f32.mrb[0].mxu0
        %v1589 = vadd.f32 0.0, %v1588
        %v1590 = vpop.f32.mrb[0].mxu0
        %v1591 = vpop.f32.mrb[0].mxu0
        %v1592 = vadd.f32 0.0, %v1591
        %v1593 = vpop.f32.mrb[0].mxu0
        %1594 = vmatprep.mubr.bf16.mxu0 0
        %1595 = vmatmul.mubr.bf16.gmra.mrb[0].mxu0 %v585
        %v1596 = vpop.f32.mrb[0].mxu0
        %v1597 = vadd.f32 0.0, %v1596
        %v1598 = vpop.f32.mrb[0].mxu0
        %v1599 = vpop.f32.mrb[0].mxu0
        %v1600 = vadd.f32 0.0, %v1599
        %v1601 = vpop.f32.mrb[0].mxu0
        %1602 = vdwg.mxu0
        %s1603 = scalar_lea.vmem %s4, 64
        %v1604 = vld [vmem:[%s1603] sm:$0xf]
        %v1605 = vld [vmem:[%s1603 + $0x4] sm:$0xf]
        %v1606 = vld [vmem:[%s1603 + $0x8] sm:$0xf]
        %v1607 = vld [vmem:[%s1603 + $0xc] sm:$0xf]
        %v1608 = vld [vmem:[%s1603 + $0x10] sm:$0xf]
        %v1609 = vld [vmem:[%s1603 + $0x14] sm:$0xf]
        %v1610 = vld [vmem:[%s1603 + $0x18] sm:$0xf]
        %v1611 = vld [vmem:[%s1603 + $0x1c] sm:$0xf]
        %v1620 = vunpack.c.l.b16 %v1604
        %v1621 = vunpack.c.l.b16 %v1605
        %v1622 = vunpack.c.l.b16 %v1606
        %v1623 = vunpack.c.l.b16 %v1607
        %v1624 = vunpack.c.l.b16 %v1608
        %v1625 = vunpack.c.l.b16 %v1609
        %v1626 = vunpack.c.l.b16 %v1610
        %v1627 = vunpack.c.l.b16 %v1611
        %v1628 = vpack.c.b16 %v1621, %v1620
        %v1629 = vpack.c.b16 %v1623, %v1622
        %v1630 = vpack.c.b16 %v1625, %v1624
        %v1631 = vpack.c.b16 %v1627, %v1626
        %1636 = vmatprep.subr.bf16.mxu0 0
        %1637 = vmatpush1.bf16.msra.mxu0 %v1628
        %1638 = vmatprep.subr.bf16.mxu0 0
        %1639 = vmatpush1.bf16.msra.mxu0 %v1629
        %1640 = vmatprep.subr.bf16.mxu0 0
        %1641 = vmatpush1.bf16.msra.mxu0 %v1630
        %1642 = vmatprep.subr.bf16.mxu0 0
        %1643 = vmatpush1.bf16.msra.mxu0 %v1631
        %1644 = vmatprep.subr.bf16.mxu0 0
        %1645 = vmatpush1.bf16.msra.mxu0 0
        %1646 = vmatprep.subr.bf16.mxu0 0
        %1647 = vmatpush1.bf16.msra.mxu0 0
        %1648 = vmatprep.subr.bf16.mxu0 0
        %1649 = vmatpush1.bf16.msra.mxu0 0
        %1650 = vmatprep.subr.bf16.mxu0 0
        %1651 = vmatpush1.bf16.msra.mxu0 0
        %1652 = vmatprep.subr.bf16.mxu0 0
        %1653 = vmatpush1.bf16.msra.mxu0 0
        %1654 = vmatprep.subr.bf16.mxu0 0
        %1655 = vmatpush1.bf16.msra.mxu0 0
        %1656 = vmatprep.subr.bf16.mxu0 0
        %1657 = vmatpush1.bf16.msra.mxu0 0
        %1658 = vmatprep.subr.bf16.mxu0 0
        %1659 = vmatpush1.bf16.msra.mxu0 0
        %1660 = vmatprep.subr.bf16.mxu0 0
        %1661 = vmatpush1.bf16.msra.mxu0 0
        %1662 = vmatprep.subr.bf16.mxu0 0
        %1663 = vmatpush1.bf16.msra.mxu0 0
        %1664 = vmatprep.subr.bf16.mxu0 0
        %1665 = vmatpush1.bf16.msra.mxu0 0
        %1666 = vmatprep.subr.bf16.mxu0 0
        %1667 = vmatpush1.bf16.msra.mxu0 0
        %1668 = vmatprep.mubr.bf16.mxu0 0
        %1669 = vmatmul.mubr.bf16.gmra.mrb[0].mxu0 %v582
        %v1670 = vpop.f32.mrb[0].mxu0
        %v1671 = vadd.f32 0.0, %v1670
        %v1672 = vpop.f32.mrb[0].mxu0
        %v1673 = vpop.f32.mrb[0].mxu0
        %v1674 = vadd.f32 0.0, %v1673
        %v1675 = vpop.f32.mrb[0].mxu0
        %1676 = vmatprep.mubr.bf16.mxu0 0
        %1677 = vmatmul.mubr.bf16.gmra.mrb[0].mxu0 %v585
        %v1678 = vpop.f32.mrb[0].mxu0
        %v1679 = vadd.f32 0.0, %v1678
        %v1680 = vpop.f32.mrb[0].mxu0
        %v1681 = vpop.f32.mrb[0].mxu0
        %v1682 = vadd.f32 0.0, %v1681
        %v1683 = vpop.f32.mrb[0].mxu0
        %1684 = vdwg.mxu0
        %s1685 = scalar_lea.vmem %s5, 64
        %v1686 = vld [vmem:[%s1685] sm:$0xf]
        %v1687 = vld [vmem:[%s1685 + $0x4] sm:$0xf]
        %v1688 = vld [vmem:[%s1685 + $0x8] sm:$0xf]
        %v1689 = vld [vmem:[%s1685 + $0xc] sm:$0xf]
        %v1690 = vld [vmem:[%s1685 + $0x10] sm:$0xf]
        %v1691 = vld [vmem:[%s1685 + $0x14] sm:$0xf]
        %v1692 = vld [vmem:[%s1685 + $0x18] sm:$0xf]
        %v1693 = vld [vmem:[%s1685 + $0x1c] sm:$0xf]
        %v1702 = vunpack.c.l.b16 %v1686
        %v1703 = vunpack.c.l.b16 %v1687
        %v1704 = vunpack.c.l.b16 %v1688
        %v1705 = vunpack.c.l.b16 %v1689
        %v1706 = vunpack.c.l.b16 %v1690
        %v1707 = vunpack.c.l.b16 %v1691
        %v1708 = vunpack.c.l.b16 %v1692
        %v1709 = vunpack.c.l.b16 %v1693
        %v1710 = vpack.c.b16 %v1703, %v1702
        %v1711 = vpack.c.b16 %v1705, %v1704
        %v1712 = vpack.c.b16 %v1707, %v1706
        %v1713 = vpack.c.b16 %v1709, %v1708
        %1718 = vmatprep.subr.bf16.mxu0 0
        %1719 = vmatpush1.bf16.msra.mxu0 %v1710
        %1720 = vmatprep.subr.bf16.mxu0 0
        %1721 = vmatpush1.bf16.msra.mxu0 %v1711
        %1722 = vmatprep.subr.bf16.mxu0 0
        %1723 = vmatpush1.bf16.msra.mxu0 %v1712
        %1724 = vmatprep.subr.bf16.mxu0 0
        %1725 = vmatpush1.bf16.msra.mxu0 %v1713
        %1726 = vmatprep.subr.bf16.mxu0 0
        %1727 = vmatpush1.bf16.msra.mxu0 0
        %1728 = vmatprep.subr.bf16.mxu0 0
        %1729 = vmatpush1.bf16.msra.mxu0 0
        %1730 = vmatprep.subr.bf16.mxu0 0
        %1731 = vmatpush1.bf16.msra.mxu0 0
        %1732 = vmatprep.subr.bf16.mxu0 0
        %1733 = vmatpush1.bf16.msra.mxu0 0
        %1734 = vmatprep.subr.bf16.mxu0 0
        %1735 = vmatpush1.bf16.msra.mxu0 0
        %1736 = vmatprep.subr.bf16.mxu0 0
        %1737 = vmatpush1.bf16.msra.mxu0 0
        %1738 = vmatprep.subr.bf16.mxu0 0
        %1739 = vmatpush1.bf16.msra.mxu0 0
        %1740 = vmatprep.subr.bf16.mxu0 0
        %1741 = vmatpush1.bf16.msra.mxu0 0
        %1742 = vmatprep.subr.bf16.mxu0 0
        %1743 = vmatpush1.bf16.msra.mxu0 0
        %1744 = vmatprep.subr.bf16.mxu0 0
        %1745 = vmatpush1.bf16.msra.mxu0 0
        %1746 = vmatprep.subr.bf16.mxu0 0
        %1747 = vmatpush1.bf16.msra.mxu0 0
        %1748 = vmatprep.subr.bf16.mxu0 0
        %1749 = vmatpush1.bf16.msra.mxu0 0
        %1750 = vmatprep.mubr.bf16.mxu0 0
        %1751 = vmatmul.mubr.bf16.gmra.mrb[0].mxu0 %v582
        %v1752 = vpop.f32.mrb[0].mxu0
        %v1753 = vadd.f32 0.0, %v1752
        %v1754 = vpop.f32.mrb[0].mxu0
        %v1755 = vpop.f32.mrb[0].mxu0
        %v1756 = vadd.f32 0.0, %v1755
        %v1757 = vpop.f32.mrb[0].mxu0
        %1758 = vmatprep.mubr.bf16.mxu0 0
        %1759 = vmatmul.mubr.bf16.gmra.mrb[0].mxu0 %v585
        %v1760 = vpop.f32.mrb[0].mxu0
        %v1761 = vadd.f32 0.0, %v1760
        %v1762 = vpop.f32.mrb[0].mxu0
        %v1763 = vpop.f32.mrb[0].mxu0
        %v1764 = vadd.f32 0.0, %v1763
        %v1765 = vpop.f32.mrb[0].mxu0
        %1766 = vdwg.mxu0
        %v1767 = vpack.c.bf16 %v1592, %v1589
        %v1768 = vpack.c.bf16 %v1600, %v1597
        %v1769 = vpack.c.bf16 %v1674, %v1671
        %v1770 = vpack.c.bf16 %v1682, %v1679
        %v1772 = vsel %vm802, %v1767, 0
        %v1775 = vsel %vm802, %v1768, 0
        %v1778 = vsel %vm802, %v1769, 0
        %v1781 = vsel %vm802, %v1770, 0
        %1783 = vmatprep.subr.bf16.mxu0 0
        %1784 = vmatpush1.bf16.xpose.msra.mxu0 %v1778
        %1785 = vmatprep.subr.bf16.mxu0 0
        %1786 = vmatpush1.bf16.xpose.msra.mxu0 %v1781
        %1787 = vmatprep.subr.bf16.mxu0 0
        %1788 = vmatpush1.bf16.xpose.msra.mxu0 0
        %1789 = vmatprep.subr.bf16.mxu0 0
        %1790 = vmatpush1.bf16.xpose.msra.mxu0 0
        %1791 = vmatprep.subr.bf16.mxu0 0
        %1792 = vmatpush1.bf16.xpose.msra.mxu0 0
        %1793 = vmatprep.subr.bf16.mxu0 0
        %1794 = vmatpush1.bf16.xpose.msra.mxu0 0
        %1795 = vmatprep.subr.bf16.mxu0 0
        %1796 = vmatpush1.bf16.xpose.msra.mxu0 0
        %1797 = vmatprep.subr.bf16.mxu0 0
        %1798 = vmatpush1.bf16.xpose.msra.mxu0 0
        %1799 = vmatprep.subr.bf16.mxu0 0
        %1800 = vmatpush1.bf16.xpose.msra.mxu0 0
        %1801 = vmatprep.subr.bf16.mxu0 0
        %1802 = vmatpush1.bf16.xpose.msra.mxu0 0
        %1803 = vmatprep.subr.bf16.mxu0 0
        %1804 = vmatpush1.bf16.xpose.msra.mxu0 0
        %1805 = vmatprep.subr.bf16.mxu0 0
        %1806 = vmatpush1.bf16.xpose.msra.mxu0 0
        %1807 = vmatprep.subr.bf16.mxu0 0
        %1808 = vmatpush1.bf16.xpose.msra.mxu0 0
        %1809 = vmatprep.subr.bf16.mxu0 0
        %1810 = vmatpush1.bf16.xpose.msra.mxu0 0
        %1811 = vmatprep.subr.bf16.mxu0 0
        %1812 = vmatpush1.bf16.xpose.msra.mxu0 0
        %1813 = vmatprep.subr.bf16.mxu0 0
        %1814 = vmatpush1.bf16.xpose.msra.mxu0 0
        %1815 = vmatprep.mubr.bf16.mxu0 0
        %1816 = vmatmul.mubr.bf16.gmra.mrb[0].mxu0 %v1772
        %v1817 = vpop.f32.mrb[0].mxu0
        %v1818 = vadd.f32 0.0, %v1817
        %v1819 = vpop.f32.mrb[0].mxu0
        %v1820 = vpop.f32.mrb[0].mxu0
        %v1821 = vadd.f32 0.0, %v1820
        %v1822 = vpop.f32.mrb[0].mxu0
        %1823 = vmatprep.mubr.bf16.mxu0 0
        %1824 = vmatmul.mubr.bf16.gmra.mrb[0].mxu0 %v1775
        %v1825 = vpop.f32.mrb[0].mxu0
        %v1826 = vadd.f32 0.0, %v1825
        %v1827 = vpop.f32.mrb[0].mxu0
        %v1828 = vpop.f32.mrb[0].mxu0
        %v1829 = vadd.f32 0.0, %v1828
        %v1830 = vpop.f32.mrb[0].mxu0
        %1831 = vdwg.mxu0
        %v1832 = vmul.f32 %v1818, 0.25
        %v1833 = vmul.f32 %v1821, 0.25
        %v1834 = vmul.f32 %v1826, 0.25
        %v1835 = vmul.f32 %v1829, 0.25
        %v1836 = vsel %vm868, %v1832, -inf
        %1837 = vmax.xlane.f32.xlu0 %v1836
        %v1838 = vpop.xlane.xlu0 %1837
        %v1839 = vsel %vm868, %v1833, -inf
        %1840 = vmax.xlane.f32.xlu0 %v1839
        %v1841 = vpop.xlane.xlu0 %1840
        %v1842 = vsel %vm868, %v1834, -inf
        %1843 = vmax.xlane.f32.xlu0 %v1842
        %v1844 = vpop.xlane.xlu0 %1843
        %v1845 = vsel %vm868, %v1835, -inf
        %1846 = vmax.xlane.f32.xlu0 %v1845
        %v1847 = vpop.xlane.xlu0 %1846
        %v1848 = vsub.f32 %v1832, %v1838
        %v1849 = vsub.f32 %v1833, %v1841
        %v1850 = vsub.f32 %v1834, %v1844
        %v1851 = vsub.f32 %v1835, %v1847
        %v1852 = vmul.f32 %v1848, 1.442695
        %v1853 = vpow.pop %v1852
        %v1854 = vmul.f32 %v1849, 1.442695
        %v1855 = vpow.pop %v1854
        %v1856 = vmul.f32 %v1850, 1.442695
        %v1857 = vpow.pop %v1856
        %v1858 = vmul.f32 %v1851, 1.442695
        %v1859 = vpow.pop %v1858
        %v1860 = vsel %vm868, %v1853, 0.0
        %1861 = vadd.xlane.f32.xlu0 %v1860
        %v1862 = vpop.xlane.xlu0 %1861
        %v1863 = vsel %vm868, %v1855, 0.0
        %1864 = vadd.xlane.f32.xlu0 %v1863
        %v1865 = vpop.xlane.xlu0 %1864
        %v1866 = vsel %vm868, %v1857, 0.0
        %1867 = vadd.xlane.f32.xlu0 %v1866
        %v1868 = vpop.xlane.xlu0 %1867
        %v1869 = vsel %vm868, %v1859, 0.0
        %1870 = vadd.xlane.f32.xlu0 %v1869
        %v1871 = vpop.xlane.xlu0 %1870
        %v1872 = vrcp.pop %v1862
        %v1873 = vmul.f32 %v1853, %v1872
        %v1874 = vrcp.pop %v1865
        %v1875 = vmul.f32 %v1855, %v1874
        %v1876 = vrcp.pop %v1868
        %v1877 = vmul.f32 %v1857, %v1876
        %v1878 = vrcp.pop %v1871
        %v1879 = vmul.f32 %v1859, %v1878
        %v1880 = vpack.c.bf16 %v1875, %v1873
        %v1881 = vpack.c.bf16 %v1879, %v1877
        %v1882 = vpack.c.bf16 %v1756, %v1753
        %v1883 = vpack.c.bf16 %v1764, %v1761
        %v1885 = vsel %vm868, %v1880, 0
        %v1888 = vsel %vm868, %v1881, 0
        %1890 = vmatprep.subr.bf16.mxu0 0
        %1891 = vmatpush1.bf16.msra.mxu0 %v1882
        %1892 = vmatprep.subr.bf16.mxu0 0
        %1893 = vmatpush1.bf16.msra.mxu0 %v1883
        %1894 = vmatprep.subr.bf16.mxu0 0
        %1895 = vmatpush1.bf16.msra.mxu0 0
        %1896 = vmatprep.subr.bf16.mxu0 0
        %1897 = vmatpush1.bf16.msra.mxu0 0
        %1898 = vmatprep.subr.bf16.mxu0 0
        %1899 = vmatpush1.bf16.msra.mxu0 0
        %1900 = vmatprep.subr.bf16.mxu0 0
        %1901 = vmatpush1.bf16.msra.mxu0 0
        %1902 = vmatprep.subr.bf16.mxu0 0
        %1903 = vmatpush1.bf16.msra.mxu0 0
        %1904 = vmatprep.subr.bf16.mxu0 0
        %1905 = vmatpush1.bf16.msra.mxu0 0
        %1906 = vmatprep.subr.bf16.mxu0 0
        %1907 = vmatpush1.bf16.msra.mxu0 0
        %1908 = vmatprep.subr.bf16.mxu0 0
        %1909 = vmatpush1.bf16.msra.mxu0 0
        %1910 = vmatprep.subr.bf16.mxu0 0
        %1911 = vmatpush1.bf16.msra.mxu0 0
        %1912 = vmatprep.subr.bf16.mxu0 0
        %1913 = vmatpush1.bf16.msra.mxu0 0
        %1914 = vmatprep.subr.bf16.mxu0 0
        %1915 = vmatpush1.bf16.msra.mxu0 0
        %1916 = vmatprep.subr.bf16.mxu0 0
        %1917 = vmatpush1.bf16.msra.mxu0 0
        %1918 = vmatprep.subr.bf16.mxu0 0
        %1919 = vmatpush1.bf16.msra.mxu0 0
        %1920 = vmatprep.subr.bf16.mxu0 0
        %1921 = vmatpush1.bf16.msra.mxu0 0
        %1922 = vmatprep.mubr.bf16.mxu0 0
        %1923 = vmatmul.mubr.bf16.gmra.mrb[0].mxu0 %v1885
        %v1924 = vpop.f32.mrb[0].mxu0
        %v1925 = vadd.f32 0.0, %v1924
        %v1926 = vpop.f32.mrb[0].mxu0
        %v1927 = vpop.f32.mrb[0].mxu0
        %v1928 = vadd.f32 0.0, %v1927
        %v1929 = vpop.f32.mrb[0].mxu0
        %1930 = vmatprep.mubr.bf16.mxu0 0
        %1931 = vmatmul.mubr.bf16.gmra.mrb[0].mxu0 %v1888
        %v1932 = vpop.f32.mrb[0].mxu0
        %v1933 = vadd.f32 0.0, %v1932
        %v1934 = vpop.f32.mrb[0].mxu0
        %v1935 = vpop.f32.mrb[0].mxu0
        %v1936 = vadd.f32 0.0, %v1935
        %v1937 = vpop.f32.mrb[0].mxu0
        %1938 = vdwg.mxu0
        %v1939 = vpack.c.bf16 %v1928, %v1925
        %v1940 = vpack.c.bf16 %v1936, %v1933
        %s1941 = scalar_lea.vmem %s6, 16
        %v1942 = vld [vmem:[%s1941] sm:$0xf]
        %v1943 = vld [vmem:[%s1941 + $0x4] sm:$0xf]
        %v1946 = vunpack.c.l.b16 %v1942
        %v1947 = vunpack.c.l.b16 %v1943
        %v1948 = vpack.c.b16 %v1947, %v1946
        %v1951 = vsel %vm802, %v1939, 0
        %v1954 = vsel %vm802, %v1940, 0
        %1956 = vmatprep.subr.bf16.mxu0 0
        %1957 = vmatpush1.bf16.msra.mxu0 %v1948
        %1958 = vmatprep.subr.bf16.mxu0 0
        %1959 = vmatpush1.bf16.msra.mxu0 0
        %1960 = vmatprep.subr.bf16.mxu0 0
        %1961 = vmatpush1.bf16.msra.mxu0 0
        %1962 = vmatprep.subr.bf16.mxu0 0
        %1963 = vmatpush1.bf16.msra.mxu0 0
        %1964 = vmatprep.subr.bf16.mxu0 0
        %1965 = vmatpush1.bf16.msra.mxu0 0
        %1966 = vmatprep.subr.bf16.mxu0 0
        %1967 = vmatpush1.bf16.msra.mxu0 0
        %1968 = vmatprep.subr.bf16.mxu0 0
        %1969 = vmatpush1.bf16.msra.mxu0 0
        %1970 = vmatprep.subr.bf16.mxu0 0
        %1971 = vmatpush1.bf16.msra.mxu0 0
        %1972 = vmatprep.subr.bf16.mxu0 0
        %1973 = vmatpush1.bf16.msra.mxu0 0
        %1974 = vmatprep.subr.bf16.mxu0 0
        %1975 = vmatpush1.bf16.msra.mxu0 0
        %1976 = vmatprep.subr.bf16.mxu0 0
        %1977 = vmatpush1.bf16.msra.mxu0 0
        %1978 = vmatprep.subr.bf16.mxu0 0
        %1979 = vmatpush1.bf16.msra.mxu0 0
        %1980 = vmatprep.subr.bf16.mxu0 0
        %1981 = vmatpush1.bf16.msra.mxu0 0
        %1982 = vmatprep.subr.bf16.mxu0 0
        %1983 = vmatpush1.bf16.msra.mxu0 0
        %1984 = vmatprep.subr.bf16.mxu0 0
        %1985 = vmatpush1.bf16.msra.mxu0 0
        %1986 = vmatprep.subr.bf16.mxu0 0
        %1987 = vmatpush1.bf16.msra.mxu0 0
        %1988 = vmatprep.mubr.bf16.mxu0 0
        %1989 = vmatmul.mubr.bf16.gmra.mrb[0].mxu0 %v1951
        %v1990 = vpop.f32.mrb[0].mxu0
        %v1991 = vadd.f32 0.0, %v1990
        %v1992 = vpop.f32.mrb[0].mxu0
        %v1993 = vpop.f32.mrb[0].mxu0
        %v1994 = vadd.f32 0.0, %v1993
        %v1995 = vpop.f32.mrb[0].mxu0
        %1996 = vmatprep.mubr.bf16.mxu0 0
        %1997 = vmatmul.mubr.bf16.gmra.mrb[0].mxu0 %v1954
        %v1998 = vpop.f32.mrb[0].mxu0
        %v1999 = vadd.f32 0.0, %v1998
        %v2000 = vpop.f32.mrb[0].mxu0
        %v2001 = vpop.f32.mrb[0].mxu0
        %v2002 = vadd.f32 0.0, %v2001
        %v2003 = vpop.f32.mrb[0].mxu0
        %2004 = vdwg.mxu0
        %v2005 = vadd.f32 %v1507, %v1991
        %v2006 = vadd.f32 %v1510, %v1994
        %v2007 = vadd.f32 %v1515, %v1999
        %v2008 = vadd.f32 %v1518, %v2002
        %s2009 = scalar_lea.vmem %s3, 96
        %v2010 = vld [vmem:[%s2009] sm:$0xf]
        %v2011 = vld [vmem:[%s2009 + $0x4] sm:$0xf]
        %v2012 = vld [vmem:[%s2009 + $0x8] sm:$0xf]
        %v2013 = vld [vmem:[%s2009 + $0xc] sm:$0xf]
        %v2014 = vld [vmem:[%s2009 + $0x10] sm:$0xf]
        %v2015 = vld [vmem:[%s2009 + $0x14] sm:$0xf]
        %v2016 = vld [vmem:[%s2009 + $0x18] sm:$0xf]
        %v2017 = vld [vmem:[%s2009 + $0x1c] sm:$0xf]
        %v2026 = vunpack.c.l.b16 %v2010
        %v2027 = vunpack.c.l.b16 %v2011
        %v2028 = vunpack.c.l.b16 %v2012
        %v2029 = vunpack.c.l.b16 %v2013
        %v2030 = vunpack.c.l.b16 %v2014
        %v2031 = vunpack.c.l.b16 %v2015
        %v2032 = vunpack.c.l.b16 %v2016
        %v2033 = vunpack.c.l.b16 %v2017
        %v2034 = vpack.c.b16 %v2027, %v2026
        %v2035 = vpack.c.b16 %v2029, %v2028
        %v2036 = vpack.c.b16 %v2031, %v2030
        %v2037 = vpack.c.b16 %v2033, %v2032
        %2042 = vmatprep.subr.bf16.mxu0 0
        %2043 = vmatpush1.bf16.msra.mxu0 %v2034
        %2044 = vmatprep.subr.bf16.mxu0 0
        %2045 = vmatpush1.bf16.msra.mxu0 %v2035
        %2046 = vmatprep.subr.bf16.mxu0 0
        %2047 = vmatpush1.bf16.msra.mxu0 %v2036
        %2048 = vmatprep.subr.bf16.mxu0 0
        %2049 = vmatpush1.bf16.msra.mxu0 %v2037
        %2050 = vmatprep.subr.bf16.mxu0 0
        %2051 = vmatpush1.bf16.msra.mxu0 0
        %2052 = vmatprep.subr.bf16.mxu0 0
        %2053 = vmatpush1.bf16.msra.mxu0 0
        %2054 = vmatprep.subr.bf16.mxu0 0
        %2055 = vmatpush1.bf16.msra.mxu0 0
        %2056 = vmatprep.subr.bf16.mxu0 0
        %2057 = vmatpush1.bf16.msra.mxu0 0
        %2058 = vmatprep.subr.bf16.mxu0 0
        %2059 = vmatpush1.bf16.msra.mxu0 0
        %2060 = vmatprep.subr.bf16.mxu0 0
        %2061 = vmatpush1.bf16.msra.mxu0 0
        %2062 = vmatprep.subr.bf16.mxu0 0
        %2063 = vmatpush1.bf16.msra.mxu0 0
        %2064 = vmatprep.subr.bf16.mxu0 0
        %2065 = vmatpush1.bf16.msra.mxu0 0
        %2066 = vmatprep.subr.bf16.mxu0 0
        %2067 = vmatpush1.bf16.msra.mxu0 0
        %2068 = vmatprep.subr.bf16.mxu0 0
        %2069 = vmatpush1.bf16.msra.mxu0 0
        %2070 = vmatprep.subr.bf16.mxu0 0
        %2071 = vmatpush1.bf16.msra.mxu0 0
        %2072 = vmatprep.subr.bf16.mxu0 0
        %2073 = vmatpush1.bf16.msra.mxu0 0
        %2074 = vmatprep.mubr.bf16.mxu0 0
        %2075 = vmatmul.mubr.bf16.gmra.mrb[0].mxu0 %v582
        %v2076 = vpop.f32.mrb[0].mxu0
        %v2077 = vadd.f32 0.0, %v2076
        %v2078 = vpop.f32.mrb[0].mxu0
        %v2079 = vpop.f32.mrb[0].mxu0
        %v2080 = vadd.f32 0.0, %v2079
        %v2081 = vpop.f32.mrb[0].mxu0
        %2082 = vmatprep.mubr.bf16.mxu0 0
        %2083 = vmatmul.mubr.bf16.gmra.mrb[0].mxu0 %v585
        %v2084 = vpop.f32.mrb[0].mxu0
        %v2085 = vadd.f32 0.0, %v2084
        %v2086 = vpop.f32.mrb[0].mxu0
        %v2087 = vpop.f32.mrb[0].mxu0
        %v2088 = vadd.f32 0.0, %v2087
        %v2089 = vpop.f32.mrb[0].mxu0
        %2090 = vdwg.mxu0
        %s2091 = scalar_lea.vmem %s4, 96
        %v2092 = vld [vmem:[%s2091] sm:$0xf]
        %v2093 = vld [vmem:[%s2091 + $0x4] sm:$0xf]
        %v2094 = vld [vmem:[%s2091 + $0x8] sm:$0xf]
        %v2095 = vld [vmem:[%s2091 + $0xc] sm:$0xf]
        %v2096 = vld [vmem:[%s2091 + $0x10] sm:$0xf]
        %v2097 = vld [vmem:[%s2091 + $0x14] sm:$0xf]
        %v2098 = vld [vmem:[%s2091 + $0x18] sm:$0xf]
        %v2099 = vld [vmem:[%s2091 + $0x1c] sm:$0xf]
        %v2108 = vunpack.c.l.b16 %v2092
        %v2109 = vunpack.c.l.b16 %v2093
        %v2110 = vunpack.c.l.b16 %v2094
        %v2111 = vunpack.c.l.b16 %v2095
        %v2112 = vunpack.c.l.b16 %v2096
        %v2113 = vunpack.c.l.b16 %v2097
        %v2114 = vunpack.c.l.b16 %v2098
        %v2115 = vunpack.c.l.b16 %v2099
        %v2116 = vpack.c.b16 %v2109, %v2108
        %v2117 = vpack.c.b16 %v2111, %v2110
        %v2118 = vpack.c.b16 %v2113, %v2112
        %v2119 = vpack.c.b16 %v2115, %v2114
        %2124 = vmatprep.subr.bf16.mxu0 0
        %2125 = vmatpush1.bf16.msra.mxu0 %v2116
        %2126 = vmatprep.subr.bf16.mxu0 0
        %2127 = vmatpush1.bf16.msra.mxu0 %v2117
        %2128 = vmatprep.subr.bf16.mxu0 0
        %2129 = vmatpush1.bf16.msra.mxu0 %v2118
        %2130 = vmatprep.subr.bf16.mxu0 0
        %2131 = vmatpush1.bf16.msra.mxu0 %v2119
        %2132 = vmatprep.subr.bf16.mxu0 0
        %2133 = vmatpush1.bf16.msra.mxu0 0
        %2134 = vmatprep.subr.bf16.mxu0 0
        %2135 = vmatpush1.bf16.msra.mxu0 0
        %2136 = vmatprep.subr.bf16.mxu0 0
        %2137 = vmatpush1.bf16.msra.mxu0 0
        %2138 = vmatprep.subr.bf16.mxu0 0
        %2139 = vmatpush1.bf16.msra.mxu0 0
        %2140 = vmatprep.subr.bf16.mxu0 0
        %2141 = vmatpush1.bf16.msra.mxu0 0
        %2142 = vmatprep.subr.bf16.mxu0 0
        %2143 = vmatpush1.bf16.msra.mxu0 0
        %2144 = vmatprep.subr.bf16.mxu0 0
        %2145 = vmatpush1.bf16.msra.mxu0 0
        %2146 = vmatprep.subr.bf16.mxu0 0
        %2147 = vmatpush1.bf16.msra.mxu0 0
        %2148 = vmatprep.subr.bf16.mxu0 0
        %2149 = vmatpush1.bf16.msra.mxu0 0
        %2150 = vmatprep.subr.bf16.mxu0 0
        %2151 = vmatpush1.bf16.msra.mxu0 0
        %2152 = vmatprep.subr.bf16.mxu0 0
        %2153 = vmatpush1.bf16.msra.mxu0 0
        %2154 = vmatprep.subr.bf16.mxu0 0
        %2155 = vmatpush1.bf16.msra.mxu0 0
        %2156 = vmatprep.mubr.bf16.mxu0 0
        %2157 = vmatmul.mubr.bf16.gmra.mrb[0].mxu0 %v582
        %v2158 = vpop.f32.mrb[0].mxu0
        %v2159 = vadd.f32 0.0, %v2158
        %v2160 = vpop.f32.mrb[0].mxu0
        %v2161 = vpop.f32.mrb[0].mxu0
        %v2162 = vadd.f32 0.0, %v2161
        %v2163 = vpop.f32.mrb[0].mxu0
        %2164 = vmatprep.mubr.bf16.mxu0 0
        %2165 = vmatmul.mubr.bf16.gmra.mrb[0].mxu0 %v585
        %v2166 = vpop.f32.mrb[0].mxu0
        %v2167 = vadd.f32 0.0, %v2166
        %v2168 = vpop.f32.mrb[0].mxu0
        %v2169 = vpop.f32.mrb[0].mxu0
        %v2170 = vadd.f32 0.0, %v2169
        %v2171 = vpop.f32.mrb[0].mxu0
        %2172 = vdwg.mxu0
        %s2173 = scalar_lea.vmem %s5, 96
        %v2174 = vld [vmem:[%s2173] sm:$0xf]
        %v2175 = vld [vmem:[%s2173 + $0x4] sm:$0xf]
        %v2176 = vld [vmem:[%s2173 + $0x8] sm:$0xf]
        %v2177 = vld [vmem:[%s2173 + $0xc] sm:$0xf]
        %v2178 = vld [vmem:[%s2173 + $0x10] sm:$0xf]
        %v2179 = vld [vmem:[%s2173 + $0x14] sm:$0xf]
        %v2180 = vld [vmem:[%s2173 + $0x18] sm:$0xf]
        %v2181 = vld [vmem:[%s2173 + $0x1c] sm:$0xf]
        %v2190 = vunpack.c.l.b16 %v2174
        %v2191 = vunpack.c.l.b16 %v2175
        %v2192 = vunpack.c.l.b16 %v2176
        %v2193 = vunpack.c.l.b16 %v2177
        %v2194 = vunpack.c.l.b16 %v2178
        %v2195 = vunpack.c.l.b16 %v2179
        %v2196 = vunpack.c.l.b16 %v2180
        %v2197 = vunpack.c.l.b16 %v2181
        %v2198 = vpack.c.b16 %v2191, %v2190
        %v2199 = vpack.c.b16 %v2193, %v2192
        %v2200 = vpack.c.b16 %v2195, %v2194
        %v2201 = vpack.c.b16 %v2197, %v2196
        %2206 = vmatprep.subr.bf16.mxu0 0
        %2207 = vmatpush1.bf16.msra.mxu0 %v2198
        %2208 = vmatprep.subr.bf16.mxu0 0
        %2209 = vmatpush1.bf16.msra.mxu0 %v2199
        %2210 = vmatprep.subr.bf16.mxu0 0
        %2211 = vmatpush1.bf16.msra.mxu0 %v2200
        %2212 = vmatprep.subr.bf16.mxu0 0
        %2213 = vmatpush1.bf16.msra.mxu0 %v2201
        %2214 = vmatprep.subr.bf16.mxu0 0
        %2215 = vmatpush1.bf16.msra.mxu0 0
        %2216 = vmatprep.subr.bf16.mxu0 0
        %2217 = vmatpush1.bf16.msra.mxu0 0
        %2218 = vmatprep.subr.bf16.mxu0 0
        %2219 = vmatpush1.bf16.msra.mxu0 0
        %2220 = vmatprep.subr.bf16.mxu0 0
        %2221 = vmatpush1.bf16.msra.mxu0 0
        %2222 = vmatprep.subr.bf16.mxu0 0
        %2223 = vmatpush1.bf16.msra.mxu0 0
        %2224 = vmatprep.subr.bf16.mxu0 0
        %2225 = vmatpush1.bf16.msra.mxu0 0
        %2226 = vmatprep.subr.bf16.mxu0 0
        %2227 = vmatpush1.bf16.msra.mxu0 0
        %2228 = vmatprep.subr.bf16.mxu0 0
        %2229 = vmatpush1.bf16.msra.mxu0 0
        %2230 = vmatprep.subr.bf16.mxu0 0
        %2231 = vmatpush1.bf16.msra.mxu0 0
        %2232 = vmatprep.subr.bf16.mxu0 0
        %2233 = vmatpush1.bf16.msra.mxu0 0
        %2234 = vmatprep.subr.bf16.mxu0 0
        %2235 = vmatpush1.bf16.msra.mxu0 0
        %2236 = vmatprep.subr.bf16.mxu0 0
        %2237 = vmatpush1.bf16.msra.mxu0 0
        %2238 = vmatprep.mubr.bf16.mxu0 0
        %2239 = vmatmul.mubr.bf16.gmra.mrb[0].mxu0 %v582
        %v2240 = vpop.f32.mrb[0].mxu0
        %v2241 = vadd.f32 0.0, %v2240
        %v2242 = vpop.f32.mrb[0].mxu0
        %v2243 = vpop.f32.mrb[0].mxu0
        %v2244 = vadd.f32 0.0, %v2243
        %v2245 = vpop.f32.mrb[0].mxu0
        %2246 = vmatprep.mubr.bf16.mxu0 0
        %2247 = vmatmul.mubr.bf16.gmra.mrb[0].mxu0 %v585
        %v2248 = vpop.f32.mrb[0].mxu0
        %v2249 = vadd.f32 0.0, %v2248
        %v2250 = vpop.f32.mrb[0].mxu0
        %v2251 = vpop.f32.mrb[0].mxu0
        %v2252 = vadd.f32 0.0, %v2251
        %v2253 = vpop.f32.mrb[0].mxu0
        %2254 = vdwg.mxu0
        %v2255 = vpack.c.bf16 %v2080, %v2077
        %v2256 = vpack.c.bf16 %v2088, %v2085
        %v2257 = vpack.c.bf16 %v2162, %v2159
        %v2258 = vpack.c.bf16 %v2170, %v2167
        %v2260 = vsel %vm802, %v2255, 0
        %v2263 = vsel %vm802, %v2256, 0
        %v2266 = vsel %vm802, %v2257, 0
        %v2269 = vsel %vm802, %v2258, 0
        %2271 = vmatprep.subr.bf16.mxu0 0
        %2272 = vmatpush1.bf16.xpose.msra.mxu0 %v2266
        %2273 = vmatprep.subr.bf16.mxu0 0
        %2274 = vmatpush1.bf16.xpose.msra.mxu0 %v2269
        %2275 = vmatprep.subr.bf16.mxu0 0
        %2276 = vmatpush1.bf16.xpose.msra.mxu0 0
        %2277 = vmatprep.subr.bf16.mxu0 0
        %2278 = vmatpush1.bf16.xpose.msra.mxu0 0
        %2279 = vmatprep.subr.bf16.mxu0 0
        %2280 = vmatpush1.bf16.xpose.msra.mxu0 0
        %2281 = vmatprep.subr.bf16.mxu0 0
        %2282 = vmatpush1.bf16.xpose.msra.mxu0 0
        %2283 = vmatprep.subr.bf16.mxu0 0
        %2284 = vmatpush1.bf16.xpose.msra.mxu0 0
        %2285 = vmatprep.subr.bf16.mxu0 0
        %2286 = vmatpush1.bf16.xpose.msra.mxu0 0
        %2287 = vmatprep.subr.bf16.mxu0 0
        %2288 = vmatpush1.bf16.xpose.msra.mxu0 0
        %2289 = vmatprep.subr.bf16.mxu0 0
        %2290 = vmatpush1.bf16.xpose.msra.mxu0 0
        %2291 = vmatprep.subr.bf16.mxu0 0
        %2292 = vmatpush1.bf16.xpose.msra.mxu0 0
        %2293 = vmatprep.subr.bf16.mxu0 0
        %2294 = vmatpush1.bf16.xpose.msra.mxu0 0
        %2295 = vmatprep.subr.bf16.mxu0 0
        %2296 = vmatpush1.bf16.xpose.msra.mxu0 0
        %2297 = vmatprep.subr.bf16.mxu0 0
        %2298 = vmatpush1.bf16.xpose.msra.mxu0 0
        %2299 = vmatprep.subr.bf16.mxu0 0
        %2300 = vmatpush1.bf16.xpose.msra.mxu0 0
        %2301 = vmatprep.subr.bf16.mxu0 0
        %2302 = vmatpush1.bf16.xpose.msra.mxu0 0
        %2303 = vmatprep.mubr.bf16.mxu0 0
        %2304 = vmatmul.mubr.bf16.gmra.mrb[0].mxu0 %v2260
        %v2305 = vpop.f32.mrb[0].mxu0
        %v2306 = vadd.f32 0.0, %v2305
        %v2307 = vpop.f32.mrb[0].mxu0
        %v2308 = vpop.f32.mrb[0].mxu0
        %v2309 = vadd.f32 0.0, %v2308
        %v2310 = vpop.f32.mrb[0].mxu0
        %2311 = vmatprep.mubr.bf16.mxu0 0
        %2312 = vmatmul.mubr.bf16.gmra.mrb[0].mxu0 %v2263
        %v2313 = vpop.f32.mrb[0].mxu0
        %v2314 = vadd.f32 0.0, %v2313
        %v2315 = vpop.f32.mrb[0].mxu0
        %v2316 = vpop.f32.mrb[0].mxu0
        %v2317 = vadd.f32 0.0, %v2316
        %v2318 = vpop.f32.mrb[0].mxu0
        %2319 = vdwg.mxu0
        %v2320 = vmul.f32 %v2306, 0.25
        %v2321 = vmul.f32 %v2309, 0.25
        %v2322 = vmul.f32 %v2314, 0.25
        %v2323 = vmul.f32 %v2317, 0.25
        %v2324 = vsel %vm868, %v2320, -inf
        %2325 = vmax.xlane.f32.xlu0 %v2324
        %v2326 = vpop.xlane.xlu0 %2325
        %v2327 = vsel %vm868, %v2321, -inf
        %2328 = vmax.xlane.f32.xlu0 %v2327
        %v2329 = vpop.xlane.xlu0 %2328
        %v2330 = vsel %vm868, %v2322, -inf
        %2331 = vmax.xlane.f32.xlu0 %v2330
        %v2332 = vpop.xlane.xlu0 %2331
        %v2333 = vsel %vm868, %v2323, -inf
        %2334 = vmax.xlane.f32.xlu0 %v2333
        %v2335 = vpop.xlane.xlu0 %2334
        %v2336 = vsub.f32 %v2320, %v2326
        %v2337 = vsub.f32 %v2321, %v2329
        %v2338 = vsub.f32 %v2322, %v2332
        %v2339 = vsub.f32 %v2323, %v2335
        %v2340 = vmul.f32 %v2336, 1.442695
        %v2341 = vpow.pop %v2340
        %v2342 = vmul.f32 %v2337, 1.442695
        %v2343 = vpow.pop %v2342
        %v2344 = vmul.f32 %v2338, 1.442695
        %v2345 = vpow.pop %v2344
        %v2346 = vmul.f32 %v2339, 1.442695
        %v2347 = vpow.pop %v2346
        %v2348 = vsel %vm868, %v2341, 0.0
        %2349 = vadd.xlane.f32.xlu0 %v2348
        %v2350 = vpop.xlane.xlu0 %2349
        %v2351 = vsel %vm868, %v2343, 0.0
        %2352 = vadd.xlane.f32.xlu0 %v2351
        %v2353 = vpop.xlane.xlu0 %2352
        %v2354 = vsel %vm868, %v2345, 0.0
        %2355 = vadd.xlane.f32.xlu0 %v2354
        %v2356 = vpop.xlane.xlu0 %2355
        %v2357 = vsel %vm868, %v2347, 0.0
        %2358 = vadd.xlane.f32.xlu0 %v2357
        %v2359 = vpop.xlane.xlu0 %2358
        %v2360 = vrcp.pop %v2350
        %v2361 = vmul.f32 %v2341, %v2360
        %v2362 = vrcp.pop %v2353
        %v2363 = vmul.f32 %v2343, %v2362
        %v2364 = vrcp.pop %v2356
        %v2365 = vmul.f32 %v2345, %v2364
        %v2366 = vrcp.pop %v2359
        %v2367 = vmul.f32 %v2347, %v2366
        %v2368 = vpack.c.bf16 %v2363, %v2361
        %v2369 = vpack.c.bf16 %v2367, %v2365
        %v2370 = vpack.c.bf16 %v2244, %v2241
        %v2371 = vpack.c.bf16 %v2252, %v2249
        %v2373 = vsel %vm868, %v2368, 0
        %v2376 = vsel %vm868, %v2369, 0
        %2378 = vmatprep.subr.bf16.mxu0 0
        %2379 = vmatpush1.bf16.msra.mxu0 %v2370
        %2380 = vmatprep.subr.bf16.mxu0 0
        %2381 = vmatpush1.bf16.msra.mxu0 %v2371
        %2382 = vmatprep.subr.bf16.mxu0 0
        %2383 = vmatpush1.bf16.msra.mxu0 0
        %2384 = vmatprep.subr.bf16.mxu0 0
        %2385 = vmatpush1.bf16.msra.mxu0 0
        %2386 = vmatprep.subr.bf16.mxu0 0
        %2387 = vmatpush1.bf16.msra.mxu0 0
        %2388 = vmatprep.subr.bf16.mxu0 0
        %2389 = vmatpush1.bf16.msra.mxu0 0
        %2390 = vmatprep.subr.bf16.mxu0 0
        %2391 = vmatpush1.bf16.msra.mxu0 0
        %2392 = vmatprep.subr.bf16.mxu0 0
        %2393 = vmatpush1.bf16.msra.mxu0 0
        %2394 = vmatprep.subr.bf16.mxu0 0
        %2395 = vmatpush1.bf16.msra.mxu0 0
        %2396 = vmatprep.subr.bf16.mxu0 0
        %2397 = vmatpush1.bf16.msra.mxu0 0
        %2398 = vmatprep.subr.bf16.mxu0 0
        %2399 = vmatpush1.bf16.msra.mxu0 0
        %2400 = vmatprep.subr.bf16.mxu0 0
        %2401 = vmatpush1.bf16.msra.mxu0 0
        %2402 = vmatprep.subr.bf16.mxu0 0
        %2403 = vmatpush1.bf16.msra.mxu0 0
        %2404 = vmatprep.subr.bf16.mxu0 0
        %2405 = vmatpush1.bf16.msra.mxu0 0
        %2406 = vmatprep.subr.bf16.mxu0 0
        %2407 = vmatpush1.bf16.msra.mxu0 0
        %2408 = vmatprep.subr.bf16.mxu0 0
        %2409 = vmatpush1.bf16.msra.mxu0 0
        %2410 = vmatprep.mubr.bf16.mxu0 0
        %2411 = vmatmul.mubr.bf16.gmra.mrb[0].mxu0 %v2373
        %v2412 = vpop.f32.mrb[0].mxu0
        %v2413 = vadd.f32 0.0, %v2412
        %v2414 = vpop.f32.mrb[0].mxu0
        %v2415 = vpop.f32.mrb[0].mxu0
        %v2416 = vadd.f32 0.0, %v2415
        %v2417 = vpop.f32.mrb[0].mxu0
        %2418 = vmatprep.mubr.bf16.mxu0 0
        %2419 = vmatmul.mubr.bf16.gmra.mrb[0].mxu0 %v2376
        %v2420 = vpop.f32.mrb[0].mxu0
        %v2421 = vadd.f32 0.0, %v2420
        %v2422 = vpop.f32.mrb[0].mxu0
        %v2423 = vpop.f32.mrb[0].mxu0
        %v2424 = vadd.f32 0.0, %v2423
        %v2425 = vpop.f32.mrb[0].mxu0
        %2426 = vdwg.mxu0
        %v2427 = vpack.c.bf16 %v2416, %v2413
        %v2428 = vpack.c.bf16 %v2424, %v2421
        %s2429 = scalar_lea.vmem %s6, 24
        %v2430 = vld [vmem:[%s2429] sm:$0xf]
        %v2431 = vld [vmem:[%s2429 + $0x4] sm:$0xf]
        %v2434 = vunpack.c.l.b16 %v2430
        %v2435 = vunpack.c.l.b16 %v2431
        %v2436 = vpack.c.b16 %v2435, %v2434
        %v2439 = vsel %vm802, %v2427, 0
        %v2442 = vsel %vm802, %v2428, 0
        %2444 = vmatprep.subr.bf16.mxu0 0
        %2445 = vmatpush1.bf16.msra.mxu0 %v2436
        %2446 = vmatprep.subr.bf16.mxu0 0
        %2447 = vmatpush1.bf16.msra.mxu0 0
        %2448 = vmatprep.subr.bf16.mxu0 0
        %2449 = vmatpush1.bf16.msra.mxu0 0
        %2450 = vmatprep.subr.bf16.mxu0 0
        %2451 = vmatpush1.bf16.msra.mxu0 0
        %2452 = vmatprep.subr.bf16.mxu0 0
        %2453 = vmatpush1.bf16.msra.mxu0 0
        %2454 = vmatprep.subr.bf16.mxu0 0
        %2455 = vmatpush1.bf16.msra.mxu0 0
        %2456 = vmatprep.subr.bf16.mxu0 0
        %2457 = vmatpush1.bf16.msra.mxu0 0
        %2458 = vmatprep.subr.bf16.mxu0 0
        %2459 = vmatpush1.bf16.msra.mxu0 0
        %2460 = vmatprep.subr.bf16.mxu0 0
        %2461 = vmatpush1.bf16.msra.mxu0 0
        %2462 = vmatprep.subr.bf16.mxu0 0
        %2463 = vmatpush1.bf16.msra.mxu0 0
        %2464 = vmatprep.subr.bf16.mxu0 0
        %2465 = vmatpush1.bf16.msra.mxu0 0
        %2466 = vmatprep.subr.bf16.mxu0 0
        %2467 = vmatpush1.bf16.msra.mxu0 0
        %2468 = vmatprep.subr.bf16.mxu0 0
        %2469 = vmatpush1.bf16.msra.mxu0 0
        %2470 = vmatprep.subr.bf16.mxu0 0
        %2471 = vmatpush1.bf16.msra.mxu0 0
        %2472 = vmatprep.subr.bf16.mxu0 0
        %2473 = vmatpush1.bf16.msra.mxu0 0
        %2474 = vmatprep.subr.bf16.mxu0 0
        %2475 = vmatpush1.bf16.msra.mxu0 0
        %2476 = vmatprep.mubr.bf16.mxu0 0
        %2477 = vmatmul.mubr.bf16.gmra.mrb[0].mxu0 %v2439
        %v2478 = vpop.f32.mrb[0].mxu0
        %v2479 = vadd.f32 0.0, %v2478
        %v2480 = vpop.f32.mrb[0].mxu0
        %v2481 = vpop.f32.mrb[0].mxu0
        %v2482 = vadd.f32 0.0, %v2481
        %v2483 = vpop.f32.mrb[0].mxu0
        %2484 = vmatprep.mubr.bf16.mxu0 0
        %2485 = vmatmul.mubr.bf16.gmra.mrb[0].mxu0 %v2442
        %v2486 = vpop.f32.mrb[0].mxu0
        %v2487 = vadd.f32 0.0, %v2486
        %v2488 = vpop.f32.mrb[0].mxu0
        %v2489 = vpop.f32.mrb[0].mxu0
        %v2490 = vadd.f32 0.0, %v2489
        %v2491 = vpop.f32.mrb[0].mxu0
        %2492 = vdwg.mxu0
        %v2493 = vadd.f32 %v2005, %v2479
        %v2494 = vadd.f32 %v2006, %v2482
        %v2495 = vadd.f32 %v2007, %v2487
        %v2496 = vadd.f32 %v2008, %v2490
        %v2497 = vadd.f32 %v467, %v2493
        %v2498 = vadd.f32 %v468, %v2494
        %v2499 = vadd.f32 %v469, %v2495
        %v2500 = vadd.f32 %v470, %v2496
        %v2501 = vld [vmem:[%s7] sm:$0x1]
        %v2503 = vlaneseq
        %v2504 = vshrl.u32 %v2503, 7
        %v2505 = vsub.s32 0, %v2504
        %v2506 = vrot.slane %v2501, %v2505
        %v2508 = vadd.f32 %v2497, %v2506
        %v2509 = vadd.f32 %v2498, %v2506
        %v2510 = vadd.f32 %v2499, %v2506
        %v2511 = vadd.f32 %v2500, %v2506
        %v2512 = vld [vmem:[%s8] sm:$0x1]
        %v2513 = vld [vmem:[%s9] sm:$0x1]
        %v2514 = vsel %vm473, %v2508, 0.0
        %2515 = vadd.xlane.f32.xlu0 %v2514
        %v2516 = vpop.xlane.xlu0 %2515
        %v2517 = vsel %vm473, %v2509, 0.0
        %2518 = vadd.xlane.f32.xlu0 %v2517
        %v2519 = vpop.xlane.xlu0 %2518
        %v2520 = vsel %vm473, %v2510, 0.0
        %2521 = vadd.xlane.f32.xlu0 %v2520
        %v2522 = vpop.xlane.xlu0 %2521
        %v2523 = vsel %vm473, %v2511, 0.0
        %2524 = vadd.xlane.f32.xlu0 %v2523
        %v2525 = vpop.xlane.xlu0 %2524
        %v2526 = vmul.f32 %v2516, %v486
        %v2527 = vmul.f32 %v2519, %v486
        %v2528 = vmul.f32 %v2522, %v486
        %v2529 = vmul.f32 %v2525, %v486
        %v2530 = vsub.f32 %v2508, %v2526
        %v2531 = vsub.f32 %v2509, %v2527
        %v2532 = vsub.f32 %v2510, %v2528
        %v2533 = vsub.f32 %v2511, %v2529
        %v2534 = vmul.f32 %v2530, %v2530
        %v2535 = vmul.f32 %v2531, %v2531
        %v2536 = vmul.f32 %v2532, %v2532
        %v2537 = vmul.f32 %v2533, %v2533
        %v2538 = vsel %vm473, %v2534, 0.0
        %2539 = vadd.xlane.f32.xlu0 %v2538
        %v2540 = vpop.xlane.xlu0 %2539
        %v2541 = vsel %vm473, %v2535, 0.0
        %2542 = vadd.xlane.f32.xlu0 %v2541
        %v2543 = vpop.xlane.xlu0 %2542
        %v2544 = vsel %vm473, %v2536, 0.0
        %2545 = vadd.xlane.f32.xlu0 %v2544
        %v2546 = vpop.xlane.xlu0 %2545
        %v2547 = vsel %vm473, %v2537, 0.0
        %2548 = vadd.xlane.f32.xlu0 %v2547
        %v2549 = vpop.xlane.xlu0 %2548
        %v2550 = vmul.f32 %v2540, %v486
        %v2551 = vmul.f32 %v2543, %v486
        %v2552 = vmul.f32 %v2546, %v486
        %v2553 = vmul.f32 %v2549, %v486
        %v2554 = vadd.f32 %v2550, 1e-06
        %v2555 = vadd.f32 %v2551, 1e-06
        %v2556 = vadd.f32 %v2552, 1e-06
        %v2557 = vadd.f32 %v2553, 1e-06
        %v2558 = vrsqrt.pop %v2554
        %v2559 = vrsqrt.pop %v2555
        %v2560 = vrsqrt.pop %v2556
        %v2561 = vrsqrt.pop %v2557
        %v2562 = vmul.f32 %v2530, %v2558
        %v2563 = vmul.f32 %v2531, %v2559
        %v2564 = vmul.f32 %v2532, %v2560
        %v2565 = vmul.f32 %v2533, %v2561
        %v2567 = vlaneseq
        %v2568 = vshrl.u32 %v2567, 7
        %v2569 = vsub.s32 0, %v2568
        %v2570 = vrot.slane %v2512, %v2569
        %v2572 = vmul.f32 %v2562, %v2570
        %v2573 = vmul.f32 %v2563, %v2570
        %v2574 = vmul.f32 %v2564, %v2570
        %v2575 = vmul.f32 %v2565, %v2570
        %v2577 = vlaneseq
        %v2578 = vshrl.u32 %v2577, 7
        %v2579 = vsub.s32 0, %v2578
        %v2580 = vrot.slane %v2513, %v2579
        %v2582 = vadd.f32 %v2572, %v2580
        %v2583 = vadd.f32 %v2573, %v2580
        %v2584 = vadd.f32 %v2574, %v2580
        %v2585 = vadd.f32 %v2575, %v2580
        %v2586 = vpack.c.bf16 %v2583, %v2582
        %v2587 = vpack.c.bf16 %v2585, %v2584
        %v2588 = vld [vmem:[%s10] sm:$0xff]
        %v2589 = vld [vmem:[%s10 + $0x8] sm:$0xff]
        %v2590 = vld [vmem:[%s10 + $0x10] sm:$0xff]
        %v2591 = vld [vmem:[%s10 + $0x18] sm:$0xff]
        %v2592 = vld [vmem:[%s10 + $0x20] sm:$0xff]
        %v2593 = vld [vmem:[%s10 + $0x28] sm:$0xff]
        %v2594 = vld [vmem:[%s10 + $0x30] sm:$0xff]
        %v2595 = vld [vmem:[%s10 + $0x38] sm:$0xff]
        %v2596 = vld [vmem:[%s11] sm:$0x3]
        %v2598 = vlaneseq
        %v2599 = vshrl.u32 %v2598, 7
        %v2600 = vsub.s32 0, %v2599
        %v2601 = vrot.slane %v2596, %v2600
        %v2602 = vlaneseq
        %v2603 = vshrl.u32 %v2602, 7
        %v2604 = vsub.s32 1, %v2603
        %v2605 = vrot.slane %v2596, %v2604
        %v2616 = vunpack.c.l.b16 %v2588
        %v2617 = vunpack.c.h.b16 %v2588
        %v2618 = vunpack.c.l.b16 %v2589
        %v2619 = vunpack.c.h.b16 %v2589
        %v2620 = vunpack.c.l.b16 %v2590
        %v2621 = vunpack.c.h.b16 %v2590
        %v2622 = vunpack.c.l.b16 %v2591
        %v2623 = vunpack.c.h.b16 %v2591
        %v2624 = vunpack.c.l.b16 %v2592
        %v2625 = vunpack.c.h.b16 %v2592
        %v2626 = vunpack.c.l.b16 %v2593
        %v2627 = vunpack.c.h.b16 %v2593
        %v2628 = vunpack.c.l.b16 %v2594
        %v2629 = vunpack.c.h.b16 %v2594
        %v2630 = vunpack.c.l.b16 %v2595
        %v2631 = vunpack.c.h.b16 %v2595
        %v2632 = vpack.c.b16 %v2618, %v2616
        %v2633 = vpack.c.b16 %v2619, %v2617
        %v2634 = vpack.c.b16 %v2622, %v2620
        %v2635 = vpack.c.b16 %v2623, %v2621
        %v2636 = vpack.c.b16 %v2626, %v2624
        %v2637 = vpack.c.b16 %v2627, %v2625
        %v2638 = vpack.c.b16 %v2630, %v2628
        %v2639 = vpack.c.b16 %v2631, %v2629
        %v2649 = vsel %vm473, %v2586, 0
        %v2652 = vsel %vm473, %v2587, 0
        %2654 = vmatprep.subr.bf16.mxu0 %v2633
        %2655 = vmatpush1.bf16.msra.mxu0 %v2632
        %2656 = vmatprep.subr.bf16.mxu0 %v2635
        %2657 = vmatpush1.bf16.msra.mxu0 %v2634
        %2658 = vmatprep.subr.bf16.mxu0 %v2637
        %2659 = vmatpush1.bf16.msra.mxu0 %v2636
        %2660 = vmatprep.subr.bf16.mxu0 %v2639
        %2661 = vmatpush1.bf16.msra.mxu0 %v2638
        %2662 = vmatprep.subr.bf16.mxu0 0
        %2663 = vmatpush1.bf16.msra.mxu0 0
        %2664 = vmatprep.subr.bf16.mxu0 0
        %2665 = vmatpush1.bf16.msra.mxu0 0
        %2666 = vmatprep.subr.bf16.mxu0 0
        %2667 = vmatpush1.bf16.msra.mxu0 0
        %2668 = vmatprep.subr.bf16.mxu0 0
        %2669 = vmatpush1.bf16.msra.mxu0 0
        %2670 = vmatprep.subr.bf16.mxu0 0
        %2671 = vmatpush1.bf16.msra.mxu0 0
        %2672 = vmatprep.subr.bf16.mxu0 0
        %2673 = vmatpush1.bf16.msra.mxu0 0
        %2674 = vmatprep.subr.bf16.mxu0 0
        %2675 = vmatpush1.bf16.msra.mxu0 0
        %2676 = vmatprep.subr.bf16.mxu0 0
        %2677 = vmatpush1.bf16.msra.mxu0 0
        %2678 = vmatprep.subr.bf16.mxu0 0
        %2679 = vmatpush1.bf16.msra.mxu0 0
        %2680 = vmatprep.subr.bf16.mxu0 0
        %2681 = vmatpush1.bf16.msra.mxu0 0
        %2682 = vmatprep.subr.bf16.mxu0 0
        %2683 = vmatpush1.bf16.msra.mxu0 0
        %2684 = vmatprep.subr.bf16.mxu0 0
        %2685 = vmatpush1.bf16.msra.mxu0 0
        %2686 = vmatprep.mubr.bf16.mxu0 0
        %2687 = vmatmul.mubr.bf16.gmra.mrb[0].mxu0 %v2649
        %v2688 = vpop.f32.mrb[0].mxu0
        %v2689 = vadd.f32 %v2601, %v2688
        %v2690 = vpop.f32.mrb[0].mxu0
        %v2691 = vadd.f32 %v2605, %v2690
        %v2692 = vpop.f32.mrb[0].mxu0
        %v2693 = vadd.f32 %v2601, %v2692
        %v2694 = vpop.f32.mrb[0].mxu0
        %v2695 = vadd.f32 %v2605, %v2694
        %2696 = vmatprep.mubr.bf16.mxu0 0
        %2697 = vmatmul.mubr.bf16.gmra.mrb[0].mxu0 %v2652
        %v2698 = vpop.f32.mrb[0].mxu0
        %v2699 = vadd.f32 %v2601, %v2698
        %v2700 = vpop.f32.mrb[0].mxu0
        %v2701 = vadd.f32 %v2605, %v2700
        %v2702 = vpop.f32.mrb[0].mxu0
        %v2703 = vadd.f32 %v2601, %v2702
        %v2704 = vpop.f32.mrb[0].mxu0
        %v2705 = vadd.f32 %v2605, %v2704
        %2706 = vdwg.mxu0
        %v2707 = vmul.f32 %v2689, 0.5
        %v2708 = vmul.f32 %v2691, 0.5
        %v2709 = vmul.f32 %v2693, 0.5
        %v2710 = vmul.f32 %v2695, 0.5
        %v2711 = vmul.f32 %v2699, 0.5
        %v2712 = vmul.f32 %v2701, 0.5
        %v2713 = vmul.f32 %v2703, 0.5
        %v2714 = vmul.f32 %v2705, 0.5
        %v2715 = vmul.f32 %v2689, 0.70710677
        %v2716 = vmul.f32 %v2691, 0.70710677
        %v2717 = vmul.f32 %v2693, 0.70710677
        %v2718 = vmul.f32 %v2695, 0.70710677
        %v2719 = vmul.f32 %v2699, 0.70710677
        %v2720 = vmul.f32 %v2701, 0.70710677
        %v2721 = vmul.f32 %v2703, 0.70710677
        %v2722 = vmul.f32 %v2705, 0.70710677
        %v2723 = verf.f32.pop %v2715
        %v2724 = verf.f32.pop %v2716
        %v2725 = verf.f32.pop %v2717
        %v2726 = verf.f32.pop %v2718
        %v2727 = verf.f32.pop %v2719
        %v2728 = verf.f32.pop %v2720
        %v2729 = verf.f32.pop %v2721
        %v2730 = verf.f32.pop %v2722
        %v2731 = vadd.f32 %v2723, 1.0
        %v2732 = vadd.f32 %v2724, 1.0
        %v2733 = vadd.f32 %v2725, 1.0
        %v2734 = vadd.f32 %v2726, 1.0
        %v2735 = vadd.f32 %v2727, 1.0
        %v2736 = vadd.f32 %v2728, 1.0
        %v2737 = vadd.f32 %v2729, 1.0
        %v2738 = vadd.f32 %v2730, 1.0
        %v2739 = vmul.f32 %v2707, %v2731
        %v2740 = vmul.f32 %v2708, %v2732
        %v2741 = vmul.f32 %v2709, %v2733
        %v2742 = vmul.f32 %v2710, %v2734
        %v2743 = vmul.f32 %v2711, %v2735
        %v2744 = vmul.f32 %v2712, %v2736
        %v2745 = vmul.f32 %v2713, %v2737
        %v2746 = vmul.f32 %v2714, %v2738
        %v2747 = vpack.c.bf16 %v2741, %v2739
        %v2748 = vpack.c.bf16 %v2742, %v2740
        %v2749 = vpack.c.bf16 %v2745, %v2743
        %v2750 = vpack.c.bf16 %v2746, %v2744
        %v2751 = vld [vmem:[%s12] sm:$0xf]
        %v2752 = vld [vmem:[%s12 + $0x4] sm:$0xf]
        %v2753 = vld [vmem:[%s12 + $0x8] sm:$0xf]
        %v2754 = vld [vmem:[%s12 + $0xc] sm:$0xf]
        %v2755 = vld [vmem:[%s12 + $0x10] sm:$0xf]
        %v2756 = vld [vmem:[%s12 + $0x14] sm:$0xf]
        %v2757 = vld [vmem:[%s12 + $0x18] sm:$0xf]
        %v2758 = vld [vmem:[%s12 + $0x1c] sm:$0xf]
        %v2759 = vld [vmem:[%s12 + $0x20] sm:$0xf]
        %v2760 = vld [vmem:[%s12 + $0x24] sm:$0xf]
        %v2761 = vld [vmem:[%s12 + $0x28] sm:$0xf]
        %v2762 = vld [vmem:[%s12 + $0x2c] sm:$0xf]
        %v2763 = vld [vmem:[%s12 + $0x30] sm:$0xf]
        %v2764 = vld [vmem:[%s12 + $0x34] sm:$0xf]
        %v2765 = vld [vmem:[%s12 + $0x38] sm:$0xf]
        %v2766 = vld [vmem:[%s12 + $0x3c] sm:$0xf]
        %v2767 = vld [vmem:[%s12 + $0x40] sm:$0xf]
        %v2768 = vld [vmem:[%s12 + $0x44] sm:$0xf]
        %v2769 = vld [vmem:[%s12 + $0x48] sm:$0xf]
        %v2770 = vld [vmem:[%s12 + $0x4c] sm:$0xf]
        %v2771 = vld [vmem:[%s12 + $0x50] sm:$0xf]
        %v2772 = vld [vmem:[%s12 + $0x54] sm:$0xf]
        %v2773 = vld [vmem:[%s12 + $0x58] sm:$0xf]
        %v2774 = vld [vmem:[%s12 + $0x5c] sm:$0xf]
        %v2775 = vld [vmem:[%s12 + $0x60] sm:$0xf]
        %v2776 = vld [vmem:[%s12 + $0x64] sm:$0xf]
        %v2777 = vld [vmem:[%s12 + $0x68] sm:$0xf]
        %v2778 = vld [vmem:[%s12 + $0x6c] sm:$0xf]
        %v2779 = vld [vmem:[%s12 + $0x70] sm:$0xf]
        %v2780 = vld [vmem:[%s12 + $0x74] sm:$0xf]
        %v2781 = vld [vmem:[%s12 + $0x78] sm:$0xf]
        %v2782 = vld [vmem:[%s12 + $0x7c] sm:$0xf]
        %v2815 = vunpack.c.l.b16 %v2751
        %v2816 = vunpack.c.l.b16 %v2752
        %v2817 = vunpack.c.l.b16 %v2753
        %v2818 = vunpack.c.l.b16 %v2754
        %v2819 = vunpack.c.l.b16 %v2755
        %v2820 = vunpack.c.l.b16 %v2756
        %v2821 = vunpack.c.l.b16 %v2757
        %v2822 = vunpack.c.l.b16 %v2758
        %v2823 = vunpack.c.l.b16 %v2759
        %v2824 = vunpack.c.l.b16 %v2760
        %v2825 = vunpack.c.l.b16 %v2761
        %v2826 = vunpack.c.l.b16 %v2762
        %v2827 = vunpack.c.l.b16 %v2763
        %v2828 = vunpack.c.l.b16 %v2764
        %v2829 = vunpack.c.l.b16 %v2765
        %v2830 = vunpack.c.l.b16 %v2766
        %v2831 = vunpack.c.l.b16 %v2767
        %v2832 = vunpack.c.l.b16 %v2768
        %v2833 = vunpack.c.l.b16 %v2769
        %v2834 = vunpack.c.l.b16 %v2770
        %v2835 = vunpack.c.l.b16 %v2771
        %v2836 = vunpack.c.l.b16 %v2772
        %v2837 = vunpack.c.l.b16 %v2773
        %v2838 = vunpack.c.l.b16 %v2774
        %v2839 = vunpack.c.l.b16 %v2775
        %v2840 = vunpack.c.l.b16 %v2776
        %v2841 = vunpack.c.l.b16 %v2777
        %v2842 = vunpack.c.l.b16 %v2778
        %v2843 = vunpack.c.l.b16 %v2779
        %v2844 = vunpack.c.l.b16 %v2780
        %v2845 = vunpack.c.l.b16 %v2781
        %v2846 = vunpack.c.l.b16 %v2782
        %v2847 = vpack.c.b16 %v2816, %v2815
        %v2848 = vpack.c.b16 %v2818, %v2817
        %v2849 = vpack.c.b16 %v2820, %v2819
        %v2850 = vpack.c.b16 %v2822, %v2821
        %v2851 = vpack.c.b16 %v2824, %v2823
        %v2852 = vpack.c.b16 %v2826, %v2825
        %v2853 = vpack.c.b16 %v2828, %v2827
        %v2854 = vpack.c.b16 %v2830, %v2829
        %v2855 = vpack.c.b16 %v2832, %v2831
        %v2856 = vpack.c.b16 %v2834, %v2833
        %v2857 = vpack.c.b16 %v2836, %v2835
        %v2858 = vpack.c.b16 %v2838, %v2837
        %v2859 = vpack.c.b16 %v2840, %v2839
        %v2860 = vpack.c.b16 %v2842, %v2841
        %v2861 = vpack.c.b16 %v2844, %v2843
        %v2862 = vpack.c.b16 %v2846, %v2845
        %2879 = vmatprep.subr.bf16.mxu0 0
        %2880 = vmatpush1.bf16.msra.mxu0 %v2847
        %2881 = vmatprep.subr.bf16.mxu0 0
        %2882 = vmatpush1.bf16.msra.mxu0 %v2848
        %2883 = vmatprep.subr.bf16.mxu0 0
        %2884 = vmatpush1.bf16.msra.mxu0 %v2849
        %2885 = vmatprep.subr.bf16.mxu0 0
        %2886 = vmatpush1.bf16.msra.mxu0 %v2850
        %2887 = vmatprep.subr.bf16.mxu0 0
        %2888 = vmatpush1.bf16.msra.mxu0 %v2851
        %2889 = vmatprep.subr.bf16.mxu0 0
        %2890 = vmatpush1.bf16.msra.mxu0 %v2852
        %2891 = vmatprep.subr.bf16.mxu0 0
        %2892 = vmatpush1.bf16.msra.mxu0 %v2853
        %2893 = vmatprep.subr.bf16.mxu0 0
        %2894 = vmatpush1.bf16.msra.mxu0 %v2854
        %2895 = vmatprep.subr.bf16.mxu0 0
        %2896 = vmatpush1.bf16.msra.mxu0 %v2855
        %2897 = vmatprep.subr.bf16.mxu0 0
        %2898 = vmatpush1.bf16.msra.mxu0 %v2856
        %2899 = vmatprep.subr.bf16.mxu0 0
        %2900 = vmatpush1.bf16.msra.mxu0 %v2857
        %2901 = vmatprep.subr.bf16.mxu0 0
        %2902 = vmatpush1.bf16.msra.mxu0 %v2858
        %2903 = vmatprep.subr.bf16.mxu0 0
        %2904 = vmatpush1.bf16.msra.mxu0 %v2859
        %2905 = vmatprep.subr.bf16.mxu0 0
        %2906 = vmatpush1.bf16.msra.mxu0 %v2860
        %2907 = vmatprep.subr.bf16.mxu0 0
        %2908 = vmatpush1.bf16.msra.mxu0 %v2861
        %2909 = vmatprep.subr.bf16.mxu0 0
        %2910 = vmatpush1.bf16.msra.mxu0 %v2862
        %2911 = vmatprep.mubr.bf16.mxu0 %v2748
        %2912 = vmatmul.mubr.bf16.gmra.mrb[0].mxu0 %v2747
        %v2913 = vpop.f32.mrb[0].mxu0
        %v2914 = vadd.f32 0.0, %v2913
        %v2915 = vpop.f32.mrb[0].mxu0
        %v2916 = vpop.f32.mrb[0].mxu0
        %v2917 = vadd.f32 0.0, %v2916
        %v2918 = vpop.f32.mrb[0].mxu0
        %2919 = vmatprep.mubr.bf16.mxu0 %v2750
        %2920 = vmatmul.mubr.bf16.gmra.mrb[0].mxu0 %v2749
        %v2921 = vpop.f32.mrb[0].mxu0
        %v2922 = vadd.f32 0.0, %v2921
        %v2923 = vpop.f32.mrb[0].mxu0
        %v2924 = vpop.f32.mrb[0].mxu0
        %v2925 = vadd.f32 0.0, %v2924
        %v2926 = vpop.f32.mrb[0].mxu0
        %2927 = vdwg.mxu0
        %v2928 = vadd.f32 %v2508, %v2914
        %v2929 = vadd.f32 %v2509, %v2917
        %v2930 = vadd.f32 %v2510, %v2922
        %v2931 = vadd.f32 %v2511, %v2925
        %v2932 = vld [vmem:[%s13] sm:$0x1]
        %v2934 = vlaneseq
        %v2935 = vshrl.u32 %v2934, 7
        %v2936 = vsub.s32 0, %v2935
        %v2937 = vrot.slane %v2932, %v2936
        %v2939 = vadd.f32 %v2928, %v2937
        %v2940 = vadd.f32 %v2929, %v2937
        %v2941 = vadd.f32 %v2930, %v2937
        %v2942 = vadd.f32 %v2931, %v2937
        %2943 = vst.msk [vmem:[%s460] sm:$0xff] %vm473, %v2939
        %2944 = vst.msk [vmem:[%s460 + $0x8] sm:$0xff] %vm473, %v2940
        %2945 = vst.msk [vmem:[%s460 + $0x10] sm:$0xff] %vm473, %v2941
        %2946 = vst.msk [vmem:[%s460 + $0x18] sm:$0xff] %vm473, %v2942
        %s2947 = sand.u32 %s335, 1
        %s2948 = scalar_lea.sflag [#allocation3], %s2947
        %s2949 = sand.u32 %s335, 1
        %s2950 = smul.addr %s2949, 32
        %s2951 = scalar_lea.vmem [#allocation2], %s2950
        // Predicated region
        $region77: #{block_forward.1} parent=75 // pred_check
          %p2952 = pneg %p345
        $region78: #{block_forward.1} parent=75 // pred_check_branch
          %2954 = sbr.rel (%p2952) target = $region80
        $region79: #{block_forward.1} parent=75 // pred_region
          %s2956 = ssub.s32 512, 512
          %2957 = vsyncadd %s2948, %s2956
          %s2958 = smul.addr %s28, 4
          %s2959 = smul.addr %s2958, 128
          %s2960 = scalar_lea.hbm %s14, %s2959
          %s2961 = sshll.u32 %s2951, 4
          %s2962 = int_to_ptr.vmem [resolvable:$true] %s2961
          %2967 = dma.vmem_to_hbm [thread:$0]  %s2962, 512, %s2960, %s2948, 128, 128, 8
        $region80: #{block_forward.1} parent=75 // pred_fallthru
          _
      $region76: #{block_forward.1} parent=5 // pred_fallthru
        _
      %p2968 = scmp.le.s32.totalorder 2, %s23
      // Predicated region
      $region81: #{block_forward.1} parent=5 // pred_check
        %p2969 = pneg %p2968
      $region82: #{block_forward.1} parent=5 // pred_check_branch
        %2971 = sbr.rel (%p2969) target = $region84
      $region83: #{block_forward.1} parent=5 // pred_region
        %s2972 = ssub.s32 %s23, 2
        // Predicated region
        $region85: #{block_forward.1} parent=83 // pred_check
          %p2973 = pneg %p351
        $region86: #{block_forward.1} parent=83 // pred_check_branch
          %2975 = sbr.rel (%p2973) target = $region88
        $region87: #{block_forward.1} parent=83 // pred_region
          %s2976 = sand.u32 %s336, 1
          %s2977 = scalar_lea.sflag [#allocation3], %s2976
          %s2978 = sand.u32 %s336, 1
          %s2979 = smul.addr %s2978, 32
          %s2980 = scalar_lea.vmem [#allocation2], %s2979
          %2981 = dma.done %s2977, 512
        $region88: #{block_forward.1} parent=83 // pred_fallthru
          _
      $region84: #{block_forward.1} parent=5 // pred_fallthru
        _
    $region6: #{block_forward.1} parent=1 // loop_footer
      %s27 = sadd.s32 1, %s23
    $region7: #{block_forward.1} parent=1 // loop_footer_branch
      %22 = sbr.rel target = $region3
    $region8: #{block_forward.1} parent=1 // loop_exit
      _
    %2982 = vsyncpa [#allocation3], 1
    %s2983 = scalar_lea.sflag [#allocation3], 1
    %2984 = vsyncpa %s2983, 1

</llo_original>
